<compile_context>
chip_gen: v6e
topology: v6e:2x2x1
jax: 0.10.0
libtpu: 0.0.40
codegen_flags: <defaults>
</compile_context>

<pallas_src>
import jax
import jax.numpy as jnp
from jax import lax
from jax.experimental import pallas as pl
from jax.experimental.pallas import tpu as pltpu

_CPAD = 8     # 3 conv channels padded to one sublane tile
_NPOS = 64    # 8x8 pooled spatial positions
_KWIN = 25    # 5x5 input window feeding one pooled position
_NCLS = 10


def _round_up(x, m):
    return ((x + m - 1) // m) * m


def _make_kernel(pos_per_chunk):
    """Build the kernel with a static lane-chunking factor (divides 64)."""
    n_chunks = _NPOS // pos_per_chunk

    def convnet_kernel(x_ref, wconv_ref, bconv_ref, wfc_ref, bfc_ref, out_ref, p_ref):
        # x_ref:     (25, 64*B) bf16  pool-im2col, lane index = p*B + b
        # wconv_ref: (72, 25)   bf16  conv weight at the 9 pool offsets, row = j*8 + c
        # bconv_ref: (8, 1)     f32   conv bias (padded channels zero)
        # wfc_ref:   (10, 512)  bf16  fc weight, column = p*8 + c (padded c zero)
        # bfc_ref:   (10, 1)    f32   fc bias
        # out_ref:   (10, B)    f32   log-softmax (transposed; wrapper untransposes)
        # p_ref:     (512, B)   f32   VMEM scratch for the (c, p*B+b) -> (p*8+c, b) pivot
        b_tile = out_ref.shape[1]
        q_chunk = pos_per_chunk * b_tile

        wconv = wconv_ref[...]
        bconv = bconv_ref[...]

        # conv at all 9 offsets of every 3x3 pool window, processed in lane
        # chunks so the f32 intermediate stays small and overlappable.
        for c in range(n_chunks):
            xc = x_ref[:, c * q_chunk:(c + 1) * q_chunk]            # (25, q_chunk) bf16
            r = jnp.dot(wconv, xc, preferred_element_type=jnp.float32)  # (72, q_chunk) f32
            # rows are grouped j*8+c with 8 = sublane tile, so this reshape is
            # layout-free and the max over the 9 pool offsets is pure VPU work.
            r = r.reshape(9, _CPAD, q_chunk)
            pooled = jnp.max(r, axis=0)                              # (8, q_chunk)
            # per-channel bias is constant -> adding after the max is equivalent; then relu.
            pooled = jnp.maximum(pooled + bconv, 0.0)
            # pivot: (c, p*B+b) -> rows p*8+c, lanes b (all (8,128)-aligned f32 stores).
            for pp in range(pos_per_chunk):
                p = c * pos_per_chunk + pp
                p_ref[pl.ds(p * _CPAD, _CPAD), :] = pooled[:, pp * b_tile:(pp + 1) * b_tile]

        # fully connected: one (10,512)@(512,B) matmul with bf16 operands,
        # f32 accumulation, + bias.
        logits = jnp.dot(wfc_ref[...], p_ref[...].astype(jnp.bfloat16),
                         preferred_element_type=jnp.float32) + bfc_ref[...]   # (10, B)

        # log_softmax over the 10 classes (sublane axis), numerically stabilized.
        m = jnp.max(logits, axis=0, keepdims=True)
        s = logits - m
        lse = jnp.log(jnp.sum(jnp.exp(s), axis=0, keepdims=True))
        out_ref[...] = s - lse

    return convnet_kernel


def convnet_forward(x, conv_w, conv_b, fc_w, fc_b, block_b=512):
    """x: (N, 1, 28, 28) float32 (NCHW). Returns (N, 10) log-probs."""
    n = x.shape[0]
    n_pad128 = _round_up(n, 128)
    b_tile = min(block_b, n_pad128)
    # prefer >= 2 grid steps when the whole batch would fit in one tile
    # (v7x has 2 TensorCores; "parallel" grid axes shard across them).
    if b_tile > 128 and n_pad128 <= b_tile:
        b_tile = max(128, _round_up(n_pad128 // 2, 128))
    n_pad = _round_up(n, b_tile)
    t = n_pad // b_tile

    # lane-chunking factor for the in-kernel conv loop (power of two dividing 64,
    # targeting ~2048-lane chunks).
    pos_per_chunk = 1
    while pos_per_chunk * 2 <= _NPOS and pos_per_chunk * 2 * b_tile <= 2048:
        pos_per_chunk *= 2

    # ---- pool-im2col via static strided slices (no gather), all in bf16 ----
    x2d = jnp.pad(x[:, 0], ((0, n_pad - n), (0, 0), (0, 0))).astype(jnp.bfloat16)
    cols = [x2d[:, dy:dy + 22:3, dx:dx + 22:3]            # (n_pad, 8, 8) each
            for dy in range(5) for dx in range(5)]
    w = jnp.stack(cols, axis=0)                           # (25, n_pad, 8, 8)
    w = w.reshape(_KWIN, t, b_tile, _NPOS)                # n = t*B + b, p = ph*8+pw
    w = w.transpose(0, 1, 3, 2)                           # (25, t, 64, B)
    xg = w.reshape(_KWIN, t * _NPOS * b_tile)             # bf16

    # ---- 3x3 conv kernel embedded at the 9 pool offsets, channels padded 3 -> 8 ----
    wemb = jnp.zeros((9, _CPAD, 5, 5), jnp.float32)
    for dh in range(3):
        for dw in range(3):
            wemb = wemb.at[dh * 3 + dw, 0:3, dh:dh + 3, dw:dw + 3].set(conv_w[:, 0])
    wconv = wemb.reshape(9 * _CPAD, _KWIN).astype(jnp.bfloat16)       # row = j*8 + c

    bconv = jnp.zeros((_CPAD, 1), jnp.float32).at[0:3, 0].set(conv_b.astype(jnp.float32))

    # ---- fc weight permuted to column order p*8 + c (matches the in-kernel pivot) ----
    wfc_ocp = fc_w.reshape(_NCLS, 3, _NPOS).astype(jnp.float32)       # [o, c, p]
    wfc = jnp.zeros((_NCLS, _NPOS, _CPAD), jnp.float32)
    wfc = wfc.at[:, :, 0:3].set(jnp.transpose(wfc_ocp, (0, 2, 1)))    # [o, p, c]
    wfc = wfc.reshape(_NCLS, _NPOS * _CPAD).astype(jnp.bfloat16)      # (10, 512) bf16

    bfc = fc_b.reshape(_NCLS, 1).astype(jnp.float32)

    q_total = _NPOS * n_pad
    cost = pl.CostEstimate(
        flops=2 * (9 * _CPAD) * _KWIN * q_total + 2 * _NCLS * (_NPOS * _CPAD) * n_pad,
        transcendentals=_NCLS * n_pad,
        bytes_accessed=(_KWIN * q_total * 2 + _NCLS * n_pad * 4
                        + t * (9 * _CPAD * _KWIN * 2 + _CPAD * 4
                               + _NCLS * _NPOS * _CPAD * 2 + _NCLS * 4)),
    )

    out_t = pl.pallas_call(
        _make_kernel(pos_per_chunk),
        out_shape=jax.ShapeDtypeStruct((_NCLS, n_pad), jnp.float32),
        grid_spec=pltpu.PrefetchScalarGridSpec(
            num_scalar_prefetch=0,
            grid=(t,),
            in_specs=[
                pl.BlockSpec((_KWIN, _NPOS * b_tile), lambda i: (0, i)),
                pl.BlockSpec((9 * _CPAD, _KWIN), lambda i: (0, 0)),
                pl.BlockSpec((_CPAD, 1), lambda i: (0, 0)),
                pl.BlockSpec((_NCLS, _NPOS * _CPAD), lambda i: (0, 0)),
                pl.BlockSpec((_NCLS, 1), lambda i: (0, 0)),
            ],
            out_specs=pl.BlockSpec((_NCLS, b_tile), lambda i: (0, i)),
            scratch_shapes=[pltpu.VMEM((_NPOS * _CPAD, b_tile), jnp.float32)],
        ),
        compiler_params=pltpu.CompilerParams(
            dimension_semantics=("parallel",),
            vmem_limit_bytes=32 * 1024 * 1024,
        ),
        cost_estimate=cost,
    )(xg, wconv, bconv, wfc, bfc)

    return out_t[:, :n].T


def reference_forward(x, conv_w, conv_b, fc_w, fc_b):
    conv = lax.conv_general_dilated(
        x, conv_w, (1, 1), "VALID", dimension_numbers=("NCHW", "OIHW", "NCHW")
    ) + conv_b[None, :, None, None]
    pooled = lax.reduce_window(
        conv, -jnp.inf, lax.max, (1, 1, 3, 3), (1, 1, 3, 3), "VALID"
    )
    act = jnp.maximum(pooled, 0.0)
    flat = act.reshape(act.shape[0], -1)          # (N, 192), order c*64 + p
    logits = flat @ fc_w.T + fc_b
    return jax.nn.log_softmax(logits, axis=1)


if __name__ == "__main__":
    key = jax.random.PRNGKey(0)
    kx, k1, k2, k3, k4 = jax.random.split(key, 5)

    # MNIST-style input implied by the module: 1x28x28 -> conv(3) 26x26 ->
    # pool(3) 8x8 -> 3*8*8 = 192 features.
    x = jax.random.normal(kx, (2, 1, 28, 28), jnp.float32)

    conv_w = 0.2 * jax.random.normal(k1, (3, 1, 3, 3), jnp.float32)
    conv_b = 0.1 * jax.random.normal(k2, (3,), jnp.float32)
    fc_w = 0.05 * jax.random.normal(k3, (10, 192), jnp.float32)
    fc_b = 0.1 * jax.random.normal(k4, (10,), jnp.float32)

    fwd = jax.jit(convnet_forward)
    out = jax.block_until_ready(fwd(x, conv_w, conv_b, fc_w, fc_b))

    ref = reference_forward(x, conv_w, conv_b, fc_w, fc_b)
    assert out.shape == (2, 10)
    # bf16 activation/weight streams (conv + fc) -> slightly loosened tolerance.
    assert jnp.allclose(out, ref, atol=2e-2, rtol=2e-2), (out, ref)

    print("KERNEL_OK")
</pallas_src>

<mosaic_0001>
module attributes {stable_mosaic.version = 11 : i64} {
  func.func @convnet_kernel(%arg0: i32, %arg1: memref<25x8192xbf16, #tpu.memory_space<vmem>>, %arg2: memref<72x25xbf16, #tpu.memory_space<vmem>>, %arg3: memref<8x1xf32, #tpu.memory_space<vmem>>, %arg4: memref<10x512xbf16, #tpu.memory_space<vmem>>, %arg5: memref<10x1xf32, #tpu.memory_space<vmem>>, %arg6: memref<10x128xf32, #tpu.memory_space<vmem>>, %arg7: memref<512x128xf32, #tpu.memory_space<vmem>>) attributes {dimension_semantics = [#tpu.dimension_semantics<parallel>], iteration_bounds = array<i64: 1>, scalar_prefetch = 0 : i64, scratch_operands = 1 : i64, tpu.core_type = #tpu.core_type<tc>, window_params = [{transform_indices = @transform_0, window_bounds = array<i64: 25, 8192>}, {pipeline_mode = #tpu.pipeline_mode<synchronous>, transform_indices = @transform_1, window_bounds = array<i64: 72, 25>}, {pipeline_mode = #tpu.pipeline_mode<synchronous>, transform_indices = @transform_2, window_bounds = array<i64: 8, 1>}, {pipeline_mode = #tpu.pipeline_mode<synchronous>, transform_indices = @transform_3, window_bounds = array<i64: 10, 512>}, {pipeline_mode = #tpu.pipeline_mode<synchronous>, transform_indices = @transform_4, window_bounds = array<i64: 10, 1>}, {transform_indices = @transform_5, window_bounds = array<i64: 10, 128>}]} {
    %c0 = arith.constant 0 : index
    %c0_0 = arith.constant 0 : index
    %0 = vector.load %arg2[%c0, %c0_0] : memref<72x25xbf16, #tpu.memory_space<vmem>>, vector<72x25xbf16>
    %c0_1 = arith.constant 0 : index
    %c0_2 = arith.constant 0 : index
    %1 = vector.load %arg3[%c0_1, %c0_2] : memref<8x1xf32, #tpu.memory_space<vmem>>, vector<8x1xf32>
    %c0_3 = arith.constant 0 : index
    %c0_4 = arith.constant 0 : index
    %2 = vector.load %arg1[%c0_3, %c0_4] : memref<25x8192xbf16, #tpu.memory_space<vmem>>, vector<25x2048xbf16>
    %cst = arith.constant dense<0.000000e+00> : vector<72x2048xf32>
    %3 = tpu.matmul %0, %2, %cst {dimension_numbers = #tpu.dot_dimension_numbers<[1], [0], [0], [1], [0, 0, 1, 1], [], []>} : vector<72x25xbf16>, vector<25x2048xbf16>, vector<72x2048xf32> -> vector<72x2048xf32>
    %4 = vector.shape_cast %3 : vector<72x2048xf32> to vector<9x8x2048xf32>
    %cst_5 = arith.constant dense<0xFF800000> : vector<8x2048xf32>
    %5 = vector.multi_reduction <maximumf>, %4, %cst_5 [0] : vector<9x8x2048xf32> to vector<8x2048xf32>
    %6 = vector.broadcast %1 : vector<8x1xf32> to vector<8x2048xf32>
    %7 = arith.addf %5, %6 : vector<8x2048xf32>
    %cst_6 = arith.constant 0.000000e+00 : f32
    %8 = vector.broadcast %cst_6 : f32 to vector<8x2048xf32>
    %9 = arith.maximumf %7, %8 : vector<8x2048xf32>
    %10 = vector.extract_strided_slice %9 {offsets = [0, 0], sizes = [8, 128], strides = [1, 1]} : vector<8x2048xf32> to vector<8x128xf32>
    %c0_7 = arith.constant 0 : index
    %c0_8 = arith.constant 0 : index
    %11 = vector.load %arg7[%c0_7, %c0_8] : memref<512x128xf32, #tpu.memory_space<vmem>>, vector<8x128xf32>
    tpu.vector_store %arg7[%c0_7, %c0_8], %10 {strides = array<i32>} : memref<512x128xf32, #tpu.memory_space<vmem>>, vector<8x128xf32>,
    %12 = vector.extract_strided_slice %9 {offsets = [0, 128], sizes = [8, 128], strides = [1, 1]} : vector<8x2048xf32> to vector<8x128xf32>
    %c8 = arith.constant 8 : index
    %c0_9 = arith.constant 0 : index
    %13 = vector.load %arg7[%c8, %c0_9] : memref<512x128xf32, #tpu.memory_space<vmem>>, vector<8x128xf32>
    tpu.vector_store %arg7[%c8, %c0_9], %12 {strides = array<i32>} : memref<512x128xf32, #tpu.memory_space<vmem>>, vector<8x128xf32>,
    %14 = vector.extract_strided_slice %9 {offsets = [0, 256], sizes = [8, 128], strides = [1, 1]} : vector<8x2048xf32> to vector<8x128xf32>
    %c16 = arith.constant 16 : index
    %c0_10 = arith.constant 0 : index
    %15 = vector.load %arg7[%c16, %c0_10] : memref<512x128xf32, #tpu.memory_space<vmem>>, vector<8x128xf32>
    tpu.vector_store %arg7[%c16, %c0_10], %14 {strides = array<i32>} : memref<512x128xf32, #tpu.memory_space<vmem>>, vector<8x128xf32>,
    %16 = vector.extract_strided_slice %9 {offsets = [0, 384], sizes = [8, 128], strides = [1, 1]} : vector<8x2048xf32> to vector<8x128xf32>
    %c24 = arith.constant 24 : index
    %c0_11 = arith.constant 0 : index
    %17 = vector.load %arg7[%c24, %c0_11] : memref<512x128xf32, #tpu.memory_space<vmem>>, vector<8x128xf32>
    tpu.vector_store %arg7[%c24, %c0_11], %16 {strides = array<i32>} : memref<512x128xf32, #tpu.memory_space<vmem>>, vector<8x128xf32>,
    %18 = vector.extract_strided_slice %9 {offsets = [0, 512], sizes = [8, 128], strides = [1, 1]} : vector<8x2048xf32> to vector<8x128xf32>
    %c32 = arith.constant 32 : index
    %c0_12 = arith.constant 0 : index
    %19 = vector.load %arg7[%c32, %c0_12] : memref<512x128xf32, #tpu.memory_space<vmem>>, vector<8x128xf32>
    tpu.vector_store %arg7[%c32, %c0_12], %18 {strides = array<i32>} : memref<512x128xf32, #tpu.memory_space<vmem>>, vector<8x128xf32>,
    %20 = vector.extract_strided_slice %9 {offsets = [0, 640], sizes = [8, 128], strides = [1, 1]} : vector<8x2048xf32> to vector<8x128xf32>
    %c40 = arith.constant 40 : index
    %c0_13 = arith.constant 0 : index
    %21 = vector.load %arg7[%c40, %c0_13] : memref<512x128xf32, #tpu.memory_space<vmem>>, vector<8x128xf32>
    tpu.vector_store %arg7[%c40, %c0_13], %20 {strides = array<i32>} : memref<512x128xf32, #tpu.memory_space<vmem>>, vector<8x128xf32>,
    %22 = vector.extract_strided_slice %9 {offsets = [0, 768], sizes = [8, 128], strides = [1, 1]} : vector<8x2048xf32> to vector<8x128xf32>
    %c48 = arith.constant 48 : index
    %c0_14 = arith.constant 0 : index
    %23 = vector.load %arg7[%c48, %c0_14] : memref<512x128xf32, #tpu.memory_space<vmem>>, vector<8x128xf32>
    tpu.vector_store %arg7[%c48, %c0_14], %22 {strides = array<i32>} : memref<512x128xf32, #tpu.memory_space<vmem>>, vector<8x128xf32>,
    %24 = vector.extract_strided_slice %9 {offsets = [0, 896], sizes = [8, 128], strides = [1, 1]} : vector<8x2048xf32> to vector<8x128xf32>
    %c56 = arith.constant 56 : index
    %c0_15 = arith.constant 0 : index
    %25 = vector.load %arg7[%c56, %c0_15] : memref<512x128xf32, #tpu.memory_space<vmem>>, vector<8x128xf32>
    tpu.vector_store %arg7[%c56, %c0_15], %24 {strides = array<i32>} : memref<512x128xf32, #tpu.memory_space<vmem>>, vector<8x128xf32>,
    %26 = vector.extract_strided_slice %9 {offsets = [0, 1024], sizes = [8, 128], strides = [1, 1]} : vector<8x2048xf32> to vector<8x128xf32>
    %c64 = arith.constant 64 : index
    %c0_16 = arith.constant 0 : index
    %27 = vector.load %arg7[%c64, %c0_16] : memref<512x128xf32, #tpu.memory_space<vmem>>, vector<8x128xf32>
    tpu.vector_store %arg7[%c64, %c0_16], %26 {strides = array<i32>} : memref<512x128xf32, #tpu.memory_space<vmem>>, vector<8x128xf32>,
    %28 = vector.extract_strided_slice %9 {offsets = [0, 1152], sizes = [8, 128], strides = [1, 1]} : vector<8x2048xf32> to vector<8x128xf32>
    %c72 = arith.constant 72 : index
    %c0_17 = arith.constant 0 : index
    %29 = vector.load %arg7[%c72, %c0_17] : memref<512x128xf32, #tpu.memory_space<vmem>>, vector<8x128xf32>
    tpu.vector_store %arg7[%c72, %c0_17], %28 {strides = array<i32>} : memref<512x128xf32, #tpu.memory_space<vmem>>, vector<8x128xf32>,
    %30 = vector.extract_strided_slice %9 {offsets = [0, 1280], sizes = [8, 128], strides = [1, 1]} : vector<8x2048xf32> to vector<8x128xf32>
    %c80 = arith.constant 80 : index
    %c0_18 = arith.constant 0 : index
    %31 = vector.load %arg7[%c80, %c0_18] : memref<512x128xf32, #tpu.memory_space<vmem>>, vector<8x128xf32>
    tpu.vector_store %arg7[%c80, %c0_18], %30 {strides = array<i32>} : memref<512x128xf32, #tpu.memory_space<vmem>>, vector<8x128xf32>,
    %32 = vector.extract_strided_slice %9 {offsets = [0, 1408], sizes = [8, 128], strides = [1, 1]} : vector<8x2048xf32> to vector<8x128xf32>
    %c88 = arith.constant 88 : index
    %c0_19 = arith.constant 0 : index
    %33 = vector.load %arg7[%c88, %c0_19] : memref<512x128xf32, #tpu.memory_space<vmem>>, vector<8x128xf32>
    tpu.vector_store %arg7[%c88, %c0_19], %32 {strides = array<i32>} : memref<512x128xf32, #tpu.memory_space<vmem>>, vector<8x128xf32>,
    %34 = vector.extract_strided_slice %9 {offsets = [0, 1536], sizes = [8, 128], strides = [1, 1]} : vector<8x2048xf32> to vector<8x128xf32>
    %c96 = arith.constant 96 : index
    %c0_20 = arith.constant 0 : index
    %35 = vector.load %arg7[%c96, %c0_20] : memref<512x128xf32, #tpu.memory_space<vmem>>, vector<8x128xf32>
    tpu.vector_store %arg7[%c96, %c0_20], %34 {strides = array<i32>} : memref<512x128xf32, #tpu.memory_space<vmem>>, vector<8x128xf32>,
    %36 = vector.extract_strided_slice %9 {offsets = [0, 1664], sizes = [8, 128], strides = [1, 1]} : vector<8x2048xf32> to vector<8x128xf32>
    %c104 = arith.constant 104 : index
    %c0_21 = arith.constant 0 : index
    %37 = vector.load %arg7[%c104, %c0_21] : memref<512x128xf32, #tpu.memory_space<vmem>>, vector<8x128xf32>
    tpu.vector_store %arg7[%c104, %c0_21], %36 {strides = array<i32>} : memref<512x128xf32, #tpu.memory_space<vmem>>, vector<8x128xf32>,
    %38 = vector.extract_strided_slice %9 {offsets = [0, 1792], sizes = [8, 128], strides = [1, 1]} : vector<8x2048xf32> to vector<8x128xf32>
    %c112 = arith.constant 112 : index
    %c0_22 = arith.constant 0 : index
    %39 = vector.load %arg7[%c112, %c0_22] : memref<512x128xf32, #tpu.memory_space<vmem>>, vector<8x128xf32>
    tpu.vector_store %arg7[%c112, %c0_22], %38 {strides = array<i32>} : memref<512x128xf32, #tpu.memory_space<vmem>>, vector<8x128xf32>,
    %40 = vector.extract_strided_slice %9 {offsets = [0, 1920], sizes = [8, 128], strides = [1, 1]} : vector<8x2048xf32> to vector<8x128xf32>
    %c120 = arith.constant 120 : index
    %c0_23 = arith.constant 0 : index
    %41 = vector.load %arg7[%c120, %c0_23] : memref<512x128xf32, #tpu.memory_space<vmem>>, vector<8x128xf32>
    tpu.vector_store %arg7[%c120, %c0_23], %40 {strides = array<i32>} : memref<512x128xf32, #tpu.memory_space<vmem>>, vector<8x128xf32>,
    %c0_24 = arith.constant 0 : index
    %c2048 = arith.constant 2048 : index
    %42 = vector.load %arg1[%c0_24, %c2048] : memref<25x8192xbf16, #tpu.memory_space<vmem>>, vector<25x2048xbf16>
    %cst_25 = arith.constant dense<0.000000e+00> : vector<72x2048xf32>
    %43 = tpu.matmul %0, %42, %cst_25 {dimension_numbers = #tpu.dot_dimension_numbers<[1], [0], [0], [1], [0, 0, 1, 1], [], []>} : vector<72x25xbf16>, vector<25x2048xbf16>, vector<72x2048xf32> -> vector<72x2048xf32>
    %44 = vector.shape_cast %43 : vector<72x2048xf32> to vector<9x8x2048xf32>
    %cst_26 = arith.constant dense<0xFF800000> : vector<8x2048xf32>
    %45 = vector.multi_reduction <maximumf>, %44, %cst_26 [0] : vector<9x8x2048xf32> to vector<8x2048xf32>
    %46 = vector.broadcast %1 : vector<8x1xf32> to vector<8x2048xf32>
    %47 = arith.addf %45, %46 : vector<8x2048xf32>
    %cst_27 = arith.constant 0.000000e+00 : f32
    %48 = vector.broadcast %cst_27 : f32 to vector<8x2048xf32>
    %49 = arith.maximumf %47, %48 : vector<8x2048xf32>
    %50 = vector.extract_strided_slice %49 {offsets = [0, 0], sizes = [8, 128], strides = [1, 1]} : vector<8x2048xf32> to vector<8x128xf32>
    %c128 = arith.constant 128 : index
    %c0_28 = arith.constant 0 : index
    %51 = vector.load %arg7[%c128, %c0_28] : memref<512x128xf32, #tpu.memory_space<vmem>>, vector<8x128xf32>
    tpu.vector_store %arg7[%c128, %c0_28], %50 {strides = array<i32>} : memref<512x128xf32, #tpu.memory_space<vmem>>, vector<8x128xf32>,
    %52 = vector.extract_strided_slice %49 {offsets = [0, 128], sizes = [8, 128], strides = [1, 1]} : vector<8x2048xf32> to vector<8x128xf32>
    %c136 = arith.constant 136 : index
    %c0_29 = arith.constant 0 : index
    %53 = vector.load %arg7[%c136, %c0_29] : memref<512x128xf32, #tpu.memory_space<vmem>>, vector<8x128xf32>
    tpu.vector_store %arg7[%c136, %c0_29], %52 {strides = array<i32>} : memref<512x128xf32, #tpu.memory_space<vmem>>, vector<8x128xf32>,
    %54 = vector.extract_strided_slice %49 {offsets = [0, 256], sizes = [8, 128], strides = [1, 1]} : vector<8x2048xf32> to vector<8x128xf32>
    %c144 = arith.constant 144 : index
    %c0_30 = arith.constant 0 : index
    %55 = vector.load %arg7[%c144, %c0_30] : memref<512x128xf32, #tpu.memory_space<vmem>>, vector<8x128xf32>
    tpu.vector_store %arg7[%c144, %c0_30], %54 {strides = array<i32>} : memref<512x128xf32, #tpu.memory_space<vmem>>, vector<8x128xf32>,
    %56 = vector.extract_strided_slice %49 {offsets = [0, 384], sizes = [8, 128], strides = [1, 1]} : vector<8x2048xf32> to vector<8x128xf32>
    %c152 = arith.constant 152 : index
    %c0_31 = arith.constant 0 : index
    %57 = vector.load %arg7[%c152, %c0_31] : memref<512x128xf32, #tpu.memory_space<vmem>>, vector<8x128xf32>
    tpu.vector_store %arg7[%c152, %c0_31], %56 {strides = array<i32>} : memref<512x128xf32, #tpu.memory_space<vmem>>, vector<8x128xf32>,
    %58 = vector.extract_strided_slice %49 {offsets = [0, 512], sizes = [8, 128], strides = [1, 1]} : vector<8x2048xf32> to vector<8x128xf32>
    %c160 = arith.constant 160 : index
    %c0_32 = arith.constant 0 : index
    %59 = vector.load %arg7[%c160, %c0_32] : memref<512x128xf32, #tpu.memory_space<vmem>>, vector<8x128xf32>
    tpu.vector_store %arg7[%c160, %c0_32], %58 {strides = array<i32>} : memref<512x128xf32, #tpu.memory_space<vmem>>, vector<8x128xf32>,
    %60 = vector.extract_strided_slice %49 {offsets = [0, 640], sizes = [8, 128], strides = [1, 1]} : vector<8x2048xf32> to vector<8x128xf32>
    %c168 = arith.constant 168 : index
    %c0_33 = arith.constant 0 : index
    %61 = vector.load %arg7[%c168, %c0_33] : memref<512x128xf32, #tpu.memory_space<vmem>>, vector<8x128xf32>
    tpu.vector_store %arg7[%c168, %c0_33], %60 {strides = array<i32>} : memref<512x128xf32, #tpu.memory_space<vmem>>, vector<8x128xf32>,
    %62 = vector.extract_strided_slice %49 {offsets = [0, 768], sizes = [8, 128], strides = [1, 1]} : vector<8x2048xf32> to vector<8x128xf32>
    %c176 = arith.constant 176 : index
    %c0_34 = arith.constant 0 : index
    %63 = vector.load %arg7[%c176, %c0_34] : memref<512x128xf32, #tpu.memory_space<vmem>>, vector<8x128xf32>
    tpu.vector_store %arg7[%c176, %c0_34], %62 {strides = array<i32>} : memref<512x128xf32, #tpu.memory_space<vmem>>, vector<8x128xf32>,
    %64 = vector.extract_strided_slice %49 {offsets = [0, 896], sizes = [8, 128], strides = [1, 1]} : vector<8x2048xf32> to vector<8x128xf32>
    %c184 = arith.constant 184 : index
    %c0_35 = arith.constant 0 : index
    %65 = vector.load %arg7[%c184, %c0_35] : memref<512x128xf32, #tpu.memory_space<vmem>>, vector<8x128xf32>
    tpu.vector_store %arg7[%c184, %c0_35], %64 {strides = array<i32>} : memref<512x128xf32, #tpu.memory_space<vmem>>, vector<8x128xf32>,
    %66 = vector.extract_strided_slice %49 {offsets = [0, 1024], sizes = [8, 128], strides = [1, 1]} : vector<8x2048xf32> to vector<8x128xf32>
    %c192 = arith.constant 192 : index
    %c0_36 = arith.constant 0 : index
    %67 = vector.load %arg7[%c192, %c0_36] : memref<512x128xf32, #tpu.memory_space<vmem>>, vector<8x128xf32>
    tpu.vector_store %arg7[%c192, %c0_36], %66 {strides = array<i32>} : memref<512x128xf32, #tpu.memory_space<vmem>>, vector<8x128xf32>,
    %68 = vector.extract_strided_slice %49 {offsets = [0, 1152], sizes = [8, 128], strides = [1, 1]} : vector<8x2048xf32> to vector<8x128xf32>
    %c200 = arith.constant 200 : index
    %c0_37 = arith.constant 0 : index
    %69 = vector.load %arg7[%c200, %c0_37] : memref<512x128xf32, #tpu.memory_space<vmem>>, vector<8x128xf32>
    tpu.vector_store %arg7[%c200, %c0_37], %68 {strides = array<i32>} : memref<512x128xf32, #tpu.memory_space<vmem>>, vector<8x128xf32>,
    %70 = vector.extract_strided_slice %49 {offsets = [0, 1280], sizes = [8, 128], strides = [1, 1]} : vector<8x2048xf32> to vector<8x128xf32>
    %c208 = arith.constant 208 : index
    %c0_38 = arith.constant 0 : index
    %71 = vector.load %arg7[%c208, %c0_38] : memref<512x128xf32, #tpu.memory_space<vmem>>, vector<8x128xf32>
    tpu.vector_store %arg7[%c208, %c0_38], %70 {strides = array<i32>} : memref<512x128xf32, #tpu.memory_space<vmem>>, vector<8x128xf32>,
    %72 = vector.extract_strided_slice %49 {offsets = [0, 1408], sizes = [8, 128], strides = [1, 1]} : vector<8x2048xf32> to vector<8x128xf32>
    %c216 = arith.constant 216 : index
    %c0_39 = arith.constant 0 : index
    %73 = vector.load %arg7[%c216, %c0_39] : memref<512x128xf32, #tpu.memory_space<vmem>>, vector<8x128xf32>
    tpu.vector_store %arg7[%c216, %c0_39], %72 {strides = array<i32>} : memref<512x128xf32, #tpu.memory_space<vmem>>, vector<8x128xf32>,
    %74 = vector.extract_strided_slice %49 {offsets = [0, 1536], sizes = [8, 128], strides = [1, 1]} : vector<8x2048xf32> to vector<8x128xf32>
    %c224 = arith.constant 224 : index
    %c0_40 = arith.constant 0 : index
    %75 = vector.load %arg7[%c224, %c0_40] : memref<512x128xf32, #tpu.memory_space<vmem>>, vector<8x128xf32>
    tpu.vector_store %arg7[%c224, %c0_40], %74 {strides = array<i32>} : memref<512x128xf32, #tpu.memory_space<vmem>>, vector<8x128xf32>,
    %76 = vector.extract_strided_slice %49 {offsets = [0, 1664], sizes = [8, 128], strides = [1, 1]} : vector<8x2048xf32> to vector<8x128xf32>
    %c232 = arith.constant 232 : index
    %c0_41 = arith.constant 0 : index
    %77 = vector.load %arg7[%c232, %c0_41] : memref<512x128xf32, #tpu.memory_space<vmem>>, vector<8x128xf32>
    tpu.vector_store %arg7[%c232, %c0_41], %76 {strides = array<i32>} : memref<512x128xf32, #tpu.memory_space<vmem>>, vector<8x128xf32>,
    %78 = vector.extract_strided_slice %49 {offsets = [0, 1792], sizes = [8, 128], strides = [1, 1]} : vector<8x2048xf32> to vector<8x128xf32>
    %c240 = arith.constant 240 : index
    %c0_42 = arith.constant 0 : index
    %79 = vector.load %arg7[%c240, %c0_42] : memref<512x128xf32, #tpu.memory_space<vmem>>, vector<8x128xf32>
    tpu.vector_store %arg7[%c240, %c0_42], %78 {strides = array<i32>} : memref<512x128xf32, #tpu.memory_space<vmem>>, vector<8x128xf32>,
    %80 = vector.extract_strided_slice %49 {offsets = [0, 1920], sizes = [8, 128], strides = [1, 1]} : vector<8x2048xf32> to vector<8x128xf32>
    %c248 = arith.constant 248 : index
    %c0_43 = arith.constant 0 : index
    %81 = vector.load %arg7[%c248, %c0_43] : memref<512x128xf32, #tpu.memory_space<vmem>>, vector<8x128xf32>
    tpu.vector_store %arg7[%c248, %c0_43], %80 {strides = array<i32>} : memref<512x128xf32, #tpu.memory_space<vmem>>, vector<8x128xf32>,
    %c0_44 = arith.constant 0 : index
    %c4096 = arith.constant 4096 : index
    %82 = vector.load %arg1[%c0_44, %c4096] : memref<25x8192xbf16, #tpu.memory_space<vmem>>, vector<25x2048xbf16>
    %cst_45 = arith.constant dense<0.000000e+00> : vector<72x2048xf32>
    %83 = tpu.matmul %0, %82, %cst_45 {dimension_numbers = #tpu.dot_dimension_numbers<[1], [0], [0], [1], [0, 0, 1, 1], [], []>} : vector<72x25xbf16>, vector<25x2048xbf16>, vector<72x2048xf32> -> vector<72x2048xf32>
    %84 = vector.shape_cast %83 : vector<72x2048xf32> to vector<9x8x2048xf32>
    %cst_46 = arith.constant dense<0xFF800000> : vector<8x2048xf32>
    %85 = vector.multi_reduction <maximumf>, %84, %cst_46 [0] : vector<9x8x2048xf32> to vector<8x2048xf32>
    %86 = vector.broadcast %1 : vector<8x1xf32> to vector<8x2048xf32>
    %87 = arith.addf %85, %86 : vector<8x2048xf32>
    %cst_47 = arith.constant 0.000000e+00 : f32
    %88 = vector.broadcast %cst_47 : f32 to vector<8x2048xf32>
    %89 = arith.maximumf %87, %88 : vector<8x2048xf32>
    %90 = vector.extract_strided_slice %89 {offsets = [0, 0], sizes = [8, 128], strides = [1, 1]} : vector<8x2048xf32> to vector<8x128xf32>
    %c256 = arith.constant 256 : index
    %c0_48 = arith.constant 0 : index
    %91 = vector.load %arg7[%c256, %c0_48] : memref<512x128xf32, #tpu.memory_space<vmem>>, vector<8x128xf32>
    tpu.vector_store %arg7[%c256, %c0_48], %90 {strides = array<i32>} : memref<512x128xf32, #tpu.memory_space<vmem>>, vector<8x128xf32>,
    %92 = vector.extract_strided_slice %89 {offsets = [0, 128], sizes = [8, 128], strides = [1, 1]} : vector<8x2048xf32> to vector<8x128xf32>
    %c264 = arith.constant 264 : index
    %c0_49 = arith.constant 0 : index
    %93 = vector.load %arg7[%c264, %c0_49] : memref<512x128xf32, #tpu.memory_space<vmem>>, vector<8x128xf32>
    tpu.vector_store %arg7[%c264, %c0_49], %92 {strides = array<i32>} : memref<512x128xf32, #tpu.memory_space<vmem>>, vector<8x128xf32>,
    %94 = vector.extract_strided_slice %89 {offsets = [0, 256], sizes = [8, 128], strides = [1, 1]} : vector<8x2048xf32> to vector<8x128xf32>
    %c272 = arith.constant 272 : index
    %c0_50 = arith.constant 0 : index
    %95 = vector.load %arg7[%c272, %c0_50] : memref<512x128xf32, #tpu.memory_space<vmem>>, vector<8x128xf32>
    tpu.vector_store %arg7[%c272, %c0_50], %94 {strides = array<i32>} : memref<512x128xf32, #tpu.memory_space<vmem>>, vector<8x128xf32>,
    %96 = vector.extract_strided_slice %89 {offsets = [0, 384], sizes = [8, 128], strides = [1, 1]} : vector<8x2048xf32> to vector<8x128xf32>
    %c280 = arith.constant 280 : index
    %c0_51 = arith.constant 0 : index
    %97 = vector.load %arg7[%c280, %c0_51] : memref<512x128xf32, #tpu.memory_space<vmem>>, vector<8x128xf32>
    tpu.vector_store %arg7[%c280, %c0_51], %96 {strides = array<i32>} : memref<512x128xf32, #tpu.memory_space<vmem>>, vector<8x128xf32>,
    %98 = vector.extract_strided_slice %89 {offsets = [0, 512], sizes = [8, 128], strides = [1, 1]} : vector<8x2048xf32> to vector<8x128xf32>
    %c288 = arith.constant 288 : index
    %c0_52 = arith.constant 0 : index
    %99 = vector.load %arg7[%c288, %c0_52] : memref<512x128xf32, #tpu.memory_space<vmem>>, vector<8x128xf32>
    tpu.vector_store %arg7[%c288, %c0_52], %98 {strides = array<i32>} : memref<512x128xf32, #tpu.memory_space<vmem>>, vector<8x128xf32>,
    %100 = vector.extract_strided_slice %89 {offsets = [0, 640], sizes = [8, 128], strides = [1, 1]} : vector<8x2048xf32> to vector<8x128xf32>
    %c296 = arith.constant 296 : index
    %c0_53 = arith.constant 0 : index
    %101 = vector.load %arg7[%c296, %c0_53] : memref<512x128xf32, #tpu.memory_space<vmem>>, vector<8x128xf32>
    tpu.vector_store %arg7[%c296, %c0_53], %100 {strides = array<i32>} : memref<512x128xf32, #tpu.memory_space<vmem>>, vector<8x128xf32>,
    %102 = vector.extract_strided_slice %89 {offsets = [0, 768], sizes = [8, 128], strides = [1, 1]} : vector<8x2048xf32> to vector<8x128xf32>
    %c304 = arith.constant 304 : index
    %c0_54 = arith.constant 0 : index
    %103 = vector.load %arg7[%c304, %c0_54] : memref<512x128xf32, #tpu.memory_space<vmem>>, vector<8x128xf32>
    tpu.vector_store %arg7[%c304, %c0_54], %102 {strides = array<i32>} : memref<512x128xf32, #tpu.memory_space<vmem>>, vector<8x128xf32>,
    %104 = vector.extract_strided_slice %89 {offsets = [0, 896], sizes = [8, 128], strides = [1, 1]} : vector<8x2048xf32> to vector<8x128xf32>
    %c312 = arith.constant 312 : index
    %c0_55 = arith.constant 0 : index
    %105 = vector.load %arg7[%c312, %c0_55] : memref<512x128xf32, #tpu.memory_space<vmem>>, vector<8x128xf32>
    tpu.vector_store %arg7[%c312, %c0_55], %104 {strides = array<i32>} : memref<512x128xf32, #tpu.memory_space<vmem>>, vector<8x128xf32>,
    %106 = vector.extract_strided_slice %89 {offsets = [0, 1024], sizes = [8, 128], strides = [1, 1]} : vector<8x2048xf32> to vector<8x128xf32>
    %c320 = arith.constant 320 : index
    %c0_56 = arith.constant 0 : index
    %107 = vector.load %arg7[%c320, %c0_56] : memref<512x128xf32, #tpu.memory_space<vmem>>, vector<8x128xf32>
    tpu.vector_store %arg7[%c320, %c0_56], %106 {strides = array<i32>} : memref<512x128xf32, #tpu.memory_space<vmem>>, vector<8x128xf32>,
    %108 = vector.extract_strided_slice %89 {offsets = [0, 1152], sizes = [8, 128], strides = [1, 1]} : vector<8x2048xf32> to vector<8x128xf32>
    %c328 = arith.constant 328 : index
    %c0_57 = arith.constant 0 : index
    %109 = vector.load %arg7[%c328, %c0_57] : memref<512x128xf32, #tpu.memory_space<vmem>>, vector<8x128xf32>
    tpu.vector_store %arg7[%c328, %c0_57], %108 {strides = array<i32>} : memref<512x128xf32, #tpu.memory_space<vmem>>, vector<8x128xf32>,
    %110 = vector.extract_strided_slice %89 {offsets = [0, 1280], sizes = [8, 128], strides = [1, 1]} : vector<8x2048xf32> to vector<8x128xf32>
    %c336 = arith.constant 336 : index
    %c0_58 = arith.constant 0 : index
    %111 = vector.load %arg7[%c336, %c0_58] : memref<512x128xf32, #tpu.memory_space<vmem>>, vector<8x128xf32>
    tpu.vector_store %arg7[%c336, %c0_58], %110 {strides = array<i32>} : memref<512x128xf32, #tpu.memory_space<vmem>>, vector<8x128xf32>,
    %112 = vector.extract_strided_slice %89 {offsets = [0, 1408], sizes = [8, 128], strides = [1, 1]} : vector<8x2048xf32> to vector<8x128xf32>
    %c344 = arith.constant 344 : index
    %c0_59 = arith.constant 0 : index
    %113 = vector.load %arg7[%c344, %c0_59] : memref<512x128xf32, #tpu.memory_space<vmem>>, vector<8x128xf32>
    tpu.vector_store %arg7[%c344, %c0_59], %112 {strides = array<i32>} : memref<512x128xf32, #tpu.memory_space<vmem>>, vector<8x128xf32>,
    %114 = vector.extract_strided_slice %89 {offsets = [0, 1536], sizes = [8, 128], strides = [1, 1]} : vector<8x2048xf32> to vector<8x128xf32>
    %c352 = arith.constant 352 : index
    %c0_60 = arith.constant 0 : index
    %115 = vector.load %arg7[%c352, %c0_60] : memref<512x128xf32, #tpu.memory_space<vmem>>, vector<8x128xf32>
    tpu.vector_store %arg7[%c352, %c0_60], %114 {strides = array<i32>} : memref<512x128xf32, #tpu.memory_space<vmem>>, vector<8x128xf32>,
    %116 = vector.extract_strided_slice %89 {offsets = [0, 1664], sizes = [8, 128], strides = [1, 1]} : vector<8x2048xf32> to vector<8x128xf32>
    %c360 = arith.constant 360 : index
    %c0_61 = arith.constant 0 : index
    %117 = vector.load %arg7[%c360, %c0_61] : memref<512x128xf32, #tpu.memory_space<vmem>>, vector<8x128xf32>
    tpu.vector_store %arg7[%c360, %c0_61], %116 {strides = array<i32>} : memref<512x128xf32, #tpu.memory_space<vmem>>, vector<8x128xf32>,
    %118 = vector.extract_strided_slice %89 {offsets = [0, 1792], sizes = [8, 128], strides = [1, 1]} : vector<8x2048xf32> to vector<8x128xf32>
    %c368 = arith.constant 368 : index
    %c0_62 = arith.constant 0 : index
    %119 = vector.load %arg7[%c368, %c0_62] : memref<512x128xf32, #tpu.memory_space<vmem>>, vector<8x128xf32>
    tpu.vector_store %arg7[%c368, %c0_62], %118 {strides = array<i32>} : memref<512x128xf32, #tpu.memory_space<vmem>>, vector<8x128xf32>,
    %120 = vector.extract_strided_slice %89 {offsets = [0, 1920], sizes = [8, 128], strides = [1, 1]} : vector<8x2048xf32> to vector<8x128xf32>
    %c376 = arith.constant 376 : index
    %c0_63 = arith.constant 0 : index
    %121 = vector.load %arg7[%c376, %c0_63] : memref<512x128xf32, #tpu.memory_space<vmem>>, vector<8x128xf32>
    tpu.vector_store %arg7[%c376, %c0_63], %120 {strides = array<i32>} : memref<512x128xf32, #tpu.memory_space<vmem>>, vector<8x128xf32>,
    %c0_64 = arith.constant 0 : index
    %c6144 = arith.constant 6144 : index
    %122 = vector.load %arg1[%c0_64, %c6144] : memref<25x8192xbf16, #tpu.memory_space<vmem>>, vector<25x2048xbf16>
    %cst_65 = arith.constant dense<0.000000e+00> : vector<72x2048xf32>
    %123 = tpu.matmul %0, %122, %cst_65 {dimension_numbers = #tpu.dot_dimension_numbers<[1], [0], [0], [1], [0, 0, 1, 1], [], []>} : vector<72x25xbf16>, vector<25x2048xbf16>, vector<72x2048xf32> -> vector<72x2048xf32>
    %124 = vector.shape_cast %123 : vector<72x2048xf32> to vector<9x8x2048xf32>
    %cst_66 = arith.constant dense<0xFF800000> : vector<8x2048xf32>
    %125 = vector.multi_reduction <maximumf>, %124, %cst_66 [0] : vector<9x8x2048xf32> to vector<8x2048xf32>
    %126 = vector.broadcast %1 : vector<8x1xf32> to vector<8x2048xf32>
    %127 = arith.addf %125, %126 : vector<8x2048xf32>
    %cst_67 = arith.constant 0.000000e+00 : f32
    %128 = vector.broadcast %cst_67 : f32 to vector<8x2048xf32>
    %129 = arith.maximumf %127, %128 : vector<8x2048xf32>
    %130 = vector.extract_strided_slice %129 {offsets = [0, 0], sizes = [8, 128], strides = [1, 1]} : vector<8x2048xf32> to vector<8x128xf32>
    %c384 = arith.constant 384 : index
    %c0_68 = arith.constant 0 : index
    %131 = vector.load %arg7[%c384, %c0_68] : memref<512x128xf32, #tpu.memory_space<vmem>>, vector<8x128xf32>
    tpu.vector_store %arg7[%c384, %c0_68], %130 {strides = array<i32>} : memref<512x128xf32, #tpu.memory_space<vmem>>, vector<8x128xf32>,
    %132 = vector.extract_strided_slice %129 {offsets = [0, 128], sizes = [8, 128], strides = [1, 1]} : vector<8x2048xf32> to vector<8x128xf32>
    %c392 = arith.constant 392 : index
    %c0_69 = arith.constant 0 : index
    %133 = vector.load %arg7[%c392, %c0_69] : memref<512x128xf32, #tpu.memory_space<vmem>>, vector<8x128xf32>
    tpu.vector_store %arg7[%c392, %c0_69], %132 {strides = array<i32>} : memref<512x128xf32, #tpu.memory_space<vmem>>, vector<8x128xf32>,
    %134 = vector.extract_strided_slice %129 {offsets = [0, 256], sizes = [8, 128], strides = [1, 1]} : vector<8x2048xf32> to vector<8x128xf32>
    %c400 = arith.constant 400 : index
    %c0_70 = arith.constant 0 : index
    %135 = vector.load %arg7[%c400, %c0_70] : memref<512x128xf32, #tpu.memory_space<vmem>>, vector<8x128xf32>
    tpu.vector_store %arg7[%c400, %c0_70], %134 {strides = array<i32>} : memref<512x128xf32, #tpu.memory_space<vmem>>, vector<8x128xf32>,
    %136 = vector.extract_strided_slice %129 {offsets = [0, 384], sizes = [8, 128], strides = [1, 1]} : vector<8x2048xf32> to vector<8x128xf32>
    %c408 = arith.constant 408 : index
    %c0_71 = arith.constant 0 : index
    %137 = vector.load %arg7[%c408, %c0_71] : memref<512x128xf32, #tpu.memory_space<vmem>>, vector<8x128xf32>
    tpu.vector_store %arg7[%c408, %c0_71], %136 {strides = array<i32>} : memref<512x128xf32, #tpu.memory_space<vmem>>, vector<8x128xf32>,
    %138 = vector.extract_strided_slice %129 {offsets = [0, 512], sizes = [8, 128], strides = [1, 1]} : vector<8x2048xf32> to vector<8x128xf32>
    %c416 = arith.constant 416 : index
    %c0_72 = arith.constant 0 : index
    %139 = vector.load %arg7[%c416, %c0_72] : memref<512x128xf32, #tpu.memory_space<vmem>>, vector<8x128xf32>
    tpu.vector_store %arg7[%c416, %c0_72], %138 {strides = array<i32>} : memref<512x128xf32, #tpu.memory_space<vmem>>, vector<8x128xf32>,
    %140 = vector.extract_strided_slice %129 {offsets = [0, 640], sizes = [8, 128], strides = [1, 1]} : vector<8x2048xf32> to vector<8x128xf32>
    %c424 = arith.constant 424 : index
    %c0_73 = arith.constant 0 : index
    %141 = vector.load %arg7[%c424, %c0_73] : memref<512x128xf32, #tpu.memory_space<vmem>>, vector<8x128xf32>
    tpu.vector_store %arg7[%c424, %c0_73], %140 {strides = array<i32>} : memref<512x128xf32, #tpu.memory_space<vmem>>, vector<8x128xf32>,
    %142 = vector.extract_strided_slice %129 {offsets = [0, 768], sizes = [8, 128], strides = [1, 1]} : vector<8x2048xf32> to vector<8x128xf32>
    %c432 = arith.constant 432 : index
    %c0_74 = arith.constant 0 : index
    %143 = vector.load %arg7[%c432, %c0_74] : memref<512x128xf32, #tpu.memory_space<vmem>>, vector<8x128xf32>
    tpu.vector_store %arg7[%c432, %c0_74], %142 {strides = array<i32>} : memref<512x128xf32, #tpu.memory_space<vmem>>, vector<8x128xf32>,
    %144 = vector.extract_strided_slice %129 {offsets = [0, 896], sizes = [8, 128], strides = [1, 1]} : vector<8x2048xf32> to vector<8x128xf32>
    %c440 = arith.constant 440 : index
    %c0_75 = arith.constant 0 : index
    %145 = vector.load %arg7[%c440, %c0_75] : memref<512x128xf32, #tpu.memory_space<vmem>>, vector<8x128xf32>
    tpu.vector_store %arg7[%c440, %c0_75], %144 {strides = array<i32>} : memref<512x128xf32, #tpu.memory_space<vmem>>, vector<8x128xf32>,
    %146 = vector.extract_strided_slice %129 {offsets = [0, 1024], sizes = [8, 128], strides = [1, 1]} : vector<8x2048xf32> to vector<8x128xf32>
    %c448 = arith.constant 448 : index
    %c0_76 = arith.constant 0 : index
    %147 = vector.load %arg7[%c448, %c0_76] : memref<512x128xf32, #tpu.memory_space<vmem>>, vector<8x128xf32>
    tpu.vector_store %arg7[%c448, %c0_76], %146 {strides = array<i32>} : memref<512x128xf32, #tpu.memory_space<vmem>>, vector<8x128xf32>,
    %148 = vector.extract_strided_slice %129 {offsets = [0, 1152], sizes = [8, 128], strides = [1, 1]} : vector<8x2048xf32> to vector<8x128xf32>
    %c456 = arith.constant 456 : index
    %c0_77 = arith.constant 0 : index
    %149 = vector.load %arg7[%c456, %c0_77] : memref<512x128xf32, #tpu.memory_space<vmem>>, vector<8x128xf32>
    tpu.vector_store %arg7[%c456, %c0_77], %148 {strides = array<i32>} : memref<512x128xf32, #tpu.memory_space<vmem>>, vector<8x128xf32>,
    %150 = vector.extract_strided_slice %129 {offsets = [0, 1280], sizes = [8, 128], strides = [1, 1]} : vector<8x2048xf32> to vector<8x128xf32>
    %c464 = arith.constant 464 : index
    %c0_78 = arith.constant 0 : index
    %151 = vector.load %arg7[%c464, %c0_78] : memref<512x128xf32, #tpu.memory_space<vmem>>, vector<8x128xf32>
    tpu.vector_store %arg7[%c464, %c0_78], %150 {strides = array<i32>} : memref<512x128xf32, #tpu.memory_space<vmem>>, vector<8x128xf32>,
    %152 = vector.extract_strided_slice %129 {offsets = [0, 1408], sizes = [8, 128], strides = [1, 1]} : vector<8x2048xf32> to vector<8x128xf32>
    %c472 = arith.constant 472 : index
    %c0_79 = arith.constant 0 : index
    %153 = vector.load %arg7[%c472, %c0_79] : memref<512x128xf32, #tpu.memory_space<vmem>>, vector<8x128xf32>
    tpu.vector_store %arg7[%c472, %c0_79], %152 {strides = array<i32>} : memref<512x128xf32, #tpu.memory_space<vmem>>, vector<8x128xf32>,
    %154 = vector.extract_strided_slice %129 {offsets = [0, 1536], sizes = [8, 128], strides = [1, 1]} : vector<8x2048xf32> to vector<8x128xf32>
    %c480 = arith.constant 480 : index
    %c0_80 = arith.constant 0 : index
    %155 = vector.load %arg7[%c480, %c0_80] : memref<512x128xf32, #tpu.memory_space<vmem>>, vector<8x128xf32>
    tpu.vector_store %arg7[%c480, %c0_80], %154 {strides = array<i32>} : memref<512x128xf32, #tpu.memory_space<vmem>>, vector<8x128xf32>,
    %156 = vector.extract_strided_slice %129 {offsets = [0, 1664], sizes = [8, 128], strides = [1, 1]} : vector<8x2048xf32> to vector<8x128xf32>
    %c488 = arith.constant 488 : index
    %c0_81 = arith.constant 0 : index
    %157 = vector.load %arg7[%c488, %c0_81] : memref<512x128xf32, #tpu.memory_space<vmem>>, vector<8x128xf32>
    tpu.vector_store %arg7[%c488, %c0_81], %156 {strides = array<i32>} : memref<512x128xf32, #tpu.memory_space<vmem>>, vector<8x128xf32>,
    %158 = vector.extract_strided_slice %129 {offsets = [0, 1792], sizes = [8, 128], strides = [1, 1]} : vector<8x2048xf32> to vector<8x128xf32>
    %c496 = arith.constant 496 : index
    %c0_82 = arith.constant 0 : index
    %159 = vector.load %arg7[%c496, %c0_82] : memref<512x128xf32, #tpu.memory_space<vmem>>, vector<8x128xf32>
    tpu.vector_store %arg7[%c496, %c0_82], %158 {strides = array<i32>} : memref<512x128xf32, #tpu.memory_space<vmem>>, vector<8x128xf32>,
    %160 = vector.extract_strided_slice %129 {offsets = [0, 1920], sizes = [8, 128], strides = [1, 1]} : vector<8x2048xf32> to vector<8x128xf32>
    %c504 = arith.constant 504 : index
    %c0_83 = arith.constant 0 : index
    %161 = vector.load %arg7[%c504, %c0_83] : memref<512x128xf32, #tpu.memory_space<vmem>>, vector<8x128xf32>
    tpu.vector_store %arg7[%c504, %c0_83], %160 {strides = array<i32>} : memref<512x128xf32, #tpu.memory_space<vmem>>, vector<8x128xf32>,
    %c0_84 = arith.constant 0 : index
    %c0_85 = arith.constant 0 : index
    %162 = vector.load %arg4[%c0_84, %c0_85] : memref<10x512xbf16, #tpu.memory_space<vmem>>, vector<10x512xbf16>
    %c0_86 = arith.constant 0 : index
    %c0_87 = arith.constant 0 : index
    %163 = vector.load %arg7[%c0_86, %c0_87] : memref<512x128xf32, #tpu.memory_space<vmem>>, vector<512x128xf32>
    %164 = arith.truncf %163 : vector<512x128xf32> to vector<512x128xbf16>
    %cst_88 = arith.constant dense<0.000000e+00> : vector<10x128xf32>
    %165 = tpu.matmul %162, %164, %cst_88 {dimension_numbers = #tpu.dot_dimension_numbers<[1], [0], [0], [1], [0, 0, 1, 1], [], []>} : vector<10x512xbf16>, vector<512x128xbf16>, vector<10x128xf32> -> vector<10x128xf32>
    %c0_89 = arith.constant 0 : index
    %c0_90 = arith.constant 0 : index
    %166 = vector.load %arg5[%c0_89, %c0_90] : memref<10x1xf32, #tpu.memory_space<vmem>>, vector<10x1xf32>
    %167 = vector.broadcast %166 : vector<10x1xf32> to vector<10x128xf32>
    %168 = arith.addf %165, %167 : vector<10x128xf32>
    %cst_91 = arith.constant dense<0xFF800000> : vector<128xf32>
    %169 = vector.multi_reduction <maximumf>, %168, %cst_91 [0] : vector<10x128xf32> to vector<128xf32>
    %170 = vector.shape_cast %169 : vector<128xf32> to vector<1x128xf32>
    %171 = vector.broadcast %170 : vector<1x128xf32> to vector<10x128xf32>
    %172 = arith.subf %168, %171 : vector<10x128xf32>
    %173 = math.exp %172 : vector<10x128xf32>
    %cst_92 = arith.constant dense<0.000000e+00> : vector<128xf32>
    %174 = vector.multi_reduction <add>, %173, %cst_92 [0] : vector<10x128xf32> to vector<128xf32>
    %175 = vector.shape_cast %174 : vector<128xf32> to vector<1x128xf32>
    %176 = math.log %175 : vector<1x128xf32>
    %177 = vector.broadcast %176 : vector<1x128xf32> to vector<10x128xf32>
    %178 = arith.subf %172, %177 : vector<10x128xf32>
    %c0_93 = arith.constant 0 : index
    %c0_94 = arith.constant 0 : index
    %179 = vector.load %arg6[%c0_93, %c0_94] : memref<10x128xf32, #tpu.memory_space<vmem>>, vector<10x128xf32>
    tpu.vector_store %arg6[%c0_93, %c0_94], %178 {strides = array<i32>} : memref<10x128xf32, #tpu.memory_space<vmem>>, vector<10x128xf32>,
    return
  }
  func.func @transform_0(%arg0: i32) -> (i32, i32) {
    %c0_i32 = arith.constant 0 : i32
    %c0_i32_0 = arith.constant 0 : i32
    return %c0_i32, %arg0 : i32, i32
  }
  func.func @transform_1(%arg0: i32) -> (i32, i32) {
    %c0_i32 = arith.constant 0 : i32
    %c0_i32_0 = arith.constant 0 : i32
    %c0_i32_1 = arith.constant 0 : i32
    return %c0_i32, %c0_i32_0 : i32, i32
  }
  func.func @transform_2(%arg0: i32) -> (i32, i32) {
    %c0_i32 = arith.constant 0 : i32
    %c0_i32_0 = arith.constant 0 : i32
    %c0_i32_1 = arith.constant 0 : i32
    return %c0_i32, %c0_i32_0 : i32, i32
  }
  func.func @transform_3(%arg0: i32) -> (i32, i32) {
    %c0_i32 = arith.constant 0 : i32
    %c0_i32_0 = arith.constant 0 : i32
    %c0_i32_1 = arith.constant 0 : i32
    return %c0_i32, %c0_i32_0 : i32, i32
  }
  func.func @transform_4(%arg0: i32) -> (i32, i32) {
    %c0_i32 = arith.constant 0 : i32
    %c0_i32_0 = arith.constant 0 : i32
    %c0_i32_1 = arith.constant 0 : i32
    return %c0_i32, %c0_i32_0 : i32, i32
  }
  func.func @transform_5(%arg0: i32) -> (i32, i32) {
    %c0_i32 = arith.constant 0 : i32
    %c0_i32_0 = arith.constant 0 : i32
    return %c0_i32, %arg0 : i32, i32
  }
}

</mosaic_0001>

<llo_original>
// kernel: convnet_forward.1
$region0: #{convnet_forward.1}
  #allocation0 [shape = 'u32[]', space=smem, size = 0x4, offset = 0x4, fixed_abs, tag = 'smem constant byte address 0x4 - core index']
  #allocation1 [shape = 'u32[144,128]{1,0:T(1,128)}', space=vmem, size = 0x12000, scoped, tag = 'internal scratch']
  #allocation2 [shape = 'f32[512,128]{1,0:T(8,128)}', space=vmem, size = 0x40000, scoped, tag = 'scratch operand']
  %s0 = inlined_call_operand.vmem [shape: bf16[25,8192], index: 0, kind: input, shape index: {}]
  %s1 = inlined_call_operand.vmem [shape: bf16[72,25], index: 1, kind: input, shape index: {}]
  %s2 = inlined_call_operand.vmem [shape: f32[8,1], index: 2, kind: input, shape index: {}]
  %s3 = inlined_call_operand.vmem [shape: bf16[10,512], index: 3, kind: input, shape index: {}]
  %s4 = inlined_call_operand.vmem [shape: f32[10,1], index: 4, kind: input, shape index: {}]
  %s5 = inlined_call_operand.vmem [shape: f32[10,128], index: 5, kind: output, shape index: {}]
  %s6 = sld [smem:[#allocation0]]
  $region30: #{convnet_forward.1} parent=0
    _
  %s8 = ssub.s32 1, %s6
  %s9 = scalar_select 0, %s8, %s6
  // Predicated region
  $region2: #{convnet_forward.1} parent=0 // pred_check
    _
  $region3: #{convnet_forward.1} parent=0 // pred_check_branch
    %11 = sbr.rel (0) target = $region5
  $region4: #{convnet_forward.1} parent=0 // pred_region
    _
  $region5: #{convnet_forward.1} parent=0 // pred_fallthru
    _
  // Predicated region
  $region6: #{convnet_forward.1} parent=0 // pred_check
    _
  $region7: #{convnet_forward.1} parent=0 // pred_check_branch
    %13 = sbr.rel (0) target = $region9
  $region8: #{convnet_forward.1} parent=0 // pred_region
    _
  $region9: #{convnet_forward.1} parent=0 // pred_fallthru
    _
  // Predicated region
  $region10: #{convnet_forward.1} parent=0 // pred_check
    _
  $region11: #{convnet_forward.1} parent=0 // pred_check_branch
    %15 = sbr.rel (0) target = $region13
  $region12: #{convnet_forward.1} parent=0 // pred_region
    _
  $region13: #{convnet_forward.1} parent=0 // pred_fallthru
    _
  // Predicated region
  $region14: #{convnet_forward.1} parent=0 // pred_check
    _
  $region15: #{convnet_forward.1} parent=0 // pred_check_branch
    %17 = sbr.rel (0) target = $region17
  $region16: #{convnet_forward.1} parent=0 // pred_region
    _
  $region17: #{convnet_forward.1} parent=0 // pred_fallthru
    _
  // Predicated region
  $region18: #{convnet_forward.1} parent=0 // pred_check
    _
  $region19: #{convnet_forward.1} parent=0 // pred_check_branch
    %19 = sbr.rel (0) target = $region21
  $region20: #{convnet_forward.1} parent=0 // pred_region
    _
  $region21: #{convnet_forward.1} parent=0 // pred_fallthru
    _
  %v21 = vld [vmem:[%s1] sm:$0xf]
  %v22 = vld [vmem:[%s1 + $0x4] sm:$0xf]
  %v23 = vld [vmem:[%s1 + $0x8] sm:$0xf]
  %v24 = vld [vmem:[%s1 + $0xc] sm:$0xf]
  %v25 = vld [vmem:[%s1 + $0x10] sm:$0xf]
  %v26 = vld [vmem:[%s1 + $0x14] sm:$0xf]
  %v27 = vld [vmem:[%s1 + $0x18] sm:$0xf]
  %v28 = vld [vmem:[%s1 + $0x1c] sm:$0xf]
  %v29 = vld [vmem:[%s1 + $0x20] sm:$0xf]
  %v30 = vld [vmem:[%s2] sm:$0xff]
  %v31 = vld [vmem:[%s0] sm:$0xff]
  %v32 = vld [vmem:[%s0 + $0x8] sm:$0xff]
  %v33 = vld [vmem:[%s0 + $0x10] sm:$0xff]
  %v34 = vld [vmem:[%s0 + $0x18] sm:$0xff]
  %v35 = vld [vmem:[%s0 + $0x20] sm:$0xff]
  %v36 = vld [vmem:[%s0 + $0x28] sm:$0xff]
  %v37 = vld [vmem:[%s0 + $0x30] sm:$0xff]
  %v38 = vld [vmem:[%s0 + $0x38] sm:$0xff]
  %v39 = vld [vmem:[%s0 + $0x100] sm:$0xff]
  %v40 = vld [vmem:[%s0 + $0x108] sm:$0xff]
  %v41 = vld [vmem:[%s0 + $0x110] sm:$0xff]
  %v42 = vld [vmem:[%s0 + $0x118] sm:$0xff]
  %v43 = vld [vmem:[%s0 + $0x120] sm:$0xff]
  %v44 = vld [vmem:[%s0 + $0x128] sm:$0xff]
  %v45 = vld [vmem:[%s0 + $0x130] sm:$0xff]
  %v46 = vld [vmem:[%s0 + $0x138] sm:$0xff]
  %v47 = vld [vmem:[%s0 + $0x200] sm:$0xff]
  %v48 = vld [vmem:[%s0 + $0x208] sm:$0xff]
  %v49 = vld [vmem:[%s0 + $0x210] sm:$0xff]
  %v50 = vld [vmem:[%s0 + $0x218] sm:$0xff]
  %v51 = vld [vmem:[%s0 + $0x220] sm:$0xff]
  %v52 = vld [vmem:[%s0 + $0x228] sm:$0xff]
  %v53 = vld [vmem:[%s0 + $0x230] sm:$0xff]
  %v54 = vld [vmem:[%s0 + $0x238] sm:$0xff]
  %v55 = vld [vmem:[%s0 + $0x300] sm:$0x11]
  %v56 = vld [vmem:[%s0 + $0x308] sm:$0x11]
  %v57 = vld [vmem:[%s0 + $0x310] sm:$0x11]
  %v58 = vld [vmem:[%s0 + $0x318] sm:$0x11]
  %v59 = vld [vmem:[%s0 + $0x320] sm:$0x11]
  %v60 = vld [vmem:[%s0 + $0x328] sm:$0x11]
  %v61 = vld [vmem:[%s0 + $0x330] sm:$0x11]
  %v62 = vld [vmem:[%s0 + $0x338] sm:$0x11]
  %v72 = vunpack.c.l.b16 %v21
  %v73 = vunpack.c.l.b16 %v22
  %v74 = vunpack.c.l.b16 %v23
  %v75 = vunpack.c.l.b16 %v24
  %v76 = vunpack.c.l.b16 %v25
  %v77 = vunpack.c.l.b16 %v26
  %v78 = vunpack.c.l.b16 %v27
  %v79 = vunpack.c.l.b16 %v28
  %v80 = vunpack.c.l.b16 %v29
  %v81 = vpack.c.b16 %v73, %v72
  %v82 = vpack.c.b16 %v75, %v74
  %v83 = vpack.c.b16 %v77, %v76
  %v84 = vpack.c.b16 %v79, %v78
  %v85 = vpack.c.b16 %v80, %v80
  %v118 = vunpack.c.l.b16 %v31
  %v119 = vunpack.c.h.b16 %v31
  %v120 = vunpack.c.l.b16 %v32
  %v121 = vunpack.c.h.b16 %v32
  %v122 = vunpack.c.l.b16 %v33
  %v123 = vunpack.c.h.b16 %v33
  %v124 = vunpack.c.l.b16 %v34
  %v125 = vunpack.c.h.b16 %v34
  %v126 = vunpack.c.l.b16 %v35
  %v127 = vunpack.c.h.b16 %v35
  %v128 = vunpack.c.l.b16 %v36
  %v129 = vunpack.c.h.b16 %v36
  %v130 = vunpack.c.l.b16 %v37
  %v131 = vunpack.c.h.b16 %v37
  %v132 = vunpack.c.l.b16 %v38
  %v133 = vunpack.c.h.b16 %v38
  %v134 = vunpack.c.l.b16 %v39
  %v135 = vunpack.c.h.b16 %v39
  %v136 = vunpack.c.l.b16 %v40
  %v137 = vunpack.c.h.b16 %v40
  %v138 = vunpack.c.l.b16 %v41
  %v139 = vunpack.c.h.b16 %v41
  %v140 = vunpack.c.l.b16 %v42
  %v141 = vunpack.c.h.b16 %v42
  %v142 = vunpack.c.l.b16 %v43
  %v143 = vunpack.c.h.b16 %v43
  %v144 = vunpack.c.l.b16 %v44
  %v145 = vunpack.c.h.b16 %v44
  %v146 = vunpack.c.l.b16 %v45
  %v147 = vunpack.c.h.b16 %v45
  %v148 = vunpack.c.l.b16 %v46
  %v149 = vunpack.c.h.b16 %v46
  %v150 = vunpack.c.l.b16 %v47
  %v151 = vunpack.c.h.b16 %v47
  %v152 = vunpack.c.l.b16 %v48
  %v153 = vunpack.c.h.b16 %v48
  %v154 = vunpack.c.l.b16 %v49
  %v155 = vunpack.c.h.b16 %v49
  %v156 = vunpack.c.l.b16 %v50
  %v157 = vunpack.c.h.b16 %v50
  %v158 = vunpack.c.l.b16 %v51
  %v159 = vunpack.c.h.b16 %v51
  %v160 = vunpack.c.l.b16 %v52
  %v161 = vunpack.c.h.b16 %v52
  %v162 = vunpack.c.l.b16 %v53
  %v163 = vunpack.c.h.b16 %v53
  %v164 = vunpack.c.l.b16 %v54
  %v165 = vunpack.c.h.b16 %v54
  %v166 = vunpack.c.l.b16 %v55
  %v167 = vunpack.c.h.b16 %v55
  %v168 = vunpack.c.l.b16 %v56
  %v169 = vunpack.c.h.b16 %v56
  %v170 = vunpack.c.l.b16 %v57
  %v171 = vunpack.c.h.b16 %v57
  %v172 = vunpack.c.l.b16 %v58
  %v173 = vunpack.c.h.b16 %v58
  %v174 = vunpack.c.l.b16 %v59
  %v175 = vunpack.c.h.b16 %v59
  %v176 = vunpack.c.l.b16 %v60
  %v177 = vunpack.c.h.b16 %v60
  %v178 = vunpack.c.l.b16 %v61
  %v179 = vunpack.c.h.b16 %v61
  %v180 = vunpack.c.l.b16 %v62
  %v181 = vunpack.c.h.b16 %v62
  %v182 = vpack.c.b16 %v134, %v118
  %v183 = vpack.c.b16 %v135, %v119
  %v184 = vpack.c.b16 %v136, %v120
  %v185 = vpack.c.b16 %v137, %v121
  %v186 = vpack.c.b16 %v138, %v122
  %v187 = vpack.c.b16 %v139, %v123
  %v188 = vpack.c.b16 %v140, %v124
  %v189 = vpack.c.b16 %v141, %v125
  %v190 = vpack.c.b16 %v142, %v126
  %v191 = vpack.c.b16 %v143, %v127
  %v192 = vpack.c.b16 %v144, %v128
  %v193 = vpack.c.b16 %v145, %v129
  %v194 = vpack.c.b16 %v146, %v130
  %v195 = vpack.c.b16 %v147, %v131
  %v196 = vpack.c.b16 %v148, %v132
  %v197 = vpack.c.b16 %v149, %v133
  %v198 = vpack.c.b16 %v166, %v150
  %v199 = vpack.c.b16 %v167, %v151
  %v200 = vpack.c.b16 %v168, %v152
  %v201 = vpack.c.b16 %v169, %v153
  %v202 = vpack.c.b16 %v170, %v154
  %v203 = vpack.c.b16 %v171, %v155
  %v204 = vpack.c.b16 %v172, %v156
  %v205 = vpack.c.b16 %v173, %v157
  %v206 = vpack.c.b16 %v174, %v158
  %v207 = vpack.c.b16 %v175, %v159
  %v208 = vpack.c.b16 %v176, %v160
  %v209 = vpack.c.b16 %v177, %v161
  %v210 = vpack.c.b16 %v178, %v162
  %v211 = vpack.c.b16 %v179, %v163
  %v212 = vpack.c.b16 %v180, %v164
  %v213 = vpack.c.b16 %v181, %v165
  %vm230 = vcmask 203776
  %v232 = vsel %vm230, %v81, 0
  %v235 = vsel %vm230, %v82, 0
  %v238 = vsel %vm230, %v83, 0
  %v241 = vsel %vm230, %v84, 0
  %v244 = vsel %vm230, %v85, 0
  %vm246 = vcmask 1043456
  %vm247 = vcmask 1044480
  %v248 = vsel %vm246, 4294967295, 65535
  %v249 = vsel %vm247, %v248, 0
  %v251 = vand.u32 %v198, %v249
  %v254 = vand.u32 %v199, %v249
  %v257 = vand.u32 %v200, %v249
  %v260 = vand.u32 %v201, %v249
  %v263 = vand.u32 %v202, %v249
  %v266 = vand.u32 %v203, %v249
  %v269 = vand.u32 %v204, %v249
  %v272 = vand.u32 %v205, %v249
  %v275 = vand.u32 %v206, %v249
  %v278 = vand.u32 %v207, %v249
  %v281 = vand.u32 %v208, %v249
  %v284 = vand.u32 %v209, %v249
  %v287 = vand.u32 %v210, %v249
  %v290 = vand.u32 %v211, %v249
  %v293 = vand.u32 %v212, %v249
  %v296 = vand.u32 %v213, %v249
  %298 = vmatprep.subr.bf16.mxu0 0
  %299 = vmatpush1.bf16.msra.mxu0 0
  %300 = vmatprep.subr.bf16.mxu0 0
  %301 = vmatpush1.bf16.msra.mxu0 0
  %302 = vmatprep.subr.bf16.mxu0 0
  %303 = vmatpush1.bf16.msra.mxu0 0
  %304 = vmatprep.subr.bf16.mxu0 0
  %305 = vmatpush1.bf16.msra.mxu0 0
  %306 = vmatprep.subr.bf16.mxu0 0
  %307 = vmatpush1.bf16.msra.mxu0 0
  %308 = vmatprep.subr.bf16.mxu0 0
  %309 = vmatpush1.bf16.msra.mxu0 0
  %310 = vmatprep.subr.bf16.mxu0 %v254
  %311 = vmatpush1.bf16.msra.mxu0 %v251
  %312 = vmatprep.subr.bf16.mxu0 %v183
  %313 = vmatpush1.bf16.msra.mxu0 %v182
  %314 = vmatprep.subr.bf16.mxu0 0
  %315 = vmatpush2.bf16.msra.mxu0 0
  %316 = vmatprep.subr.bf16.mxu0 0
  %317 = vmatpush2.bf16.msra.mxu0 0
  %318 = vmatprep.subr.bf16.mxu0 0
  %319 = vmatpush2.bf16.msra.mxu0 0
  %320 = vmatprep.subr.bf16.mxu0 0
  %321 = vmatpush2.bf16.msra.mxu0 0
  %322 = vmatprep.subr.bf16.mxu0 0
  %323 = vmatpush2.bf16.msra.mxu0 0
  %324 = vmatprep.subr.bf16.mxu0 0
  %325 = vmatpush2.bf16.msra.mxu0 0
  %326 = vmatprep.subr.bf16.mxu0 0
  %327 = vmatpush2.bf16.msra.mxu0 0
  %328 = vmatprep.subr.bf16.mxu0 0
  %329 = vmatpush2.bf16.msra.mxu0 0
  %330 = vmatprep.mubr.bf16.mxu0 0
  %331 = vmatmul.mubr.bf16.gmra.mxu0 %v232
  %v332 = vpop.f32.mrf.mxu0
  %v333 = vadd.f32 0.0, %v332
  %v334 = vpop.f32.mrf.mxu0
  %v335 = vadd.f32 0.0, %v334
  %v336 = vpop.f32.mrf.mxu0
  %v337 = vadd.f32 0.0, %v336
  %v338 = vpop.f32.mrf.mxu0
  %v339 = vadd.f32 0.0, %v338
  %340 = vmatprep.mubr.bf16.mxu0 0
  %341 = vmatmul.mubr.bf16.gmra.mxu0 %v235
  %v342 = vpop.f32.mrf.mxu0
  %v343 = vadd.f32 0.0, %v342
  %v344 = vpop.f32.mrf.mxu0
  %v345 = vadd.f32 0.0, %v344
  %v346 = vpop.f32.mrf.mxu0
  %v347 = vadd.f32 0.0, %v346
  %v348 = vpop.f32.mrf.mxu0
  %v349 = vadd.f32 0.0, %v348
  %350 = vmatprep.mubr.bf16.mxu0 0
  %351 = vmatmul.mubr.bf16.gmra.mxu0 %v238
  %v352 = vpop.f32.mrf.mxu0
  %v353 = vadd.f32 0.0, %v352
  %v354 = vpop.f32.mrf.mxu0
  %v355 = vadd.f32 0.0, %v354
  %v356 = vpop.f32.mrf.mxu0
  %v357 = vadd.f32 0.0, %v356
  %v358 = vpop.f32.mrf.mxu0
  %v359 = vadd.f32 0.0, %v358
  %360 = vmatprep.mubr.bf16.mxu0 0
  %361 = vmatmul.mubr.bf16.gmra.mxu0 %v241
  %v362 = vpop.f32.mrf.mxu0
  %v363 = vadd.f32 0.0, %v362
  %v364 = vpop.f32.mrf.mxu0
  %v365 = vadd.f32 0.0, %v364
  %v366 = vpop.f32.mrf.mxu0
  %v367 = vadd.f32 0.0, %v366
  %v368 = vpop.f32.mrf.mxu0
  %v369 = vadd.f32 0.0, %v368
  %370 = vmatprep.mubr.bf16.mxu0 0
  %371 = vmatmul.mubr.bf16.gmra.mxu0 %v244
  %v372 = vpop.f32.mrf.mxu0
  %v373 = vadd.f32 0.0, %v372
  %v374 = vpop.f32.mrf.mxu0
  %v375 = vadd.f32 0.0, %v374
  %v376 = vpop.f32.mrf.mxu0
  %v377 = vpop.f32.mrf.mxu0
  %378 = vdwg.mxu0
  %379 = vmatprep.subr.bf16.mxu0 0
  %380 = vmatpush1.bf16.msra.mxu0 0
  %381 = vmatprep.subr.bf16.mxu0 0
  %382 = vmatpush1.bf16.msra.mxu0 0
  %383 = vmatprep.subr.bf16.mxu0 0
  %384 = vmatpush1.bf16.msra.mxu0 0
  %385 = vmatprep.subr.bf16.mxu0 0
  %386 = vmatpush1.bf16.msra.mxu0 0
  %387 = vmatprep.subr.bf16.mxu0 0
  %388 = vmatpush1.bf16.msra.mxu0 0
  %389 = vmatprep.subr.bf16.mxu0 0
  %390 = vmatpush1.bf16.msra.mxu0 0
  %391 = vmatprep.subr.bf16.mxu0 %v260
  %392 = vmatpush1.bf16.msra.mxu0 %v257
  %393 = vmatprep.subr.bf16.mxu0 %v185
  %394 = vmatpush1.bf16.msra.mxu0 %v184
  %395 = vmatprep.subr.bf16.mxu0 0
  %396 = vmatpush2.bf16.msra.mxu0 0
  %397 = vmatprep.subr.bf16.mxu0 0
  %398 = vmatpush2.bf16.msra.mxu0 0
  %399 = vmatprep.subr.bf16.mxu0 0
  %400 = vmatpush2.bf16.msra.mxu0 0
  %401 = vmatprep.subr.bf16.mxu0 0
  %402 = vmatpush2.bf16.msra.mxu0 0
  %403 = vmatprep.subr.bf16.mxu0 0
  %404 = vmatpush2.bf16.msra.mxu0 0
  %405 = vmatprep.subr.bf16.mxu0 0
  %406 = vmatpush2.bf16.msra.mxu0 0
  %407 = vmatprep.subr.bf16.mxu0 0
  %408 = vmatpush2.bf16.msra.mxu0 0
  %409 = vmatprep.subr.bf16.mxu0 0
  %410 = vmatpush2.bf16.msra.mxu0 0
  %411 = vmatprep.mubr.bf16.mxu0 0
  %412 = vmatmul.mubr.bf16.gmra.mxu0 %v232
  %v413 = vpop.f32.mrf.mxu0
  %v414 = vadd.f32 0.0, %v413
  %v415 = vpop.f32.mrf.mxu0
  %v416 = vadd.f32 0.0, %v415
  %v417 = vpop.f32.mrf.mxu0
  %v418 = vadd.f32 0.0, %v417
  %v419 = vpop.f32.mrf.mxu0
  %v420 = vadd.f32 0.0, %v419
  %421 = vmatprep.mubr.bf16.mxu0 0
  %422 = vmatmul.mubr.bf16.gmra.mxu0 %v235
  %v423 = vpop.f32.mrf.mxu0
  %v424 = vadd.f32 0.0, %v423
  %v425 = vpop.f32.mrf.mxu0
  %v426 = vadd.f32 0.0, %v425
  %v427 = vpop.f32.mrf.mxu0
  %v428 = vadd.f32 0.0, %v427
  %v429 = vpop.f32.mrf.mxu0
  %v430 = vadd.f32 0.0, %v429
  %431 = vmatprep.mubr.bf16.mxu0 0
  %432 = vmatmul.mubr.bf16.gmra.mxu0 %v238
  %v433 = vpop.f32.mrf.mxu0
  %v434 = vadd.f32 0.0, %v433
  %v435 = vpop.f32.mrf.mxu0
  %v436 = vadd.f32 0.0, %v435
  %v437 = vpop.f32.mrf.mxu0
  %v438 = vadd.f32 0.0, %v437
  %v439 = vpop.f32.mrf.mxu0
  %v440 = vadd.f32 0.0, %v439
  %441 = vmatprep.mubr.bf16.mxu0 0
  %442 = vmatmul.mubr.bf16.gmra.mxu0 %v241
  %v443 = vpop.f32.mrf.mxu0
  %v444 = vadd.f32 0.0, %v443
  %v445 = vpop.f32.mrf.mxu0
  %v446 = vadd.f32 0.0, %v445
  %v447 = vpop.f32.mrf.mxu0
  %v448 = vadd.f32 0.0, %v447
  %v449 = vpop.f32.mrf.mxu0
  %v450 = vadd.f32 0.0, %v449
  %451 = vmatprep.mubr.bf16.mxu0 0
  %452 = vmatmul.mubr.bf16.gmra.mxu0 %v244
  %v453 = vpop.f32.mrf.mxu0
  %v454 = vadd.f32 0.0, %v453
  %v455 = vpop.f32.mrf.mxu0
  %v456 = vadd.f32 0.0, %v455
  %v457 = vpop.f32.mrf.mxu0
  %v458 = vpop.f32.mrf.mxu0
  %459 = vdwg.mxu0
  %460 = vmatprep.subr.bf16.mxu0 0
  %461 = vmatpush1.bf16.msra.mxu0 0
  %462 = vmatprep.subr.bf16.mxu0 0
  %463 = vmatpush1.bf16.msra.mxu0 0
  %464 = vmatprep.subr.bf16.mxu0 0
  %465 = vmatpush1.bf16.msra.mxu0 0
  %466 = vmatprep.subr.bf16.mxu0 0
  %467 = vmatpush1.bf16.msra.mxu0 0
  %468 = vmatprep.subr.bf16.mxu0 0
  %469 = vmatpush1.bf16.msra.mxu0 0
  %470 = vmatprep.subr.bf16.mxu0 0
  %471 = vmatpush1.bf16.msra.mxu0 0
  %472 = vmatprep.subr.bf16.mxu0 %v266
  %473 = vmatpush1.bf16.msra.mxu0 %v263
  %474 = vmatprep.subr.bf16.mxu0 %v187
  %475 = vmatpush1.bf16.msra.mxu0 %v186
  %476 = vmatprep.subr.bf16.mxu0 0
  %477 = vmatpush2.bf16.msra.mxu0 0
  %478 = vmatprep.subr.bf16.mxu0 0
  %479 = vmatpush2.bf16.msra.mxu0 0
  %480 = vmatprep.subr.bf16.mxu0 0
  %481 = vmatpush2.bf16.msra.mxu0 0
  %482 = vmatprep.subr.bf16.mxu0 0
  %483 = vmatpush2.bf16.msra.mxu0 0
  %484 = vmatprep.subr.bf16.mxu0 0
  %485 = vmatpush2.bf16.msra.mxu0 0
  %486 = vmatprep.subr.bf16.mxu0 0
  %487 = vmatpush2.bf16.msra.mxu0 0
  %488 = vmatprep.subr.bf16.mxu0 0
  %489 = vmatpush2.bf16.msra.mxu0 0
  %490 = vmatprep.subr.bf16.mxu0 0
  %491 = vmatpush2.bf16.msra.mxu0 0
  %492 = vmatprep.mubr.bf16.mxu0 0
  %493 = vmatmul.mubr.bf16.gmra.mxu0 %v232
  %v494 = vpop.f32.mrf.mxu0
  %v495 = vadd.f32 0.0, %v494
  %v496 = vpop.f32.mrf.mxu0
  %v497 = vadd.f32 0.0, %v496
  %v498 = vpop.f32.mrf.mxu0
  %v499 = vadd.f32 0.0, %v498
  %v500 = vpop.f32.mrf.mxu0
  %v501 = vadd.f32 0.0, %v500
  %502 = vmatprep.mubr.bf16.mxu0 0
  %503 = vmatmul.mubr.bf16.gmra.mxu0 %v235
  %v504 = vpop.f32.mrf.mxu0
  %v505 = vadd.f32 0.0, %v504
  %v506 = vpop.f32.mrf.mxu0
  %v507 = vadd.f32 0.0, %v506
  %v508 = vpop.f32.mrf.mxu0
  %v509 = vadd.f32 0.0, %v508
  %v510 = vpop.f32.mrf.mxu0
  %v511 = vadd.f32 0.0, %v510
  %512 = vmatprep.mubr.bf16.mxu0 0
  %513 = vmatmul.mubr.bf16.gmra.mxu0 %v238
  %v514 = vpop.f32.mrf.mxu0
  %v515 = vadd.f32 0.0, %v514
  %v516 = vpop.f32.mrf.mxu0
  %v517 = vadd.f32 0.0, %v516
  %v518 = vpop.f32.mrf.mxu0
  %v519 = vadd.f32 0.0, %v518
  %v520 = vpop.f32.mrf.mxu0
  %v521 = vadd.f32 0.0, %v520
  %522 = vmatprep.mubr.bf16.mxu0 0
  %523 = vmatmul.mubr.bf16.gmra.mxu0 %v241
  %v524 = vpop.f32.mrf.mxu0
  %v525 = vadd.f32 0.0, %v524
  %v526 = vpop.f32.mrf.mxu0
  %v527 = vadd.f32 0.0, %v526
  %v528 = vpop.f32.mrf.mxu0
  %v529 = vadd.f32 0.0, %v528
  %v530 = vpop.f32.mrf.mxu0
  %v531 = vadd.f32 0.0, %v530
  %532 = vmatprep.mubr.bf16.mxu0 0
  %533 = vmatmul.mubr.bf16.gmra.mxu0 %v244
  %v534 = vpop.f32.mrf.mxu0
  %v535 = vadd.f32 0.0, %v534
  %v536 = vpop.f32.mrf.mxu0
  %v537 = vadd.f32 0.0, %v536
  %v538 = vpop.f32.mrf.mxu0
  %v539 = vpop.f32.mrf.mxu0
  %540 = vdwg.mxu0
  %541 = vmatprep.subr.bf16.mxu0 0
  %542 = vmatpush1.bf16.msra.mxu0 0
  %543 = vmatprep.subr.bf16.mxu0 0
  %544 = vmatpush1.bf16.msra.mxu0 0
  %545 = vmatprep.subr.bf16.mxu0 0
  %546 = vmatpush1.bf16.msra.mxu0 0
  %547 = vmatprep.subr.bf16.mxu0 0
  %548 = vmatpush1.bf16.msra.mxu0 0
  %549 = vmatprep.subr.bf16.mxu0 0
  %550 = vmatpush1.bf16.msra.mxu0 0
  %551 = vmatprep.subr.bf16.mxu0 0
  %552 = vmatpush1.bf16.msra.mxu0 0
  %553 = vmatprep.subr.bf16.mxu0 %v272
  %554 = vmatpush1.bf16.msra.mxu0 %v269
  %555 = vmatprep.subr.bf16.mxu0 %v189
  %556 = vmatpush1.bf16.msra.mxu0 %v188
  %557 = vmatprep.subr.bf16.mxu0 0
  %558 = vmatpush2.bf16.msra.mxu0 0
  %559 = vmatprep.subr.bf16.mxu0 0
  %560 = vmatpush2.bf16.msra.mxu0 0
  %561 = vmatprep.subr.bf16.mxu0 0
  %562 = vmatpush2.bf16.msra.mxu0 0
  %563 = vmatprep.subr.bf16.mxu0 0
  %564 = vmatpush2.bf16.msra.mxu0 0
  %565 = vmatprep.subr.bf16.mxu0 0
  %566 = vmatpush2.bf16.msra.mxu0 0
  %567 = vmatprep.subr.bf16.mxu0 0
  %568 = vmatpush2.bf16.msra.mxu0 0
  %569 = vmatprep.subr.bf16.mxu0 0
  %570 = vmatpush2.bf16.msra.mxu0 0
  %571 = vmatprep.subr.bf16.mxu0 0
  %572 = vmatpush2.bf16.msra.mxu0 0
  %573 = vmatprep.mubr.bf16.mxu0 0
  %574 = vmatmul.mubr.bf16.gmra.mxu0 %v232
  %v575 = vpop.f32.mrf.mxu0
  %v576 = vadd.f32 0.0, %v575
  %v577 = vpop.f32.mrf.mxu0
  %v578 = vadd.f32 0.0, %v577
  %v579 = vpop.f32.mrf.mxu0
  %v580 = vadd.f32 0.0, %v579
  %v581 = vpop.f32.mrf.mxu0
  %v582 = vadd.f32 0.0, %v581
  %583 = vmatprep.mubr.bf16.mxu0 0
  %584 = vmatmul.mubr.bf16.gmra.mxu0 %v235
  %v585 = vpop.f32.mrf.mxu0
  %v586 = vadd.f32 0.0, %v585
  %v587 = vpop.f32.mrf.mxu0
  %v588 = vadd.f32 0.0, %v587
  %v589 = vpop.f32.mrf.mxu0
  %v590 = vadd.f32 0.0, %v589
  %v591 = vpop.f32.mrf.mxu0
  %v592 = vadd.f32 0.0, %v591
  %593 = vmatprep.mubr.bf16.mxu0 0
  %594 = vmatmul.mubr.bf16.gmra.mxu0 %v238
  %v595 = vpop.f32.mrf.mxu0
  %v596 = vadd.f32 0.0, %v595
  %v597 = vpop.f32.mrf.mxu0
  %v598 = vadd.f32 0.0, %v597
  %v599 = vpop.f32.mrf.mxu0
  %v600 = vadd.f32 0.0, %v599
  %v601 = vpop.f32.mrf.mxu0
  %v602 = vadd.f32 0.0, %v601
  %603 = vmatprep.mubr.bf16.mxu0 0
  %604 = vmatmul.mubr.bf16.gmra.mxu0 %v241
  %v605 = vpop.f32.mrf.mxu0
  %v606 = vadd.f32 0.0, %v605
  %v607 = vpop.f32.mrf.mxu0
  %v608 = vadd.f32 0.0, %v607
  %v609 = vpop.f32.mrf.mxu0
  %v610 = vadd.f32 0.0, %v609
  %v611 = vpop.f32.mrf.mxu0
  %v612 = vadd.f32 0.0, %v611
  %613 = vmatprep.mubr.bf16.mxu0 0
  %614 = vmatmul.mubr.bf16.gmra.mxu0 %v244
  %v615 = vpop.f32.mrf.mxu0
  %v616 = vadd.f32 0.0, %v615
  %v617 = vpop.f32.mrf.mxu0
  %v618 = vadd.f32 0.0, %v617
  %v619 = vpop.f32.mrf.mxu0
  %v620 = vpop.f32.mrf.mxu0
  %621 = vdwg.mxu0
  %622 = vmatprep.subr.bf16.mxu0 0
  %623 = vmatpush1.bf16.msra.mxu0 0
  %624 = vmatprep.subr.bf16.mxu0 0
  %625 = vmatpush1.bf16.msra.mxu0 0
  %626 = vmatprep.subr.bf16.mxu0 0
  %627 = vmatpush1.bf16.msra.mxu0 0
  %628 = vmatprep.subr.bf16.mxu0 0
  %629 = vmatpush1.bf16.msra.mxu0 0
  %630 = vmatprep.subr.bf16.mxu0 0
  %631 = vmatpush1.bf16.msra.mxu0 0
  %632 = vmatprep.subr.bf16.mxu0 0
  %633 = vmatpush1.bf16.msra.mxu0 0
  %634 = vmatprep.subr.bf16.mxu0 %v278
  %635 = vmatpush1.bf16.msra.mxu0 %v275
  %636 = vmatprep.subr.bf16.mxu0 %v191
  %637 = vmatpush1.bf16.msra.mxu0 %v190
  %638 = vmatprep.subr.bf16.mxu0 0
  %639 = vmatpush2.bf16.msra.mxu0 0
  %640 = vmatprep.subr.bf16.mxu0 0
  %641 = vmatpush2.bf16.msra.mxu0 0
  %642 = vmatprep.subr.bf16.mxu0 0
  %643 = vmatpush2.bf16.msra.mxu0 0
  %644 = vmatprep.subr.bf16.mxu0 0
  %645 = vmatpush2.bf16.msra.mxu0 0
  %646 = vmatprep.subr.bf16.mxu0 0
  %647 = vmatpush2.bf16.msra.mxu0 0
  %648 = vmatprep.subr.bf16.mxu0 0
  %649 = vmatpush2.bf16.msra.mxu0 0
  %650 = vmatprep.subr.bf16.mxu0 0
  %651 = vmatpush2.bf16.msra.mxu0 0
  %652 = vmatprep.subr.bf16.mxu0 0
  %653 = vmatpush2.bf16.msra.mxu0 0
  %654 = vmatprep.mubr.bf16.mxu0 0
  %655 = vmatmul.mubr.bf16.gmra.mxu0 %v232
  %v656 = vpop.f32.mrf.mxu0
  %v657 = vadd.f32 0.0, %v656
  %v658 = vpop.f32.mrf.mxu0
  %v659 = vadd.f32 0.0, %v658
  %v660 = vpop.f32.mrf.mxu0
  %v661 = vadd.f32 0.0, %v660
  %v662 = vpop.f32.mrf.mxu0
  %v663 = vadd.f32 0.0, %v662
  %664 = vmatprep.mubr.bf16.mxu0 0
  %665 = vmatmul.mubr.bf16.gmra.mxu0 %v235
  %v666 = vpop.f32.mrf.mxu0
  %v667 = vadd.f32 0.0, %v666
  %v668 = vpop.f32.mrf.mxu0
  %v669 = vadd.f32 0.0, %v668
  %v670 = vpop.f32.mrf.mxu0
  %v671 = vadd.f32 0.0, %v670
  %v672 = vpop.f32.mrf.mxu0
  %v673 = vadd.f32 0.0, %v672
  %674 = vmatprep.mubr.bf16.mxu0 0
  %675 = vmatmul.mubr.bf16.gmra.mxu0 %v238
  %v676 = vpop.f32.mrf.mxu0
  %v677 = vadd.f32 0.0, %v676
  %v678 = vpop.f32.mrf.mxu0
  %v679 = vadd.f32 0.0, %v678
  %v680 = vpop.f32.mrf.mxu0
  %v681 = vadd.f32 0.0, %v680
  %v682 = vpop.f32.mrf.mxu0
  %v683 = vadd.f32 0.0, %v682
  %684 = vmatprep.mubr.bf16.mxu0 0
  %685 = vmatmul.mubr.bf16.gmra.mxu0 %v241
  %v686 = vpop.f32.mrf.mxu0
  %v687 = vadd.f32 0.0, %v686
  %v688 = vpop.f32.mrf.mxu0
  %v689 = vadd.f32 0.0, %v688
  %v690 = vpop.f32.mrf.mxu0
  %v691 = vadd.f32 0.0, %v690
  %v692 = vpop.f32.mrf.mxu0
  %v693 = vadd.f32 0.0, %v692
  %694 = vmatprep.mubr.bf16.mxu0 0
  %695 = vmatmul.mubr.bf16.gmra.mxu0 %v244
  %v696 = vpop.f32.mrf.mxu0
  %v697 = vadd.f32 0.0, %v696
  %v698 = vpop.f32.mrf.mxu0
  %v699 = vadd.f32 0.0, %v698
  %v700 = vpop.f32.mrf.mxu0
  %v701 = vpop.f32.mrf.mxu0
  %702 = vdwg.mxu0
  %703 = vmatprep.subr.bf16.mxu0 0
  %704 = vmatpush1.bf16.msra.mxu0 0
  %705 = vmatprep.subr.bf16.mxu0 0
  %706 = vmatpush1.bf16.msra.mxu0 0
  %707 = vmatprep.subr.bf16.mxu0 0
  %708 = vmatpush1.bf16.msra.mxu0 0
  %709 = vmatprep.subr.bf16.mxu0 0
  %710 = vmatpush1.bf16.msra.mxu0 0
  %711 = vmatprep.subr.bf16.mxu0 0
  %712 = vmatpush1.bf16.msra.mxu0 0
  %713 = vmatprep.subr.bf16.mxu0 0
  %714 = vmatpush1.bf16.msra.mxu0 0
  %715 = vmatprep.subr.bf16.mxu0 %v284
  %716 = vmatpush1.bf16.msra.mxu0 %v281
  %717 = vmatprep.subr.bf16.mxu0 %v193
  %718 = vmatpush1.bf16.msra.mxu0 %v192
  %719 = vmatprep.subr.bf16.mxu0 0
  %720 = vmatpush2.bf16.msra.mxu0 0
  %721 = vmatprep.subr.bf16.mxu0 0
  %722 = vmatpush2.bf16.msra.mxu0 0
  %723 = vmatprep.subr.bf16.mxu0 0
  %724 = vmatpush2.bf16.msra.mxu0 0
  %725 = vmatprep.subr.bf16.mxu0 0
  %726 = vmatpush2.bf16.msra.mxu0 0
  %727 = vmatprep.subr.bf16.mxu0 0
  %728 = vmatpush2.bf16.msra.mxu0 0
  %729 = vmatprep.subr.bf16.mxu0 0
  %730 = vmatpush2.bf16.msra.mxu0 0
  %731 = vmatprep.subr.bf16.mxu0 0
  %732 = vmatpush2.bf16.msra.mxu0 0
  %733 = vmatprep.subr.bf16.mxu0 0
  %734 = vmatpush2.bf16.msra.mxu0 0
  %735 = vmatprep.mubr.bf16.mxu0 0
  %736 = vmatmul.mubr.bf16.gmra.mxu0 %v232
  %v737 = vpop.f32.mrf.mxu0
  %v738 = vadd.f32 0.0, %v737
  %v739 = vpop.f32.mrf.mxu0
  %v740 = vadd.f32 0.0, %v739
  %v741 = vpop.f32.mrf.mxu0
  %v742 = vadd.f32 0.0, %v741
  %v743 = vpop.f32.mrf.mxu0
  %v744 = vadd.f32 0.0, %v743
  %745 = vmatprep.mubr.bf16.mxu0 0
  %746 = vmatmul.mubr.bf16.gmra.mxu0 %v235
  %v747 = vpop.f32.mrf.mxu0
  %v748 = vadd.f32 0.0, %v747
  %v749 = vpop.f32.mrf.mxu0
  %v750 = vadd.f32 0.0, %v749
  %v751 = vpop.f32.mrf.mxu0
  %v752 = vadd.f32 0.0, %v751
  %v753 = vpop.f32.mrf.mxu0
  %v754 = vadd.f32 0.0, %v753
  %755 = vmatprep.mubr.bf16.mxu0 0
  %756 = vmatmul.mubr.bf16.gmra.mxu0 %v238
  %v757 = vpop.f32.mrf.mxu0
  %v758 = vadd.f32 0.0, %v757
  %v759 = vpop.f32.mrf.mxu0
  %v760 = vadd.f32 0.0, %v759
  %v761 = vpop.f32.mrf.mxu0
  %v762 = vadd.f32 0.0, %v761
  %v763 = vpop.f32.mrf.mxu0
  %v764 = vadd.f32 0.0, %v763
  %765 = vmatprep.mubr.bf16.mxu0 0
  %766 = vmatmul.mubr.bf16.gmra.mxu0 %v241
  %v767 = vpop.f32.mrf.mxu0
  %v768 = vadd.f32 0.0, %v767
  %v769 = vpop.f32.mrf.mxu0
  %v770 = vadd.f32 0.0, %v769
  %v771 = vpop.f32.mrf.mxu0
  %v772 = vadd.f32 0.0, %v771
  %v773 = vpop.f32.mrf.mxu0
  %v774 = vadd.f32 0.0, %v773
  %775 = vmatprep.mubr.bf16.mxu0 0
  %776 = vmatmul.mubr.bf16.gmra.mxu0 %v244
  %v777 = vpop.f32.mrf.mxu0
  %v778 = vadd.f32 0.0, %v777
  %v779 = vpop.f32.mrf.mxu0
  %v780 = vadd.f32 0.0, %v779
  %v781 = vpop.f32.mrf.mxu0
  %v782 = vpop.f32.mrf.mxu0
  %783 = vdwg.mxu0
  %784 = vmatprep.subr.bf16.mxu0 0
  %785 = vmatpush1.bf16.msra.mxu0 0
  %786 = vmatprep.subr.bf16.mxu0 0
  %787 = vmatpush1.bf16.msra.mxu0 0
  %788 = vmatprep.subr.bf16.mxu0 0
  %789 = vmatpush1.bf16.msra.mxu0 0
  %790 = vmatprep.subr.bf16.mxu0 0
  %791 = vmatpush1.bf16.msra.mxu0 0
  %792 = vmatprep.subr.bf16.mxu0 0
  %793 = vmatpush1.bf16.msra.mxu0 0
  %794 = vmatprep.subr.bf16.mxu0 0
  %795 = vmatpush1.bf16.msra.mxu0 0
  %796 = vmatprep.subr.bf16.mxu0 %v290
  %797 = vmatpush1.bf16.msra.mxu0 %v287
  %798 = vmatprep.subr.bf16.mxu0 %v195
  %799 = vmatpush1.bf16.msra.mxu0 %v194
  %800 = vmatprep.subr.bf16.mxu0 0
  %801 = vmatpush2.bf16.msra.mxu0 0
  %802 = vmatprep.subr.bf16.mxu0 0
  %803 = vmatpush2.bf16.msra.mxu0 0
  %804 = vmatprep.subr.bf16.mxu0 0
  %805 = vmatpush2.bf16.msra.mxu0 0
  %806 = vmatprep.subr.bf16.mxu0 0
  %807 = vmatpush2.bf16.msra.mxu0 0
  %808 = vmatprep.subr.bf16.mxu0 0
  %809 = vmatpush2.bf16.msra.mxu0 0
  %810 = vmatprep.subr.bf16.mxu0 0
  %811 = vmatpush2.bf16.msra.mxu0 0
  %812 = vmatprep.subr.bf16.mxu0 0
  %813 = vmatpush2.bf16.msra.mxu0 0
  %814 = vmatprep.subr.bf16.mxu0 0
  %815 = vmatpush2.bf16.msra.mxu0 0
  %816 = vmatprep.mubr.bf16.mxu0 0
  %817 = vmatmul.mubr.bf16.gmra.mxu0 %v232
  %v818 = vpop.f32.mrf.mxu0
  %v819 = vadd.f32 0.0, %v818
  %v820 = vpop.f32.mrf.mxu0
  %v821 = vadd.f32 0.0, %v820
  %v822 = vpop.f32.mrf.mxu0
  %v823 = vadd.f32 0.0, %v822
  %v824 = vpop.f32.mrf.mxu0
  %v825 = vadd.f32 0.0, %v824
  %826 = vmatprep.mubr.bf16.mxu0 0
  %827 = vmatmul.mubr.bf16.gmra.mxu0 %v235
  %v828 = vpop.f32.mrf.mxu0
  %v829 = vadd.f32 0.0, %v828
  %v830 = vpop.f32.mrf.mxu0
  %v831 = vadd.f32 0.0, %v830
  %v832 = vpop.f32.mrf.mxu0
  %v833 = vadd.f32 0.0, %v832
  %v834 = vpop.f32.mrf.mxu0
  %v835 = vadd.f32 0.0, %v834
  %836 = vmatprep.mubr.bf16.mxu0 0
  %837 = vmatmul.mubr.bf16.gmra.mxu0 %v238
  %v838 = vpop.f32.mrf.mxu0
  %v839 = vadd.f32 0.0, %v838
  %v840 = vpop.f32.mrf.mxu0
  %v841 = vadd.f32 0.0, %v840
  %v842 = vpop.f32.mrf.mxu0
  %v843 = vadd.f32 0.0, %v842
  %v844 = vpop.f32.mrf.mxu0
  %v845 = vadd.f32 0.0, %v844
  %846 = vmatprep.mubr.bf16.mxu0 0
  %847 = vmatmul.mubr.bf16.gmra.mxu0 %v241
  %v848 = vpop.f32.mrf.mxu0
  %v849 = vadd.f32 0.0, %v848
  %v850 = vpop.f32.mrf.mxu0
  %v851 = vadd.f32 0.0, %v850
  %v852 = vpop.f32.mrf.mxu0
  %v853 = vadd.f32 0.0, %v852
  %v854 = vpop.f32.mrf.mxu0
  %v855 = vadd.f32 0.0, %v854
  %856 = vmatprep.mubr.bf16.mxu0 0
  %857 = vmatmul.mubr.bf16.gmra.mxu0 %v244
  %v858 = vpop.f32.mrf.mxu0
  %v859 = vadd.f32 0.0, %v858
  %v860 = vpop.f32.mrf.mxu0
  %v861 = vadd.f32 0.0, %v860
  %v862 = vpop.f32.mrf.mxu0
  %v863 = vpop.f32.mrf.mxu0
  %864 = vdwg.mxu0
  %865 = vmatprep.subr.bf16.mxu0 0
  %866 = vmatpush1.bf16.msra.mxu0 0
  %867 = vmatprep.subr.bf16.mxu0 0
  %868 = vmatpush1.bf16.msra.mxu0 0
  %869 = vmatprep.subr.bf16.mxu0 0
  %870 = vmatpush1.bf16.msra.mxu0 0
  %871 = vmatprep.subr.bf16.mxu0 0
  %872 = vmatpush1.bf16.msra.mxu0 0
  %873 = vmatprep.subr.bf16.mxu0 0
  %874 = vmatpush1.bf16.msra.mxu0 0
  %875 = vmatprep.subr.bf16.mxu0 0
  %876 = vmatpush1.bf16.msra.mxu0 0
  %877 = vmatprep.subr.bf16.mxu0 %v296
  %878 = vmatpush1.bf16.msra.mxu0 %v293
  %879 = vmatprep.subr.bf16.mxu0 %v197
  %880 = vmatpush1.bf16.msra.mxu0 %v196
  %881 = vmatprep.subr.bf16.mxu0 0
  %882 = vmatpush2.bf16.msra.mxu0 0
  %883 = vmatprep.subr.bf16.mxu0 0
  %884 = vmatpush2.bf16.msra.mxu0 0
  %885 = vmatprep.subr.bf16.mxu0 0
  %886 = vmatpush2.bf16.msra.mxu0 0
  %887 = vmatprep.subr.bf16.mxu0 0
  %888 = vmatpush2.bf16.msra.mxu0 0
  %889 = vmatprep.subr.bf16.mxu0 0
  %890 = vmatpush2.bf16.msra.mxu0 0
  %891 = vmatprep.subr.bf16.mxu0 0
  %892 = vmatpush2.bf16.msra.mxu0 0
  %893 = vmatprep.subr.bf16.mxu0 0
  %894 = vmatpush2.bf16.msra.mxu0 0
  %895 = vmatprep.subr.bf16.mxu0 0
  %896 = vmatpush2.bf16.msra.mxu0 0
  %897 = vmatprep.mubr.bf16.mxu0 0
  %898 = vmatmul.mubr.bf16.gmra.mxu0 %v232
  %v899 = vpop.f32.mrf.mxu0
  %v900 = vadd.f32 0.0, %v899
  %v901 = vpop.f32.mrf.mxu0
  %v902 = vadd.f32 0.0, %v901
  %v903 = vpop.f32.mrf.mxu0
  %v904 = vadd.f32 0.0, %v903
  %v905 = vpop.f32.mrf.mxu0
  %v906 = vadd.f32 0.0, %v905
  %907 = vmatprep.mubr.bf16.mxu0 0
  %908 = vmatmul.mubr.bf16.gmra.mxu0 %v235
  %v909 = vpop.f32.mrf.mxu0
  %v910 = vadd.f32 0.0, %v909
  %v911 = vpop.f32.mrf.mxu0
  %v912 = vadd.f32 0.0, %v911
  %v913 = vpop.f32.mrf.mxu0
  %v914 = vadd.f32 0.0, %v913
  %v915 = vpop.f32.mrf.mxu0
  %v916 = vadd.f32 0.0, %v915
  %917 = vmatprep.mubr.bf16.mxu0 0
  %918 = vmatmul.mubr.bf16.gmra.mxu0 %v238
  %v919 = vpop.f32.mrf.mxu0
  %v920 = vadd.f32 0.0, %v919
  %v921 = vpop.f32.mrf.mxu0
  %v922 = vadd.f32 0.0, %v921
  %v923 = vpop.f32.mrf.mxu0
  %v924 = vadd.f32 0.0, %v923
  %v925 = vpop.f32.mrf.mxu0
  %v926 = vadd.f32 0.0, %v925
  %927 = vmatprep.mubr.bf16.mxu0 0
  %928 = vmatmul.mubr.bf16.gmra.mxu0 %v241
  %v929 = vpop.f32.mrf.mxu0
  %v930 = vadd.f32 0.0, %v929
  %v931 = vpop.f32.mrf.mxu0
  %v932 = vadd.f32 0.0, %v931
  %v933 = vpop.f32.mrf.mxu0
  %v934 = vadd.f32 0.0, %v933
  %v935 = vpop.f32.mrf.mxu0
  %v936 = vadd.f32 0.0, %v935
  %937 = vmatprep.mubr.bf16.mxu0 0
  %938 = vmatmul.mubr.bf16.gmra.mxu0 %v244
  %v939 = vpop.f32.mrf.mxu0
  %v940 = vadd.f32 0.0, %v939
  %v941 = vpop.f32.mrf.mxu0
  %v942 = vadd.f32 0.0, %v941
  %v943 = vpop.f32.mrf.mxu0
  %v944 = vpop.f32.mrf.mxu0
  %945 = vdwg.mxu0
  %v946 = vmax.f32 %v333, %v337
  %v947 = vmax.f32 %v946, %v343
  %v948 = vmax.f32 %v947, %v347
  %v949 = vmax.f32 %v948, %v353
  %v950 = vmax.f32 %v949, %v357
  %v951 = vmax.f32 %v950, %v363
  %v952 = vmax.f32 %v951, %v367
  %v953 = vmax.f32 %v952, %v373
  %v954 = vmax.f32 %v335, %v339
  %v955 = vmax.f32 %v954, %v345
  %v956 = vmax.f32 %v955, %v349
  %v957 = vmax.f32 %v956, %v355
  %v958 = vmax.f32 %v957, %v359
  %v959 = vmax.f32 %v958, %v365
  %v960 = vmax.f32 %v959, %v369
  %v961 = vmax.f32 %v960, %v375
  %v962 = vmax.f32 %v414, %v418
  %v963 = vmax.f32 %v962, %v424
  %v964 = vmax.f32 %v963, %v428
  %v965 = vmax.f32 %v964, %v434
  %v966 = vmax.f32 %v965, %v438
  %v967 = vmax.f32 %v966, %v444
  %v968 = vmax.f32 %v967, %v448
  %v969 = vmax.f32 %v968, %v454
  %v970 = vmax.f32 %v416, %v420
  %v971 = vmax.f32 %v970, %v426
  %v972 = vmax.f32 %v971, %v430
  %v973 = vmax.f32 %v972, %v436
  %v974 = vmax.f32 %v973, %v440
  %v975 = vmax.f32 %v974, %v446
  %v976 = vmax.f32 %v975, %v450
  %v977 = vmax.f32 %v976, %v456
  %v978 = vmax.f32 %v495, %v499
  %v979 = vmax.f32 %v978, %v505
  %v980 = vmax.f32 %v979, %v509
  %v981 = vmax.f32 %v980, %v515
  %v982 = vmax.f32 %v981, %v519
  %v983 = vmax.f32 %v982, %v525
  %v984 = vmax.f32 %v983, %v529
  %v985 = vmax.f32 %v984, %v535
  %v986 = vmax.f32 %v497, %v501
  %v987 = vmax.f32 %v986, %v507
  %v988 = vmax.f32 %v987, %v511
  %v989 = vmax.f32 %v988, %v517
  %v990 = vmax.f32 %v989, %v521
  %v991 = vmax.f32 %v990, %v527
  %v992 = vmax.f32 %v991, %v531
  %v993 = vmax.f32 %v992, %v537
  %v994 = vmax.f32 %v576, %v580
  %v995 = vmax.f32 %v994, %v586
  %v996 = vmax.f32 %v995, %v590
  %v997 = vmax.f32 %v996, %v596
  %v998 = vmax.f32 %v997, %v600
  %v999 = vmax.f32 %v998, %v606
  %v1000 = vmax.f32 %v999, %v610
  %v1001 = vmax.f32 %v1000, %v616
  %v1002 = vmax.f32 %v578, %v582
  %v1003 = vmax.f32 %v1002, %v588
  %v1004 = vmax.f32 %v1003, %v592
  %v1005 = vmax.f32 %v1004, %v598
  %v1006 = vmax.f32 %v1005, %v602
  %v1007 = vmax.f32 %v1006, %v608
  %v1008 = vmax.f32 %v1007, %v612
  %v1009 = vmax.f32 %v1008, %v618
  %v1010 = vmax.f32 %v657, %v661
  %v1011 = vmax.f32 %v1010, %v667
  %v1012 = vmax.f32 %v1011, %v671
  %v1013 = vmax.f32 %v1012, %v677
  %v1014 = vmax.f32 %v1013, %v681
  %v1015 = vmax.f32 %v1014, %v687
  %v1016 = vmax.f32 %v1015, %v691
  %v1017 = vmax.f32 %v1016, %v697
  %v1018 = vmax.f32 %v659, %v663
  %v1019 = vmax.f32 %v1018, %v669
  %v1020 = vmax.f32 %v1019, %v673
  %v1021 = vmax.f32 %v1020, %v679
  %v1022 = vmax.f32 %v1021, %v683
  %v1023 = vmax.f32 %v1022, %v689
  %v1024 = vmax.f32 %v1023, %v693
  %v1025 = vmax.f32 %v1024, %v699
  %v1026 = vmax.f32 %v738, %v742
  %v1027 = vmax.f32 %v1026, %v748
  %v1028 = vmax.f32 %v1027, %v752
  %v1029 = vmax.f32 %v1028, %v758
  %v1030 = vmax.f32 %v1029, %v762
  %v1031 = vmax.f32 %v1030, %v768
  %v1032 = vmax.f32 %v1031, %v772
  %v1033 = vmax.f32 %v1032, %v778
  %v1034 = vmax.f32 %v740, %v744
  %v1035 = vmax.f32 %v1034, %v750
  %v1036 = vmax.f32 %v1035, %v754
  %v1037 = vmax.f32 %v1036, %v760
  %v1038 = vmax.f32 %v1037, %v764
  %v1039 = vmax.f32 %v1038, %v770
  %v1040 = vmax.f32 %v1039, %v774
  %v1041 = vmax.f32 %v1040, %v780
  %v1042 = vmax.f32 %v819, %v823
  %v1043 = vmax.f32 %v1042, %v829
  %v1044 = vmax.f32 %v1043, %v833
  %v1045 = vmax.f32 %v1044, %v839
  %v1046 = vmax.f32 %v1045, %v843
  %v1047 = vmax.f32 %v1046, %v849
  %v1048 = vmax.f32 %v1047, %v853
  %v1049 = vmax.f32 %v1048, %v859
  %v1050 = vmax.f32 %v821, %v825
  %v1051 = vmax.f32 %v1050, %v831
  %v1052 = vmax.f32 %v1051, %v835
  %v1053 = vmax.f32 %v1052, %v841
  %v1054 = vmax.f32 %v1053, %v845
  %v1055 = vmax.f32 %v1054, %v851
  %v1056 = vmax.f32 %v1055, %v855
  %v1057 = vmax.f32 %v1056, %v861
  %v1058 = vmax.f32 %v900, %v904
  %v1059 = vmax.f32 %v1058, %v910
  %v1060 = vmax.f32 %v1059, %v914
  %v1061 = vmax.f32 %v1060, %v920
  %v1062 = vmax.f32 %v1061, %v924
  %v1063 = vmax.f32 %v1062, %v930
  %v1064 = vmax.f32 %v1063, %v934
  %v1065 = vmax.f32 %v1064, %v940
  %v1066 = vmax.f32 %v902, %v906
  %v1067 = vmax.f32 %v1066, %v912
  %v1068 = vmax.f32 %v1067, %v916
  %v1069 = vmax.f32 %v1068, %v922
  %v1070 = vmax.f32 %v1069, %v926
  %v1071 = vmax.f32 %v1070, %v932
  %v1072 = vmax.f32 %v1071, %v936
  %v1073 = vmax.f32 %v1072, %v942
  %1075 = vset.pattern.permute.xlu0 0
  %1076 = vperm.xlu0 %1075, %v30
  %v1077 = vpop.permute.xlu0 %1076
  %v1079 = vadd.f32 %v953, %v1077
  %v1080 = vadd.f32 %v961, %v1077
  %v1081 = vadd.f32 %v969, %v1077
  %v1082 = vadd.f32 %v977, %v1077
  %v1083 = vadd.f32 %v985, %v1077
  %v1084 = vadd.f32 %v993, %v1077
  %v1085 = vadd.f32 %v1001, %v1077
  %v1086 = vadd.f32 %v1009, %v1077
  %v1087 = vadd.f32 %v1017, %v1077
  %v1088 = vadd.f32 %v1025, %v1077
  %v1089 = vadd.f32 %v1033, %v1077
  %v1090 = vadd.f32 %v1041, %v1077
  %v1091 = vadd.f32 %v1049, %v1077
  %v1092 = vadd.f32 %v1057, %v1077
  %v1093 = vadd.f32 %v1065, %v1077
  %v1094 = vadd.f32 %v1073, %v1077
  %v1095 = vmax.f32 %v1079, 0.0
  %v1096 = vmax.f32 %v1080, 0.0
  %v1097 = vmax.f32 %v1081, 0.0
  %v1098 = vmax.f32 %v1082, 0.0
  %v1099 = vmax.f32 %v1083, 0.0
  %v1100 = vmax.f32 %v1084, 0.0
  %v1101 = vmax.f32 %v1085, 0.0
  %v1102 = vmax.f32 %v1086, 0.0
  %v1103 = vmax.f32 %v1087, 0.0
  %v1104 = vmax.f32 %v1088, 0.0
  %v1105 = vmax.f32 %v1089, 0.0
  %v1106 = vmax.f32 %v1090, 0.0
  %v1107 = vmax.f32 %v1091, 0.0
  %v1108 = vmax.f32 %v1092, 0.0
  %v1109 = vmax.f32 %v1093, 0.0
  %v1110 = vmax.f32 %v1094, 0.0
  %1111 = vst [vmem:[#allocation2] sm:$0xff] %v1095
  %1112 = vst [vmem:[#allocation2 + $0x8] sm:$0xff] %v1096
  %1113 = vst [vmem:[#allocation2 + $0x10] sm:$0xff] %v1097
  %1114 = vst [vmem:[#allocation2 + $0x18] sm:$0xff] %v1098
  %1115 = vst [vmem:[#allocation2 + $0x20] sm:$0xff] %v1099
  %1116 = vst [vmem:[#allocation2 + $0x28] sm:$0xff] %v1100
  %1117 = vst [vmem:[#allocation2 + $0x30] sm:$0xff] %v1101
  %1118 = vst [vmem:[#allocation2 + $0x38] sm:$0xff] %v1102
  %1119 = vst [vmem:[#allocation2 + $0x40] sm:$0xff] %v1103
  %1120 = vst [vmem:[#allocation2 + $0x48] sm:$0xff] %v1104
  %1121 = vst [vmem:[#allocation2 + $0x50] sm:$0xff] %v1105
  %1122 = vst [vmem:[#allocation2 + $0x58] sm:$0xff] %v1106
  %1123 = vst [vmem:[#allocation2 + $0x60] sm:$0xff] %v1107
  %1124 = vst [vmem:[#allocation2 + $0x68] sm:$0xff] %v1108
  %1125 = vst [vmem:[#allocation2 + $0x70] sm:$0xff] %v1109
  %1126 = vst [vmem:[#allocation2 + $0x78] sm:$0xff] %v1110
  %v1127 = vld [vmem:[%s0 + $0x40] sm:$0xff]
  %v1128 = vld [vmem:[%s0 + $0x48] sm:$0xff]
  %v1129 = vld [vmem:[%s0 + $0x50] sm:$0xff]
  %v1130 = vld [vmem:[%s0 + $0x58] sm:$0xff]
  %v1131 = vld [vmem:[%s0 + $0x60] sm:$0xff]
  %v1132 = vld [vmem:[%s0 + $0x68] sm:$0xff]
  %v1133 = vld [vmem:[%s0 + $0x70] sm:$0xff]
  %v1134 = vld [vmem:[%s0 + $0x78] sm:$0xff]
  %v1135 = vld [vmem:[%s0 + $0x140] sm:$0xff]
  %v1136 = vld [vmem:[%s0 + $0x148] sm:$0xff]
  %v1137 = vld [vmem:[%s0 + $0x150] sm:$0xff]
  %v1138 = vld [vmem:[%s0 + $0x158] sm:$0xff]
  %v1139 = vld [vmem:[%s0 + $0x160] sm:$0xff]
  %v1140 = vld [vmem:[%s0 + $0x168] sm:$0xff]
  %v1141 = vld [vmem:[%s0 + $0x170] sm:$0xff]
  %v1142 = vld [vmem:[%s0 + $0x178] sm:$0xff]
  %v1143 = vld [vmem:[%s0 + $0x240] sm:$0xff]
  %v1144 = vld [vmem:[%s0 + $0x248] sm:$0xff]
  %v1145 = vld [vmem:[%s0 + $0x250] sm:$0xff]
  %v1146 = vld [vmem:[%s0 + $0x258] sm:$0xff]
  %v1147 = vld [vmem:[%s0 + $0x260] sm:$0xff]
  %v1148 = vld [vmem:[%s0 + $0x268] sm:$0xff]
  %v1149 = vld [vmem:[%s0 + $0x270] sm:$0xff]
  %v1150 = vld [vmem:[%s0 + $0x278] sm:$0xff]
  %v1151 = vld [vmem:[%s0 + $0x340] sm:$0x11]
  %v1152 = vld [vmem:[%s0 + $0x348] sm:$0x11]
  %v1153 = vld [vmem:[%s0 + $0x350] sm:$0x11]
  %v1154 = vld [vmem:[%s0 + $0x358] sm:$0x11]
  %v1155 = vld [vmem:[%s0 + $0x360] sm:$0x11]
  %v1156 = vld [vmem:[%s0 + $0x368] sm:$0x11]
  %v1157 = vld [vmem:[%s0 + $0x370] sm:$0x11]
  %v1158 = vld [vmem:[%s0 + $0x378] sm:$0x11]
  %v1191 = vunpack.c.l.b16 %v1127
  %v1192 = vunpack.c.h.b16 %v1127
  %v1193 = vunpack.c.l.b16 %v1128
  %v1194 = vunpack.c.h.b16 %v1128
  %v1195 = vunpack.c.l.b16 %v1129
  %v1196 = vunpack.c.h.b16 %v1129
  %v1197 = vunpack.c.l.b16 %v1130
  %v1198 = vunpack.c.h.b16 %v1130
  %v1199 = vunpack.c.l.b16 %v1131
  %v1200 = vunpack.c.h.b16 %v1131
  %v1201 = vunpack.c.l.b16 %v1132
  %v1202 = vunpack.c.h.b16 %v1132
  %v1203 = vunpack.c.l.b16 %v1133
  %v1204 = vunpack.c.h.b16 %v1133
  %v1205 = vunpack.c.l.b16 %v1134
  %v1206 = vunpack.c.h.b16 %v1134
  %v1207 = vunpack.c.l.b16 %v1135
  %v1208 = vunpack.c.h.b16 %v1135
  %v1209 = vunpack.c.l.b16 %v1136
  %v1210 = vunpack.c.h.b16 %v1136
  %v1211 = vunpack.c.l.b16 %v1137
  %v1212 = vunpack.c.h.b16 %v1137
  %v1213 = vunpack.c.l.b16 %v1138
  %v1214 = vunpack.c.h.b16 %v1138
  %v1215 = vunpack.c.l.b16 %v1139
  %v1216 = vunpack.c.h.b16 %v1139
  %v1217 = vunpack.c.l.b16 %v1140
  %v1218 = vunpack.c.h.b16 %v1140
  %v1219 = vunpack.c.l.b16 %v1141
  %v1220 = vunpack.c.h.b16 %v1141
  %v1221 = vunpack.c.l.b16 %v1142
  %v1222 = vunpack.c.h.b16 %v1142
  %v1223 = vunpack.c.l.b16 %v1143
  %v1224 = vunpack.c.h.b16 %v1143
  %v1225 = vunpack.c.l.b16 %v1144
  %v1226 = vunpack.c.h.b16 %v1144
  %v1227 = vunpack.c.l.b16 %v1145
  %v1228 = vunpack.c.h.b16 %v1145
  %v1229 = vunpack.c.l.b16 %v1146
  %v1230 = vunpack.c.h.b16 %v1146
  %v1231 = vunpack.c.l.b16 %v1147
  %v1232 = vunpack.c.h.b16 %v1147
  %v1233 = vunpack.c.l.b16 %v1148
  %v1234 = vunpack.c.h.b16 %v1148
  %v1235 = vunpack.c.l.b16 %v1149
  %v1236 = vunpack.c.h.b16 %v1149
  %v1237 = vunpack.c.l.b16 %v1150
  %v1238 = vunpack.c.h.b16 %v1150
  %v1239 = vunpack.c.l.b16 %v1151
  %v1240 = vunpack.c.h.b16 %v1151
  %v1241 = vunpack.c.l.b16 %v1152
  %v1242 = vunpack.c.h.b16 %v1152
  %v1243 = vunpack.c.l.b16 %v1153
  %v1244 = vunpack.c.h.b16 %v1153
  %v1245 = vunpack.c.l.b16 %v1154
  %v1246 = vunpack.c.h.b16 %v1154
  %v1247 = vunpack.c.l.b16 %v1155
  %v1248 = vunpack.c.h.b16 %v1155
  %v1249 = vunpack.c.l.b16 %v1156
  %v1250 = vunpack.c.h.b16 %v1156
  %v1251 = vunpack.c.l.b16 %v1157
  %v1252 = vunpack.c.h.b16 %v1157
  %v1253 = vunpack.c.l.b16 %v1158
  %v1254 = vunpack.c.h.b16 %v1158
  %v1255 = vpack.c.b16 %v1207, %v1191
  %v1256 = vpack.c.b16 %v1208, %v1192
  %v1257 = vpack.c.b16 %v1209, %v1193
  %v1258 = vpack.c.b16 %v1210, %v1194
  %v1259 = vpack.c.b16 %v1211, %v1195
  %v1260 = vpack.c.b16 %v1212, %v1196
  %v1261 = vpack.c.b16 %v1213, %v1197
  %v1262 = vpack.c.b16 %v1214, %v1198
  %v1263 = vpack.c.b16 %v1215, %v1199
  %v1264 = vpack.c.b16 %v1216, %v1200
  %v1265 = vpack.c.b16 %v1217, %v1201
  %v1266 = vpack.c.b16 %v1218, %v1202
  %v1267 = vpack.c.b16 %v1219, %v1203
  %v1268 = vpack.c.b16 %v1220, %v1204
  %v1269 = vpack.c.b16 %v1221, %v1205
  %v1270 = vpack.c.b16 %v1222, %v1206
  %v1271 = vpack.c.b16 %v1239, %v1223
  %v1272 = vpack.c.b16 %v1240, %v1224
  %v1273 = vpack.c.b16 %v1241, %v1225
  %v1274 = vpack.c.b16 %v1242, %v1226
  %v1275 = vpack.c.b16 %v1243, %v1227
  %v1276 = vpack.c.b16 %v1244, %v1228
  %v1277 = vpack.c.b16 %v1245, %v1229
  %v1278 = vpack.c.b16 %v1246, %v1230
  %v1279 = vpack.c.b16 %v1247, %v1231
  %v1280 = vpack.c.b16 %v1248, %v1232
  %v1281 = vpack.c.b16 %v1249, %v1233
  %v1282 = vpack.c.b16 %v1250, %v1234
  %v1283 = vpack.c.b16 %v1251, %v1235
  %v1284 = vpack.c.b16 %v1252, %v1236
  %v1285 = vpack.c.b16 %v1253, %v1237
  %v1286 = vpack.c.b16 %v1254, %v1238
  %v1304 = vand.u32 %v1271, %v249
  %v1307 = vand.u32 %v1272, %v249
  %v1310 = vand.u32 %v1273, %v249
  %v1313 = vand.u32 %v1274, %v249
  %v1316 = vand.u32 %v1275, %v249
  %v1319 = vand.u32 %v1276, %v249
  %v1322 = vand.u32 %v1277, %v249
  %v1325 = vand.u32 %v1278, %v249
  %v1328 = vand.u32 %v1279, %v249
  %v1331 = vand.u32 %v1280, %v249
  %v1334 = vand.u32 %v1281, %v249
  %v1337 = vand.u32 %v1282, %v249
  %v1340 = vand.u32 %v1283, %v249
  %v1343 = vand.u32 %v1284, %v249
  %v1346 = vand.u32 %v1285, %v249
  %v1349 = vand.u32 %v1286, %v249
  %1351 = vmatprep.subr.bf16.mxu0 0
  %1352 = vmatpush1.bf16.msra.mxu0 0
  %1353 = vmatprep.subr.bf16.mxu0 0
  %1354 = vmatpush1.bf16.msra.mxu0 0
  %1355 = vmatprep.subr.bf16.mxu0 0
  %1356 = vmatpush1.bf16.msra.mxu0 0
  %1357 = vmatprep.subr.bf16.mxu0 0
  %1358 = vmatpush1.bf16.msra.mxu0 0
  %1359 = vmatprep.subr.bf16.mxu0 0
  %1360 = vmatpush1.bf16.msra.mxu0 0
  %1361 = vmatprep.subr.bf16.mxu0 0
  %1362 = vmatpush1.bf16.msra.mxu0 0
  %1363 = vmatprep.subr.bf16.mxu0 %v1307
  %1364 = vmatpush1.bf16.msra.mxu0 %v1304
  %1365 = vmatprep.subr.bf16.mxu0 %v1256
  %1366 = vmatpush1.bf16.msra.mxu0 %v1255
  %1367 = vmatprep.subr.bf16.mxu0 0
  %1368 = vmatpush2.bf16.msra.mxu0 0
  %1369 = vmatprep.subr.bf16.mxu0 0
  %1370 = vmatpush2.bf16.msra.mxu0 0
  %1371 = vmatprep.subr.bf16.mxu0 0
  %1372 = vmatpush2.bf16.msra.mxu0 0
  %1373 = vmatprep.subr.bf16.mxu0 0
  %1374 = vmatpush2.bf16.msra.mxu0 0
  %1375 = vmatprep.subr.bf16.mxu0 0
  %1376 = vmatpush2.bf16.msra.mxu0 0
  %1377 = vmatprep.subr.bf16.mxu0 0
  %1378 = vmatpush2.bf16.msra.mxu0 0
  %1379 = vmatprep.subr.bf16.mxu0 0
  %1380 = vmatpush2.bf16.msra.mxu0 0
  %1381 = vmatprep.subr.bf16.mxu0 0
  %1382 = vmatpush2.bf16.msra.mxu0 0
  %1383 = vmatprep.mubr.bf16.mxu0 0
  %1384 = vmatmul.mubr.bf16.gmra.mxu0 %v232
  %v1385 = vpop.f32.mrf.mxu0
  %v1386 = vadd.f32 0.0, %v1385
  %v1387 = vpop.f32.mrf.mxu0
  %v1388 = vadd.f32 0.0, %v1387
  %v1389 = vpop.f32.mrf.mxu0
  %v1390 = vadd.f32 0.0, %v1389
  %v1391 = vpop.f32.mrf.mxu0
  %v1392 = vadd.f32 0.0, %v1391
  %1393 = vmatprep.mubr.bf16.mxu0 0
  %1394 = vmatmul.mubr.bf16.gmra.mxu0 %v235
  %v1395 = vpop.f32.mrf.mxu0
  %v1396 = vadd.f32 0.0, %v1395
  %v1397 = vpop.f32.mrf.mxu0
  %v1398 = vadd.f32 0.0, %v1397
  %v1399 = vpop.f32.mrf.mxu0
  %v1400 = vadd.f32 0.0, %v1399
  %v1401 = vpop.f32.mrf.mxu0
  %v1402 = vadd.f32 0.0, %v1401
  %1403 = vmatprep.mubr.bf16.mxu0 0
  %1404 = vmatmul.mubr.bf16.gmra.mxu0 %v238
  %v1405 = vpop.f32.mrf.mxu0
  %v1406 = vadd.f32 0.0, %v1405
  %v1407 = vpop.f32.mrf.mxu0
  %v1408 = vadd.f32 0.0, %v1407
  %v1409 = vpop.f32.mrf.mxu0
  %v1410 = vadd.f32 0.0, %v1409
  %v1411 = vpop.f32.mrf.mxu0
  %v1412 = vadd.f32 0.0, %v1411
  %1413 = vmatprep.mubr.bf16.mxu0 0
  %1414 = vmatmul.mubr.bf16.gmra.mxu0 %v241
  %v1415 = vpop.f32.mrf.mxu0
  %v1416 = vadd.f32 0.0, %v1415
  %v1417 = vpop.f32.mrf.mxu0
  %v1418 = vadd.f32 0.0, %v1417
  %v1419 = vpop.f32.mrf.mxu0
  %v1420 = vadd.f32 0.0, %v1419
  %v1421 = vpop.f32.mrf.mxu0
  %v1422 = vadd.f32 0.0, %v1421
  %1423 = vmatprep.mubr.bf16.mxu0 0
  %1424 = vmatmul.mubr.bf16.gmra.mxu0 %v244
  %v1425 = vpop.f32.mrf.mxu0
  %v1426 = vadd.f32 0.0, %v1425
  %v1427 = vpop.f32.mrf.mxu0
  %v1428 = vadd.f32 0.0, %v1427
  %v1429 = vpop.f32.mrf.mxu0
  %v1430 = vpop.f32.mrf.mxu0
  %1431 = vdwg.mxu0
  %1432 = vmatprep.subr.bf16.mxu0 0
  %1433 = vmatpush1.bf16.msra.mxu0 0
  %1434 = vmatprep.subr.bf16.mxu0 0
  %1435 = vmatpush1.bf16.msra.mxu0 0
  %1436 = vmatprep.subr.bf16.mxu0 0
  %1437 = vmatpush1.bf16.msra.mxu0 0
  %1438 = vmatprep.subr.bf16.mxu0 0
  %1439 = vmatpush1.bf16.msra.mxu0 0
  %1440 = vmatprep.subr.bf16.mxu0 0
  %1441 = vmatpush1.bf16.msra.mxu0 0
  %1442 = vmatprep.subr.bf16.mxu0 0
  %1443 = vmatpush1.bf16.msra.mxu0 0
  %1444 = vmatprep.subr.bf16.mxu0 %v1313
  %1445 = vmatpush1.bf16.msra.mxu0 %v1310
  %1446 = vmatprep.subr.bf16.mxu0 %v1258
  %1447 = vmatpush1.bf16.msra.mxu0 %v1257
  %1448 = vmatprep.subr.bf16.mxu0 0
  %1449 = vmatpush2.bf16.msra.mxu0 0
  %1450 = vmatprep.subr.bf16.mxu0 0
  %1451 = vmatpush2.bf16.msra.mxu0 0
  %1452 = vmatprep.subr.bf16.mxu0 0
  %1453 = vmatpush2.bf16.msra.mxu0 0
  %1454 = vmatprep.subr.bf16.mxu0 0
  %1455 = vmatpush2.bf16.msra.mxu0 0
  %1456 = vmatprep.subr.bf16.mxu0 0
  %1457 = vmatpush2.bf16.msra.mxu0 0
  %1458 = vmatprep.subr.bf16.mxu0 0
  %1459 = vmatpush2.bf16.msra.mxu0 0
  %1460 = vmatprep.subr.bf16.mxu0 0
  %1461 = vmatpush2.bf16.msra.mxu0 0
  %1462 = vmatprep.subr.bf16.mxu0 0
  %1463 = vmatpush2.bf16.msra.mxu0 0
  %1464 = vmatprep.mubr.bf16.mxu0 0
  %1465 = vmatmul.mubr.bf16.gmra.mxu0 %v232
  %v1466 = vpop.f32.mrf.mxu0
  %v1467 = vadd.f32 0.0, %v1466
  %v1468 = vpop.f32.mrf.mxu0
  %v1469 = vadd.f32 0.0, %v1468
  %v1470 = vpop.f32.mrf.mxu0
  %v1471 = vadd.f32 0.0, %v1470
  %v1472 = vpop.f32.mrf.mxu0
  %v1473 = vadd.f32 0.0, %v1472
  %1474 = vmatprep.mubr.bf16.mxu0 0
  %1475 = vmatmul.mubr.bf16.gmra.mxu0 %v235
  %v1476 = vpop.f32.mrf.mxu0
  %v1477 = vadd.f32 0.0, %v1476
  %v1478 = vpop.f32.mrf.mxu0
  %v1479 = vadd.f32 0.0, %v1478
  %v1480 = vpop.f32.mrf.mxu0
  %v1481 = vadd.f32 0.0, %v1480
  %v1482 = vpop.f32.mrf.mxu0
  %v1483 = vadd.f32 0.0, %v1482
  %1484 = vmatprep.mubr.bf16.mxu0 0
  %1485 = vmatmul.mubr.bf16.gmra.mxu0 %v238
  %v1486 = vpop.f32.mrf.mxu0
  %v1487 = vadd.f32 0.0, %v1486
  %v1488 = vpop.f32.mrf.mxu0
  %v1489 = vadd.f32 0.0, %v1488
  %v1490 = vpop.f32.mrf.mxu0
  %v1491 = vadd.f32 0.0, %v1490
  %v1492 = vpop.f32.mrf.mxu0
  %v1493 = vadd.f32 0.0, %v1492
  %1494 = vmatprep.mubr.bf16.mxu0 0
  %1495 = vmatmul.mubr.bf16.gmra.mxu0 %v241
  %v1496 = vpop.f32.mrf.mxu0
  %v1497 = vadd.f32 0.0, %v1496
  %v1498 = vpop.f32.mrf.mxu0
  %v1499 = vadd.f32 0.0, %v1498
  %v1500 = vpop.f32.mrf.mxu0
  %v1501 = vadd.f32 0.0, %v1500
  %v1502 = vpop.f32.mrf.mxu0
  %v1503 = vadd.f32 0.0, %v1502
  %1504 = vmatprep.mubr.bf16.mxu0 0
  %1505 = vmatmul.mubr.bf16.gmra.mxu0 %v244
  %v1506 = vpop.f32.mrf.mxu0
  %v1507 = vadd.f32 0.0, %v1506
  %v1508 = vpop.f32.mrf.mxu0
  %v1509 = vadd.f32 0.0, %v1508
  %v1510 = vpop.f32.mrf.mxu0
  %v1511 = vpop.f32.mrf.mxu0
  %1512 = vdwg.mxu0
  %1513 = vmatprep.subr.bf16.mxu0 0
  %1514 = vmatpush1.bf16.msra.mxu0 0
  %1515 = vmatprep.subr.bf16.mxu0 0
  %1516 = vmatpush1.bf16.msra.mxu0 0
  %1517 = vmatprep.subr.bf16.mxu0 0
  %1518 = vmatpush1.bf16.msra.mxu0 0
  %1519 = vmatprep.subr.bf16.mxu0 0
  %1520 = vmatpush1.bf16.msra.mxu0 0
  %1521 = vmatprep.subr.bf16.mxu0 0
  %1522 = vmatpush1.bf16.msra.mxu0 0
  %1523 = vmatprep.subr.bf16.mxu0 0
  %1524 = vmatpush1.bf16.msra.mxu0 0
  %1525 = vmatprep.subr.bf16.mxu0 %v1319
  %1526 = vmatpush1.bf16.msra.mxu0 %v1316
  %1527 = vmatprep.subr.bf16.mxu0 %v1260
  %1528 = vmatpush1.bf16.msra.mxu0 %v1259
  %1529 = vmatprep.subr.bf16.mxu0 0
  %1530 = vmatpush2.bf16.msra.mxu0 0
  %1531 = vmatprep.subr.bf16.mxu0 0
  %1532 = vmatpush2.bf16.msra.mxu0 0
  %1533 = vmatprep.subr.bf16.mxu0 0
  %1534 = vmatpush2.bf16.msra.mxu0 0
  %1535 = vmatprep.subr.bf16.mxu0 0
  %1536 = vmatpush2.bf16.msra.mxu0 0
  %1537 = vmatprep.subr.bf16.mxu0 0
  %1538 = vmatpush2.bf16.msra.mxu0 0
  %1539 = vmatprep.subr.bf16.mxu0 0
  %1540 = vmatpush2.bf16.msra.mxu0 0
  %1541 = vmatprep.subr.bf16.mxu0 0
  %1542 = vmatpush2.bf16.msra.mxu0 0
  %1543 = vmatprep.subr.bf16.mxu0 0
  %1544 = vmatpush2.bf16.msra.mxu0 0
  %1545 = vmatprep.mubr.bf16.mxu0 0
  %1546 = vmatmul.mubr.bf16.gmra.mxu0 %v232
  %v1547 = vpop.f32.mrf.mxu0
  %v1548 = vadd.f32 0.0, %v1547
  %v1549 = vpop.f32.mrf.mxu0
  %v1550 = vadd.f32 0.0, %v1549
  %v1551 = vpop.f32.mrf.mxu0
  %v1552 = vadd.f32 0.0, %v1551
  %v1553 = vpop.f32.mrf.mxu0
  %v1554 = vadd.f32 0.0, %v1553
  %1555 = vmatprep.mubr.bf16.mxu0 0
  %1556 = vmatmul.mubr.bf16.gmra.mxu0 %v235
  %v1557 = vpop.f32.mrf.mxu0
  %v1558 = vadd.f32 0.0, %v1557
  %v1559 = vpop.f32.mrf.mxu0
  %v1560 = vadd.f32 0.0, %v1559
  %v1561 = vpop.f32.mrf.mxu0
  %v1562 = vadd.f32 0.0, %v1561
  %v1563 = vpop.f32.mrf.mxu0
  %v1564 = vadd.f32 0.0, %v1563
  %1565 = vmatprep.mubr.bf16.mxu0 0
  %1566 = vmatmul.mubr.bf16.gmra.mxu0 %v238
  %v1567 = vpop.f32.mrf.mxu0
  %v1568 = vadd.f32 0.0, %v1567
  %v1569 = vpop.f32.mrf.mxu0
  %v1570 = vadd.f32 0.0, %v1569
  %v1571 = vpop.f32.mrf.mxu0
  %v1572 = vadd.f32 0.0, %v1571
  %v1573 = vpop.f32.mrf.mxu0
  %v1574 = vadd.f32 0.0, %v1573
  %1575 = vmatprep.mubr.bf16.mxu0 0
  %1576 = vmatmul.mubr.bf16.gmra.mxu0 %v241
  %v1577 = vpop.f32.mrf.mxu0
  %v1578 = vadd.f32 0.0, %v1577
  %v1579 = vpop.f32.mrf.mxu0
  %v1580 = vadd.f32 0.0, %v1579
  %v1581 = vpop.f32.mrf.mxu0
  %v1582 = vadd.f32 0.0, %v1581
  %v1583 = vpop.f32.mrf.mxu0
  %v1584 = vadd.f32 0.0, %v1583
  %1585 = vmatprep.mubr.bf16.mxu0 0
  %1586 = vmatmul.mubr.bf16.gmra.mxu0 %v244
  %v1587 = vpop.f32.mrf.mxu0
  %v1588 = vadd.f32 0.0, %v1587
  %v1589 = vpop.f32.mrf.mxu0
  %v1590 = vadd.f32 0.0, %v1589
  %v1591 = vpop.f32.mrf.mxu0
  %v1592 = vpop.f32.mrf.mxu0
  %1593 = vdwg.mxu0
  %1594 = vmatprep.subr.bf16.mxu0 0
  %1595 = vmatpush1.bf16.msra.mxu0 0
  %1596 = vmatprep.subr.bf16.mxu0 0
  %1597 = vmatpush1.bf16.msra.mxu0 0
  %1598 = vmatprep.subr.bf16.mxu0 0
  %1599 = vmatpush1.bf16.msra.mxu0 0
  %1600 = vmatprep.subr.bf16.mxu0 0
  %1601 = vmatpush1.bf16.msra.mxu0 0
  %1602 = vmatprep.subr.bf16.mxu0 0
  %1603 = vmatpush1.bf16.msra.mxu0 0
  %1604 = vmatprep.subr.bf16.mxu0 0
  %1605 = vmatpush1.bf16.msra.mxu0 0
  %1606 = vmatprep.subr.bf16.mxu0 %v1325
  %1607 = vmatpush1.bf16.msra.mxu0 %v1322
  %1608 = vmatprep.subr.bf16.mxu0 %v1262
  %1609 = vmatpush1.bf16.msra.mxu0 %v1261
  %1610 = vmatprep.subr.bf16.mxu0 0
  %1611 = vmatpush2.bf16.msra.mxu0 0
  %1612 = vmatprep.subr.bf16.mxu0 0
  %1613 = vmatpush2.bf16.msra.mxu0 0
  %1614 = vmatprep.subr.bf16.mxu0 0
  %1615 = vmatpush2.bf16.msra.mxu0 0
  %1616 = vmatprep.subr.bf16.mxu0 0
  %1617 = vmatpush2.bf16.msra.mxu0 0
  %1618 = vmatprep.subr.bf16.mxu0 0
  %1619 = vmatpush2.bf16.msra.mxu0 0
  %1620 = vmatprep.subr.bf16.mxu0 0
  %1621 = vmatpush2.bf16.msra.mxu0 0
  %1622 = vmatprep.subr.bf16.mxu0 0
  %1623 = vmatpush2.bf16.msra.mxu0 0
  %1624 = vmatprep.subr.bf16.mxu0 0
  %1625 = vmatpush2.bf16.msra.mxu0 0
  %1626 = vmatprep.mubr.bf16.mxu0 0
  %1627 = vmatmul.mubr.bf16.gmra.mxu0 %v232
  %v1628 = vpop.f32.mrf.mxu0
  %v1629 = vadd.f32 0.0, %v1628
  %v1630 = vpop.f32.mrf.mxu0
  %v1631 = vadd.f32 0.0, %v1630
  %v1632 = vpop.f32.mrf.mxu0
  %v1633 = vadd.f32 0.0, %v1632
  %v1634 = vpop.f32.mrf.mxu0
  %v1635 = vadd.f32 0.0, %v1634
  %1636 = vmatprep.mubr.bf16.mxu0 0
  %1637 = vmatmul.mubr.bf16.gmra.mxu0 %v235
  %v1638 = vpop.f32.mrf.mxu0
  %v1639 = vadd.f32 0.0, %v1638
  %v1640 = vpop.f32.mrf.mxu0
  %v1641 = vadd.f32 0.0, %v1640
  %v1642 = vpop.f32.mrf.mxu0
  %v1643 = vadd.f32 0.0, %v1642
  %v1644 = vpop.f32.mrf.mxu0
  %v1645 = vadd.f32 0.0, %v1644
  %1646 = vmatprep.mubr.bf16.mxu0 0
  %1647 = vmatmul.mubr.bf16.gmra.mxu0 %v238
  %v1648 = vpop.f32.mrf.mxu0
  %v1649 = vadd.f32 0.0, %v1648
  %v1650 = vpop.f32.mrf.mxu0
  %v1651 = vadd.f32 0.0, %v1650
  %v1652 = vpop.f32.mrf.mxu0
  %v1653 = vadd.f32 0.0, %v1652
  %v1654 = vpop.f32.mrf.mxu0
  %v1655 = vadd.f32 0.0, %v1654
  %1656 = vmatprep.mubr.bf16.mxu0 0
  %1657 = vmatmul.mubr.bf16.gmra.mxu0 %v241
  %v1658 = vpop.f32.mrf.mxu0
  %v1659 = vadd.f32 0.0, %v1658
  %v1660 = vpop.f32.mrf.mxu0
  %v1661 = vadd.f32 0.0, %v1660
  %v1662 = vpop.f32.mrf.mxu0
  %v1663 = vadd.f32 0.0, %v1662
  %v1664 = vpop.f32.mrf.mxu0
  %v1665 = vadd.f32 0.0, %v1664
  %1666 = vmatprep.mubr.bf16.mxu0 0
  %1667 = vmatmul.mubr.bf16.gmra.mxu0 %v244
  %v1668 = vpop.f32.mrf.mxu0
  %v1669 = vadd.f32 0.0, %v1668
  %v1670 = vpop.f32.mrf.mxu0
  %v1671 = vadd.f32 0.0, %v1670
  %v1672 = vpop.f32.mrf.mxu0
  %v1673 = vpop.f32.mrf.mxu0
  %1674 = vdwg.mxu0
  %1675 = vmatprep.subr.bf16.mxu0 0
  %1676 = vmatpush1.bf16.msra.mxu0 0
  %1677 = vmatprep.subr.bf16.mxu0 0
  %1678 = vmatpush1.bf16.msra.mxu0 0
  %1679 = vmatprep.subr.bf16.mxu0 0
  %1680 = vmatpush1.bf16.msra.mxu0 0
  %1681 = vmatprep.subr.bf16.mxu0 0
  %1682 = vmatpush1.bf16.msra.mxu0 0
  %1683 = vmatprep.subr.bf16.mxu0 0
  %1684 = vmatpush1.bf16.msra.mxu0 0
  %1685 = vmatprep.subr.bf16.mxu0 0
  %1686 = vmatpush1.bf16.msra.mxu0 0
  %1687 = vmatprep.subr.bf16.mxu0 %v1331
  %1688 = vmatpush1.bf16.msra.mxu0 %v1328
  %1689 = vmatprep.subr.bf16.mxu0 %v1264
  %1690 = vmatpush1.bf16.msra.mxu0 %v1263
  %1691 = vmatprep.subr.bf16.mxu0 0
  %1692 = vmatpush2.bf16.msra.mxu0 0
  %1693 = vmatprep.subr.bf16.mxu0 0
  %1694 = vmatpush2.bf16.msra.mxu0 0
  %1695 = vmatprep.subr.bf16.mxu0 0
  %1696 = vmatpush2.bf16.msra.mxu0 0
  %1697 = vmatprep.subr.bf16.mxu0 0
  %1698 = vmatpush2.bf16.msra.mxu0 0
  %1699 = vmatprep.subr.bf16.mxu0 0
  %1700 = vmatpush2.bf16.msra.mxu0 0
  %1701 = vmatprep.subr.bf16.mxu0 0
  %1702 = vmatpush2.bf16.msra.mxu0 0
  %1703 = vmatprep.subr.bf16.mxu0 0
  %1704 = vmatpush2.bf16.msra.mxu0 0
  %1705 = vmatprep.subr.bf16.mxu0 0
  %1706 = vmatpush2.bf16.msra.mxu0 0
  %1707 = vmatprep.mubr.bf16.mxu0 0
  %1708 = vmatmul.mubr.bf16.gmra.mxu0 %v232
  %v1709 = vpop.f32.mrf.mxu0
  %v1710 = vadd.f32 0.0, %v1709
  %v1711 = vpop.f32.mrf.mxu0
  %v1712 = vadd.f32 0.0, %v1711
  %v1713 = vpop.f32.mrf.mxu0
  %v1714 = vadd.f32 0.0, %v1713
  %v1715 = vpop.f32.mrf.mxu0
  %v1716 = vadd.f32 0.0, %v1715
  %1717 = vmatprep.mubr.bf16.mxu0 0
  %1718 = vmatmul.mubr.bf16.gmra.mxu0 %v235
  %v1719 = vpop.f32.mrf.mxu0
  %v1720 = vadd.f32 0.0, %v1719
  %v1721 = vpop.f32.mrf.mxu0
  %v1722 = vadd.f32 0.0, %v1721
  %v1723 = vpop.f32.mrf.mxu0
  %v1724 = vadd.f32 0.0, %v1723
  %v1725 = vpop.f32.mrf.mxu0
  %v1726 = vadd.f32 0.0, %v1725
  %1727 = vmatprep.mubr.bf16.mxu0 0
  %1728 = vmatmul.mubr.bf16.gmra.mxu0 %v238
  %v1729 = vpop.f32.mrf.mxu0
  %v1730 = vadd.f32 0.0, %v1729
  %v1731 = vpop.f32.mrf.mxu0
  %v1732 = vadd.f32 0.0, %v1731
  %v1733 = vpop.f32.mrf.mxu0
  %v1734 = vadd.f32 0.0, %v1733
  %v1735 = vpop.f32.mrf.mxu0
  %v1736 = vadd.f32 0.0, %v1735
  %1737 = vmatprep.mubr.bf16.mxu0 0
  %1738 = vmatmul.mubr.bf16.gmra.mxu0 %v241
  %v1739 = vpop.f32.mrf.mxu0
  %v1740 = vadd.f32 0.0, %v1739
  %v1741 = vpop.f32.mrf.mxu0
  %v1742 = vadd.f32 0.0, %v1741
  %v1743 = vpop.f32.mrf.mxu0
  %v1744 = vadd.f32 0.0, %v1743
  %v1745 = vpop.f32.mrf.mxu0
  %v1746 = vadd.f32 0.0, %v1745
  %1747 = vmatprep.mubr.bf16.mxu0 0
  %1748 = vmatmul.mubr.bf16.gmra.mxu0 %v244
  %v1749 = vpop.f32.mrf.mxu0
  %v1750 = vadd.f32 0.0, %v1749
  %v1751 = vpop.f32.mrf.mxu0
  %v1752 = vadd.f32 0.0, %v1751
  %v1753 = vpop.f32.mrf.mxu0
  %v1754 = vpop.f32.mrf.mxu0
  %1755 = vdwg.mxu0
  %1756 = vmatprep.subr.bf16.mxu0 0
  %1757 = vmatpush1.bf16.msra.mxu0 0
  %1758 = vmatprep.subr.bf16.mxu0 0
  %1759 = vmatpush1.bf16.msra.mxu0 0
  %1760 = vmatprep.subr.bf16.mxu0 0
  %1761 = vmatpush1.bf16.msra.mxu0 0
  %1762 = vmatprep.subr.bf16.mxu0 0
  %1763 = vmatpush1.bf16.msra.mxu0 0
  %1764 = vmatprep.subr.bf16.mxu0 0
  %1765 = vmatpush1.bf16.msra.mxu0 0
  %1766 = vmatprep.subr.bf16.mxu0 0
  %1767 = vmatpush1.bf16.msra.mxu0 0
  %1768 = vmatprep.subr.bf16.mxu0 %v1337
  %1769 = vmatpush1.bf16.msra.mxu0 %v1334
  %1770 = vmatprep.subr.bf16.mxu0 %v1266
  %1771 = vmatpush1.bf16.msra.mxu0 %v1265
  %1772 = vmatprep.subr.bf16.mxu0 0
  %1773 = vmatpush2.bf16.msra.mxu0 0
  %1774 = vmatprep.subr.bf16.mxu0 0
  %1775 = vmatpush2.bf16.msra.mxu0 0
  %1776 = vmatprep.subr.bf16.mxu0 0
  %1777 = vmatpush2.bf16.msra.mxu0 0
  %1778 = vmatprep.subr.bf16.mxu0 0
  %1779 = vmatpush2.bf16.msra.mxu0 0
  %1780 = vmatprep.subr.bf16.mxu0 0
  %1781 = vmatpush2.bf16.msra.mxu0 0
  %1782 = vmatprep.subr.bf16.mxu0 0
  %1783 = vmatpush2.bf16.msra.mxu0 0
  %1784 = vmatprep.subr.bf16.mxu0 0
  %1785 = vmatpush2.bf16.msra.mxu0 0
  %1786 = vmatprep.subr.bf16.mxu0 0
  %1787 = vmatpush2.bf16.msra.mxu0 0
  %1788 = vmatprep.mubr.bf16.mxu0 0
  %1789 = vmatmul.mubr.bf16.gmra.mxu0 %v232
  %v1790 = vpop.f32.mrf.mxu0
  %v1791 = vadd.f32 0.0, %v1790
  %v1792 = vpop.f32.mrf.mxu0
  %v1793 = vadd.f32 0.0, %v1792
  %v1794 = vpop.f32.mrf.mxu0
  %v1795 = vadd.f32 0.0, %v1794
  %v1796 = vpop.f32.mrf.mxu0
  %v1797 = vadd.f32 0.0, %v1796
  %1798 = vmatprep.mubr.bf16.mxu0 0
  %1799 = vmatmul.mubr.bf16.gmra.mxu0 %v235
  %v1800 = vpop.f32.mrf.mxu0
  %v1801 = vadd.f32 0.0, %v1800
  %v1802 = vpop.f32.mrf.mxu0
  %v1803 = vadd.f32 0.0, %v1802
  %v1804 = vpop.f32.mrf.mxu0
  %v1805 = vadd.f32 0.0, %v1804
  %v1806 = vpop.f32.mrf.mxu0
  %v1807 = vadd.f32 0.0, %v1806
  %1808 = vmatprep.mubr.bf16.mxu0 0
  %1809 = vmatmul.mubr.bf16.gmra.mxu0 %v238
  %v1810 = vpop.f32.mrf.mxu0
  %v1811 = vadd.f32 0.0, %v1810
  %v1812 = vpop.f32.mrf.mxu0
  %v1813 = vadd.f32 0.0, %v1812
  %v1814 = vpop.f32.mrf.mxu0
  %v1815 = vadd.f32 0.0, %v1814
  %v1816 = vpop.f32.mrf.mxu0
  %v1817 = vadd.f32 0.0, %v1816
  %1818 = vmatprep.mubr.bf16.mxu0 0
  %1819 = vmatmul.mubr.bf16.gmra.mxu0 %v241
  %v1820 = vpop.f32.mrf.mxu0
  %v1821 = vadd.f32 0.0, %v1820
  %v1822 = vpop.f32.mrf.mxu0
  %v1823 = vadd.f32 0.0, %v1822
  %v1824 = vpop.f32.mrf.mxu0
  %v1825 = vadd.f32 0.0, %v1824
  %v1826 = vpop.f32.mrf.mxu0
  %v1827 = vadd.f32 0.0, %v1826
  %1828 = vmatprep.mubr.bf16.mxu0 0
  %1829 = vmatmul.mubr.bf16.gmra.mxu0 %v244
  %v1830 = vpop.f32.mrf.mxu0
  %v1831 = vadd.f32 0.0, %v1830
  %v1832 = vpop.f32.mrf.mxu0
  %v1833 = vadd.f32 0.0, %v1832
  %v1834 = vpop.f32.mrf.mxu0
  %v1835 = vpop.f32.mrf.mxu0
  %1836 = vdwg.mxu0
  %1837 = vmatprep.subr.bf16.mxu0 0
  %1838 = vmatpush1.bf16.msra.mxu0 0
  %1839 = vmatprep.subr.bf16.mxu0 0
  %1840 = vmatpush1.bf16.msra.mxu0 0
  %1841 = vmatprep.subr.bf16.mxu0 0
  %1842 = vmatpush1.bf16.msra.mxu0 0
  %1843 = vmatprep.subr.bf16.mxu0 0
  %1844 = vmatpush1.bf16.msra.mxu0 0
  %1845 = vmatprep.subr.bf16.mxu0 0
  %1846 = vmatpush1.bf16.msra.mxu0 0
  %1847 = vmatprep.subr.bf16.mxu0 0
  %1848 = vmatpush1.bf16.msra.mxu0 0
  %1849 = vmatprep.subr.bf16.mxu0 %v1343
  %1850 = vmatpush1.bf16.msra.mxu0 %v1340
  %1851 = vmatprep.subr.bf16.mxu0 %v1268
  %1852 = vmatpush1.bf16.msra.mxu0 %v1267
  %1853 = vmatprep.subr.bf16.mxu0 0
  %1854 = vmatpush2.bf16.msra.mxu0 0
  %1855 = vmatprep.subr.bf16.mxu0 0
  %1856 = vmatpush2.bf16.msra.mxu0 0
  %1857 = vmatprep.subr.bf16.mxu0 0
  %1858 = vmatpush2.bf16.msra.mxu0 0
  %1859 = vmatprep.subr.bf16.mxu0 0
  %1860 = vmatpush2.bf16.msra.mxu0 0
  %1861 = vmatprep.subr.bf16.mxu0 0
  %1862 = vmatpush2.bf16.msra.mxu0 0
  %1863 = vmatprep.subr.bf16.mxu0 0
  %1864 = vmatpush2.bf16.msra.mxu0 0
  %1865 = vmatprep.subr.bf16.mxu0 0
  %1866 = vmatpush2.bf16.msra.mxu0 0
  %1867 = vmatprep.subr.bf16.mxu0 0
  %1868 = vmatpush2.bf16.msra.mxu0 0
  %1869 = vmatprep.mubr.bf16.mxu0 0
  %1870 = vmatmul.mubr.bf16.gmra.mxu0 %v232
  %v1871 = vpop.f32.mrf.mxu0
  %v1872 = vadd.f32 0.0, %v1871
  %v1873 = vpop.f32.mrf.mxu0
  %v1874 = vadd.f32 0.0, %v1873
  %v1875 = vpop.f32.mrf.mxu0
  %v1876 = vadd.f32 0.0, %v1875
  %v1877 = vpop.f32.mrf.mxu0
  %v1878 = vadd.f32 0.0, %v1877
  %1879 = vmatprep.mubr.bf16.mxu0 0
  %1880 = vmatmul.mubr.bf16.gmra.mxu0 %v235
  %v1881 = vpop.f32.mrf.mxu0
  %v1882 = vadd.f32 0.0, %v1881
  %v1883 = vpop.f32.mrf.mxu0
  %v1884 = vadd.f32 0.0, %v1883
  %v1885 = vpop.f32.mrf.mxu0
  %v1886 = vadd.f32 0.0, %v1885
  %v1887 = vpop.f32.mrf.mxu0
  %v1888 = vadd.f32 0.0, %v1887
  %1889 = vmatprep.mubr.bf16.mxu0 0
  %1890 = vmatmul.mubr.bf16.gmra.mxu0 %v238
  %v1891 = vpop.f32.mrf.mxu0
  %v1892 = vadd.f32 0.0, %v1891
  %v1893 = vpop.f32.mrf.mxu0
  %v1894 = vadd.f32 0.0, %v1893
  %v1895 = vpop.f32.mrf.mxu0
  %v1896 = vadd.f32 0.0, %v1895
  %v1897 = vpop.f32.mrf.mxu0
  %v1898 = vadd.f32 0.0, %v1897
  %1899 = vmatprep.mubr.bf16.mxu0 0
  %1900 = vmatmul.mubr.bf16.gmra.mxu0 %v241
  %v1901 = vpop.f32.mrf.mxu0
  %v1902 = vadd.f32 0.0, %v1901
  %v1903 = vpop.f32.mrf.mxu0
  %v1904 = vadd.f32 0.0, %v1903
  %v1905 = vpop.f32.mrf.mxu0
  %v1906 = vadd.f32 0.0, %v1905
  %v1907 = vpop.f32.mrf.mxu0
  %v1908 = vadd.f32 0.0, %v1907
  %1909 = vmatprep.mubr.bf16.mxu0 0
  %1910 = vmatmul.mubr.bf16.gmra.mxu0 %v244
  %v1911 = vpop.f32.mrf.mxu0
  %v1912 = vadd.f32 0.0, %v1911
  %v1913 = vpop.f32.mrf.mxu0
  %v1914 = vadd.f32 0.0, %v1913
  %v1915 = vpop.f32.mrf.mxu0
  %v1916 = vpop.f32.mrf.mxu0
  %1917 = vdwg.mxu0
  %1918 = vmatprep.subr.bf16.mxu0 0
  %1919 = vmatpush1.bf16.msra.mxu0 0
  %1920 = vmatprep.subr.bf16.mxu0 0
  %1921 = vmatpush1.bf16.msra.mxu0 0
  %1922 = vmatprep.subr.bf16.mxu0 0
  %1923 = vmatpush1.bf16.msra.mxu0 0
  %1924 = vmatprep.subr.bf16.mxu0 0
  %1925 = vmatpush1.bf16.msra.mxu0 0
  %1926 = vmatprep.subr.bf16.mxu0 0
  %1927 = vmatpush1.bf16.msra.mxu0 0
  %1928 = vmatprep.subr.bf16.mxu0 0
  %1929 = vmatpush1.bf16.msra.mxu0 0
  %1930 = vmatprep.subr.bf16.mxu0 %v1349
  %1931 = vmatpush1.bf16.msra.mxu0 %v1346
  %1932 = vmatprep.subr.bf16.mxu0 %v1270
  %1933 = vmatpush1.bf16.msra.mxu0 %v1269
  %1934 = vmatprep.subr.bf16.mxu0 0
  %1935 = vmatpush2.bf16.msra.mxu0 0
  %1936 = vmatprep.subr.bf16.mxu0 0
  %1937 = vmatpush2.bf16.msra.mxu0 0
  %1938 = vmatprep.subr.bf16.mxu0 0
  %1939 = vmatpush2.bf16.msra.mxu0 0
  %1940 = vmatprep.subr.bf16.mxu0 0
  %1941 = vmatpush2.bf16.msra.mxu0 0
  %1942 = vmatprep.subr.bf16.mxu0 0
  %1943 = vmatpush2.bf16.msra.mxu0 0
  %1944 = vmatprep.subr.bf16.mxu0 0
  %1945 = vmatpush2.bf16.msra.mxu0 0
  %1946 = vmatprep.subr.bf16.mxu0 0
  %1947 = vmatpush2.bf16.msra.mxu0 0
  %1948 = vmatprep.subr.bf16.mxu0 0
  %1949 = vmatpush2.bf16.msra.mxu0 0
  %1950 = vmatprep.mubr.bf16.mxu0 0
  %1951 = vmatmul.mubr.bf16.gmra.mxu0 %v232
  %v1952 = vpop.f32.mrf.mxu0
  %v1953 = vadd.f32 0.0, %v1952
  %v1954 = vpop.f32.mrf.mxu0
  %v1955 = vadd.f32 0.0, %v1954
  %v1956 = vpop.f32.mrf.mxu0
  %v1957 = vadd.f32 0.0, %v1956
  %v1958 = vpop.f32.mrf.mxu0
  %v1959 = vadd.f32 0.0, %v1958
  %1960 = vmatprep.mubr.bf16.mxu0 0
  %1961 = vmatmul.mubr.bf16.gmra.mxu0 %v235
  %v1962 = vpop.f32.mrf.mxu0
  %v1963 = vadd.f32 0.0, %v1962
  %v1964 = vpop.f32.mrf.mxu0
  %v1965 = vadd.f32 0.0, %v1964
  %v1966 = vpop.f32.mrf.mxu0
  %v1967 = vadd.f32 0.0, %v1966
  %v1968 = vpop.f32.mrf.mxu0
  %v1969 = vadd.f32 0.0, %v1968
  %1970 = vmatprep.mubr.bf16.mxu0 0
  %1971 = vmatmul.mubr.bf16.gmra.mxu0 %v238
  %v1972 = vpop.f32.mrf.mxu0
  %v1973 = vadd.f32 0.0, %v1972
  %v1974 = vpop.f32.mrf.mxu0
  %v1975 = vadd.f32 0.0, %v1974
  %v1976 = vpop.f32.mrf.mxu0
  %v1977 = vadd.f32 0.0, %v1976
  %v1978 = vpop.f32.mrf.mxu0
  %v1979 = vadd.f32 0.0, %v1978
  %1980 = vmatprep.mubr.bf16.mxu0 0
  %1981 = vmatmul.mubr.bf16.gmra.mxu0 %v241
  %v1982 = vpop.f32.mrf.mxu0
  %v1983 = vadd.f32 0.0, %v1982
  %v1984 = vpop.f32.mrf.mxu0
  %v1985 = vadd.f32 0.0, %v1984
  %v1986 = vpop.f32.mrf.mxu0
  %v1987 = vadd.f32 0.0, %v1986
  %v1988 = vpop.f32.mrf.mxu0
  %v1989 = vadd.f32 0.0, %v1988
  %1990 = vmatprep.mubr.bf16.mxu0 0
  %1991 = vmatmul.mubr.bf16.gmra.mxu0 %v244
  %v1992 = vpop.f32.mrf.mxu0
  %v1993 = vadd.f32 0.0, %v1992
  %v1994 = vpop.f32.mrf.mxu0
  %v1995 = vadd.f32 0.0, %v1994
  %v1996 = vpop.f32.mrf.mxu0
  %v1997 = vpop.f32.mrf.mxu0
  %1998 = vdwg.mxu0
  %v1999 = vmax.f32 %v1386, %v1390
  %v2000 = vmax.f32 %v1999, %v1396
  %v2001 = vmax.f32 %v2000, %v1400
  %v2002 = vmax.f32 %v2001, %v1406
  %v2003 = vmax.f32 %v2002, %v1410
  %v2004 = vmax.f32 %v2003, %v1416
  %v2005 = vmax.f32 %v2004, %v1420
  %v2006 = vmax.f32 %v2005, %v1426
  %v2007 = vmax.f32 %v1388, %v1392
  %v2008 = vmax.f32 %v2007, %v1398
  %v2009 = vmax.f32 %v2008, %v1402
  %v2010 = vmax.f32 %v2009, %v1408
  %v2011 = vmax.f32 %v2010, %v1412
  %v2012 = vmax.f32 %v2011, %v1418
  %v2013 = vmax.f32 %v2012, %v1422
  %v2014 = vmax.f32 %v2013, %v1428
  %v2015 = vmax.f32 %v1467, %v1471
  %v2016 = vmax.f32 %v2015, %v1477
  %v2017 = vmax.f32 %v2016, %v1481
  %v2018 = vmax.f32 %v2017, %v1487
  %v2019 = vmax.f32 %v2018, %v1491
  %v2020 = vmax.f32 %v2019, %v1497
  %v2021 = vmax.f32 %v2020, %v1501
  %v2022 = vmax.f32 %v2021, %v1507
  %v2023 = vmax.f32 %v1469, %v1473
  %v2024 = vmax.f32 %v2023, %v1479
  %v2025 = vmax.f32 %v2024, %v1483
  %v2026 = vmax.f32 %v2025, %v1489
  %v2027 = vmax.f32 %v2026, %v1493
  %v2028 = vmax.f32 %v2027, %v1499
  %v2029 = vmax.f32 %v2028, %v1503
  %v2030 = vmax.f32 %v2029, %v1509
  %v2031 = vmax.f32 %v1548, %v1552
  %v2032 = vmax.f32 %v2031, %v1558
  %v2033 = vmax.f32 %v2032, %v1562
  %v2034 = vmax.f32 %v2033, %v1568
  %v2035 = vmax.f32 %v2034, %v1572
  %v2036 = vmax.f32 %v2035, %v1578
  %v2037 = vmax.f32 %v2036, %v1582
  %v2038 = vmax.f32 %v2037, %v1588
  %v2039 = vmax.f32 %v1550, %v1554
  %v2040 = vmax.f32 %v2039, %v1560
  %v2041 = vmax.f32 %v2040, %v1564
  %v2042 = vmax.f32 %v2041, %v1570
  %v2043 = vmax.f32 %v2042, %v1574
  %v2044 = vmax.f32 %v2043, %v1580
  %v2045 = vmax.f32 %v2044, %v1584
  %v2046 = vmax.f32 %v2045, %v1590
  %v2047 = vmax.f32 %v1629, %v1633
  %v2048 = vmax.f32 %v2047, %v1639
  %v2049 = vmax.f32 %v2048, %v1643
  %v2050 = vmax.f32 %v2049, %v1649
  %v2051 = vmax.f32 %v2050, %v1653
  %v2052 = vmax.f32 %v2051, %v1659
  %v2053 = vmax.f32 %v2052, %v1663
  %v2054 = vmax.f32 %v2053, %v1669
  %v2055 = vmax.f32 %v1631, %v1635
  %v2056 = vmax.f32 %v2055, %v1641
  %v2057 = vmax.f32 %v2056, %v1645
  %v2058 = vmax.f32 %v2057, %v1651
  %v2059 = vmax.f32 %v2058, %v1655
  %v2060 = vmax.f32 %v2059, %v1661
  %v2061 = vmax.f32 %v2060, %v1665
  %v2062 = vmax.f32 %v2061, %v1671
  %v2063 = vmax.f32 %v1710, %v1714
  %v2064 = vmax.f32 %v2063, %v1720
  %v2065 = vmax.f32 %v2064, %v1724
  %v2066 = vmax.f32 %v2065, %v1730
  %v2067 = vmax.f32 %v2066, %v1734
  %v2068 = vmax.f32 %v2067, %v1740
  %v2069 = vmax.f32 %v2068, %v1744
  %v2070 = vmax.f32 %v2069, %v1750
  %v2071 = vmax.f32 %v1712, %v1716
  %v2072 = vmax.f32 %v2071, %v1722
  %v2073 = vmax.f32 %v2072, %v1726
  %v2074 = vmax.f32 %v2073, %v1732
  %v2075 = vmax.f32 %v2074, %v1736
  %v2076 = vmax.f32 %v2075, %v1742
  %v2077 = vmax.f32 %v2076, %v1746
  %v2078 = vmax.f32 %v2077, %v1752
  %v2079 = vmax.f32 %v1791, %v1795
  %v2080 = vmax.f32 %v2079, %v1801
  %v2081 = vmax.f32 %v2080, %v1805
  %v2082 = vmax.f32 %v2081, %v1811
  %v2083 = vmax.f32 %v2082, %v1815
  %v2084 = vmax.f32 %v2083, %v1821
  %v2085 = vmax.f32 %v2084, %v1825
  %v2086 = vmax.f32 %v2085, %v1831
  %v2087 = vmax.f32 %v1793, %v1797
  %v2088 = vmax.f32 %v2087, %v1803
  %v2089 = vmax.f32 %v2088, %v1807
  %v2090 = vmax.f32 %v2089, %v1813
  %v2091 = vmax.f32 %v2090, %v1817
  %v2092 = vmax.f32 %v2091, %v1823
  %v2093 = vmax.f32 %v2092, %v1827
  %v2094 = vmax.f32 %v2093, %v1833
  %v2095 = vmax.f32 %v1872, %v1876
  %v2096 = vmax.f32 %v2095, %v1882
  %v2097 = vmax.f32 %v2096, %v1886
  %v2098 = vmax.f32 %v2097, %v1892
  %v2099 = vmax.f32 %v2098, %v1896
  %v2100 = vmax.f32 %v2099, %v1902
  %v2101 = vmax.f32 %v2100, %v1906
  %v2102 = vmax.f32 %v2101, %v1912
  %v2103 = vmax.f32 %v1874, %v1878
  %v2104 = vmax.f32 %v2103, %v1884
  %v2105 = vmax.f32 %v2104, %v1888
  %v2106 = vmax.f32 %v2105, %v1894
  %v2107 = vmax.f32 %v2106, %v1898
  %v2108 = vmax.f32 %v2107, %v1904
  %v2109 = vmax.f32 %v2108, %v1908
  %v2110 = vmax.f32 %v2109, %v1914
  %v2111 = vmax.f32 %v1953, %v1957
  %v2112 = vmax.f32 %v2111, %v1963
  %v2113 = vmax.f32 %v2112, %v1967
  %v2114 = vmax.f32 %v2113, %v1973
  %v2115 = vmax.f32 %v2114, %v1977
  %v2116 = vmax.f32 %v2115, %v1983
  %v2117 = vmax.f32 %v2116, %v1987
  %v2118 = vmax.f32 %v2117, %v1993
  %v2119 = vmax.f32 %v1955, %v1959
  %v2120 = vmax.f32 %v2119, %v1965
  %v2121 = vmax.f32 %v2120, %v1969
  %v2122 = vmax.f32 %v2121, %v1975
  %v2123 = vmax.f32 %v2122, %v1979
  %v2124 = vmax.f32 %v2123, %v1985
  %v2125 = vmax.f32 %v2124, %v1989
  %v2126 = vmax.f32 %v2125, %v1995
  %v2127 = vadd.f32 %v2006, %v1077
  %v2128 = vadd.f32 %v2014, %v1077
  %v2129 = vadd.f32 %v2022, %v1077
  %v2130 = vadd.f32 %v2030, %v1077
  %v2131 = vadd.f32 %v2038, %v1077
  %v2132 = vadd.f32 %v2046, %v1077
  %v2133 = vadd.f32 %v2054, %v1077
  %v2134 = vadd.f32 %v2062, %v1077
  %v2135 = vadd.f32 %v2070, %v1077
  %v2136 = vadd.f32 %v2078, %v1077
  %v2137 = vadd.f32 %v2086, %v1077
  %v2138 = vadd.f32 %v2094, %v1077
  %v2139 = vadd.f32 %v2102, %v1077
  %v2140 = vadd.f32 %v2110, %v1077
  %v2141 = vadd.f32 %v2118, %v1077
  %v2142 = vadd.f32 %v2126, %v1077
  %v2143 = vmax.f32 %v2127, 0.0
  %v2144 = vmax.f32 %v2128, 0.0
  %v2145 = vmax.f32 %v2129, 0.0
  %v2146 = vmax.f32 %v2130, 0.0
  %v2147 = vmax.f32 %v2131, 0.0
  %v2148 = vmax.f32 %v2132, 0.0
  %v2149 = vmax.f32 %v2133, 0.0
  %v2150 = vmax.f32 %v2134, 0.0
  %v2151 = vmax.f32 %v2135, 0.0
  %v2152 = vmax.f32 %v2136, 0.0
  %v2153 = vmax.f32 %v2137, 0.0
  %v2154 = vmax.f32 %v2138, 0.0
  %v2155 = vmax.f32 %v2139, 0.0
  %v2156 = vmax.f32 %v2140, 0.0
  %v2157 = vmax.f32 %v2141, 0.0
  %v2158 = vmax.f32 %v2142, 0.0
  %2159 = vst [vmem:[#allocation2 + $0x80] sm:$0xff] %v2143
  %2160 = vst [vmem:[#allocation2 + $0x88] sm:$0xff] %v2144
  %2161 = vst [vmem:[#allocation2 + $0x90] sm:$0xff] %v2145
  %2162 = vst [vmem:[#allocation2 + $0x98] sm:$0xff] %v2146
  %2163 = vst [vmem:[#allocation2 + $0xa0] sm:$0xff] %v2147
  %2164 = vst [vmem:[#allocation2 + $0xa8] sm:$0xff] %v2148
  %2165 = vst [vmem:[#allocation2 + $0xb0] sm:$0xff] %v2149
  %2166 = vst [vmem:[#allocation2 + $0xb8] sm:$0xff] %v2150
  %2167 = vst [vmem:[#allocation2 + $0xc0] sm:$0xff] %v2151
  %2168 = vst [vmem:[#allocation2 + $0xc8] sm:$0xff] %v2152
  %2169 = vst [vmem:[#allocation2 + $0xd0] sm:$0xff] %v2153
  %2170 = vst [vmem:[#allocation2 + $0xd8] sm:$0xff] %v2154
  %2171 = vst [vmem:[#allocation2 + $0xe0] sm:$0xff] %v2155
  %2172 = vst [vmem:[#allocation2 + $0xe8] sm:$0xff] %v2156
  %2173 = vst [vmem:[#allocation2 + $0xf0] sm:$0xff] %v2157
  %2174 = vst [vmem:[#allocation2 + $0xf8] sm:$0xff] %v2158
  %v2175 = vld [vmem:[%s0 + $0x80] sm:$0xff]
  %v2176 = vld [vmem:[%s0 + $0x88] sm:$0xff]
  %v2177 = vld [vmem:[%s0 + $0x90] sm:$0xff]
  %v2178 = vld [vmem:[%s0 + $0x98] sm:$0xff]
  %v2179 = vld [vmem:[%s0 + $0xa0] sm:$0xff]
  %v2180 = vld [vmem:[%s0 + $0xa8] sm:$0xff]
  %v2181 = vld [vmem:[%s0 + $0xb0] sm:$0xff]
  %v2182 = vld [vmem:[%s0 + $0xb8] sm:$0xff]
  %v2183 = vld [vmem:[%s0 + $0x180] sm:$0xff]
  %v2184 = vld [vmem:[%s0 + $0x188] sm:$0xff]
  %v2185 = vld [vmem:[%s0 + $0x190] sm:$0xff]
  %v2186 = vld [vmem:[%s0 + $0x198] sm:$0xff]
  %v2187 = vld [vmem:[%s0 + $0x1a0] sm:$0xff]
  %v2188 = vld [vmem:[%s0 + $0x1a8] sm:$0xff]
  %v2189 = vld [vmem:[%s0 + $0x1b0] sm:$0xff]
  %v2190 = vld [vmem:[%s0 + $0x1b8] sm:$0xff]
  %v2191 = vld [vmem:[%s0 + $0x280] sm:$0xff]
  %v2192 = vld [vmem:[%s0 + $0x288] sm:$0xff]
  %v2193 = vld [vmem:[%s0 + $0x290] sm:$0xff]
  %v2194 = vld [vmem:[%s0 + $0x298] sm:$0xff]
  %v2195 = vld [vmem:[%s0 + $0x2a0] sm:$0xff]
  %v2196 = vld [vmem:[%s0 + $0x2a8] sm:$0xff]
  %v2197 = vld [vmem:[%s0 + $0x2b0] sm:$0xff]
  %v2198 = vld [vmem:[%s0 + $0x2b8] sm:$0xff]
  %v2199 = vld [vmem:[%s0 + $0x380] sm:$0x11]
  %v2200 = vld [vmem:[%s0 + $0x388] sm:$0x11]
  %v2201 = vld [vmem:[%s0 + $0x390] sm:$0x11]
  %v2202 = vld [vmem:[%s0 + $0x398] sm:$0x11]
  %v2203 = vld [vmem:[%s0 + $0x3a0] sm:$0x11]
  %v2204 = vld [vmem:[%s0 + $0x3a8] sm:$0x11]
  %v2205 = vld [vmem:[%s0 + $0x3b0] sm:$0x11]
  %v2206 = vld [vmem:[%s0 + $0x3b8] sm:$0x11]
  %v2239 = vunpack.c.l.b16 %v2175
  %v2240 = vunpack.c.h.b16 %v2175
  %v2241 = vunpack.c.l.b16 %v2176
  %v2242 = vunpack.c.h.b16 %v2176
  %v2243 = vunpack.c.l.b16 %v2177
  %v2244 = vunpack.c.h.b16 %v2177
  %v2245 = vunpack.c.l.b16 %v2178
  %v2246 = vunpack.c.h.b16 %v2178
  %v2247 = vunpack.c.l.b16 %v2179
  %v2248 = vunpack.c.h.b16 %v2179
  %v2249 = vunpack.c.l.b16 %v2180
  %v2250 = vunpack.c.h.b16 %v2180
  %v2251 = vunpack.c.l.b16 %v2181
  %v2252 = vunpack.c.h.b16 %v2181
  %v2253 = vunpack.c.l.b16 %v2182
  %v2254 = vunpack.c.h.b16 %v2182
  %v2255 = vunpack.c.l.b16 %v2183
  %v2256 = vunpack.c.h.b16 %v2183
  %v2257 = vunpack.c.l.b16 %v2184
  %v2258 = vunpack.c.h.b16 %v2184
  %v2259 = vunpack.c.l.b16 %v2185
  %v2260 = vunpack.c.h.b16 %v2185
  %v2261 = vunpack.c.l.b16 %v2186
  %v2262 = vunpack.c.h.b16 %v2186
  %v2263 = vunpack.c.l.b16 %v2187
  %v2264 = vunpack.c.h.b16 %v2187
  %v2265 = vunpack.c.l.b16 %v2188
  %v2266 = vunpack.c.h.b16 %v2188
  %v2267 = vunpack.c.l.b16 %v2189
  %v2268 = vunpack.c.h.b16 %v2189
  %v2269 = vunpack.c.l.b16 %v2190
  %v2270 = vunpack.c.h.b16 %v2190
  %v2271 = vunpack.c.l.b16 %v2191
  %v2272 = vunpack.c.h.b16 %v2191
  %v2273 = vunpack.c.l.b16 %v2192
  %v2274 = vunpack.c.h.b16 %v2192
  %v2275 = vunpack.c.l.b16 %v2193
  %v2276 = vunpack.c.h.b16 %v2193
  %v2277 = vunpack.c.l.b16 %v2194
  %v2278 = vunpack.c.h.b16 %v2194
  %v2279 = vunpack.c.l.b16 %v2195
  %v2280 = vunpack.c.h.b16 %v2195
  %v2281 = vunpack.c.l.b16 %v2196
  %v2282 = vunpack.c.h.b16 %v2196
  %v2283 = vunpack.c.l.b16 %v2197
  %v2284 = vunpack.c.h.b16 %v2197
  %v2285 = vunpack.c.l.b16 %v2198
  %v2286 = vunpack.c.h.b16 %v2198
  %v2287 = vunpack.c.l.b16 %v2199
  %v2288 = vunpack.c.h.b16 %v2199
  %v2289 = vunpack.c.l.b16 %v2200
  %v2290 = vunpack.c.h.b16 %v2200
  %v2291 = vunpack.c.l.b16 %v2201
  %v2292 = vunpack.c.h.b16 %v2201
  %v2293 = vunpack.c.l.b16 %v2202
  %v2294 = vunpack.c.h.b16 %v2202
  %v2295 = vunpack.c.l.b16 %v2203
  %v2296 = vunpack.c.h.b16 %v2203
  %v2297 = vunpack.c.l.b16 %v2204
  %v2298 = vunpack.c.h.b16 %v2204
  %v2299 = vunpack.c.l.b16 %v2205
  %v2300 = vunpack.c.h.b16 %v2205
  %v2301 = vunpack.c.l.b16 %v2206
  %v2302 = vunpack.c.h.b16 %v2206
  %v2303 = vpack.c.b16 %v2255, %v2239
  %v2304 = vpack.c.b16 %v2256, %v2240
  %v2305 = vpack.c.b16 %v2257, %v2241
  %v2306 = vpack.c.b16 %v2258, %v2242
  %v2307 = vpack.c.b16 %v2259, %v2243
  %v2308 = vpack.c.b16 %v2260, %v2244
  %v2309 = vpack.c.b16 %v2261, %v2245
  %v2310 = vpack.c.b16 %v2262, %v2246
  %v2311 = vpack.c.b16 %v2263, %v2247
  %v2312 = vpack.c.b16 %v2264, %v2248
  %v2313 = vpack.c.b16 %v2265, %v2249
  %v2314 = vpack.c.b16 %v2266, %v2250
  %v2315 = vpack.c.b16 %v2267, %v2251
  %v2316 = vpack.c.b16 %v2268, %v2252
  %v2317 = vpack.c.b16 %v2269, %v2253
  %v2318 = vpack.c.b16 %v2270, %v2254
  %v2319 = vpack.c.b16 %v2287, %v2271
  %v2320 = vpack.c.b16 %v2288, %v2272
  %v2321 = vpack.c.b16 %v2289, %v2273
  %v2322 = vpack.c.b16 %v2290, %v2274
  %v2323 = vpack.c.b16 %v2291, %v2275
  %v2324 = vpack.c.b16 %v2292, %v2276
  %v2325 = vpack.c.b16 %v2293, %v2277
  %v2326 = vpack.c.b16 %v2294, %v2278
  %v2327 = vpack.c.b16 %v2295, %v2279
  %v2328 = vpack.c.b16 %v2296, %v2280
  %v2329 = vpack.c.b16 %v2297, %v2281
  %v2330 = vpack.c.b16 %v2298, %v2282
  %v2331 = vpack.c.b16 %v2299, %v2283
  %v2332 = vpack.c.b16 %v2300, %v2284
  %v2333 = vpack.c.b16 %v2301, %v2285
  %v2334 = vpack.c.b16 %v2302, %v2286
  %v2352 = vand.u32 %v2319, %v249
  %v2355 = vand.u32 %v2320, %v249
  %v2358 = vand.u32 %v2321, %v249
  %v2361 = vand.u32 %v2322, %v249
  %v2364 = vand.u32 %v2323, %v249
  %v2367 = vand.u32 %v2324, %v249
  %v2370 = vand.u32 %v2325, %v249
  %v2373 = vand.u32 %v2326, %v249
  %v2376 = vand.u32 %v2327, %v249
  %v2379 = vand.u32 %v2328, %v249
  %v2382 = vand.u32 %v2329, %v249
  %v2385 = vand.u32 %v2330, %v249
  %v2388 = vand.u32 %v2331, %v249
  %v2391 = vand.u32 %v2332, %v249
  %v2394 = vand.u32 %v2333, %v249
  %v2397 = vand.u32 %v2334, %v249
  %2399 = vmatprep.subr.bf16.mxu0 0
  %2400 = vmatpush1.bf16.msra.mxu0 0
  %2401 = vmatprep.subr.bf16.mxu0 0
  %2402 = vmatpush1.bf16.msra.mxu0 0
  %2403 = vmatprep.subr.bf16.mxu0 0
  %2404 = vmatpush1.bf16.msra.mxu0 0
  %2405 = vmatprep.subr.bf16.mxu0 0
  %2406 = vmatpush1.bf16.msra.mxu0 0
  %2407 = vmatprep.subr.bf16.mxu0 0
  %2408 = vmatpush1.bf16.msra.mxu0 0
  %2409 = vmatprep.subr.bf16.mxu0 0
  %2410 = vmatpush1.bf16.msra.mxu0 0
  %2411 = vmatprep.subr.bf16.mxu0 %v2355
  %2412 = vmatpush1.bf16.msra.mxu0 %v2352
  %2413 = vmatprep.subr.bf16.mxu0 %v2304
  %2414 = vmatpush1.bf16.msra.mxu0 %v2303
  %2415 = vmatprep.subr.bf16.mxu0 0
  %2416 = vmatpush2.bf16.msra.mxu0 0
  %2417 = vmatprep.subr.bf16.mxu0 0
  %2418 = vmatpush2.bf16.msra.mxu0 0
  %2419 = vmatprep.subr.bf16.mxu0 0
  %2420 = vmatpush2.bf16.msra.mxu0 0
  %2421 = vmatprep.subr.bf16.mxu0 0
  %2422 = vmatpush2.bf16.msra.mxu0 0
  %2423 = vmatprep.subr.bf16.mxu0 0
  %2424 = vmatpush2.bf16.msra.mxu0 0
  %2425 = vmatprep.subr.bf16.mxu0 0
  %2426 = vmatpush2.bf16.msra.mxu0 0
  %2427 = vmatprep.subr.bf16.mxu0 0
  %2428 = vmatpush2.bf16.msra.mxu0 0
  %2429 = vmatprep.subr.bf16.mxu0 0
  %2430 = vmatpush2.bf16.msra.mxu0 0
  %2431 = vmatprep.mubr.bf16.mxu0 0
  %2432 = vmatmul.mubr.bf16.gmra.mxu0 %v232
  %v2433 = vpop.f32.mrf.mxu0
  %v2434 = vadd.f32 0.0, %v2433
  %v2435 = vpop.f32.mrf.mxu0
  %v2436 = vadd.f32 0.0, %v2435
  %v2437 = vpop.f32.mrf.mxu0
  %v2438 = vadd.f32 0.0, %v2437
  %v2439 = vpop.f32.mrf.mxu0
  %v2440 = vadd.f32 0.0, %v2439
  %2441 = vmatprep.mubr.bf16.mxu0 0
  %2442 = vmatmul.mubr.bf16.gmra.mxu0 %v235
  %v2443 = vpop.f32.mrf.mxu0
  %v2444 = vadd.f32 0.0, %v2443
  %v2445 = vpop.f32.mrf.mxu0
  %v2446 = vadd.f32 0.0, %v2445
  %v2447 = vpop.f32.mrf.mxu0
  %v2448 = vadd.f32 0.0, %v2447
  %v2449 = vpop.f32.mrf.mxu0
  %v2450 = vadd.f32 0.0, %v2449
  %2451 = vmatprep.mubr.bf16.mxu0 0
  %2452 = vmatmul.mubr.bf16.gmra.mxu0 %v238
  %v2453 = vpop.f32.mrf.mxu0
  %v2454 = vadd.f32 0.0, %v2453
  %v2455 = vpop.f32.mrf.mxu0
  %v2456 = vadd.f32 0.0, %v2455
  %v2457 = vpop.f32.mrf.mxu0
  %v2458 = vadd.f32 0.0, %v2457
  %v2459 = vpop.f32.mrf.mxu0
  %v2460 = vadd.f32 0.0, %v2459
  %2461 = vmatprep.mubr.bf16.mxu0 0
  %2462 = vmatmul.mubr.bf16.gmra.mxu0 %v241
  %v2463 = vpop.f32.mrf.mxu0
  %v2464 = vadd.f32 0.0, %v2463
  %v2465 = vpop.f32.mrf.mxu0
  %v2466 = vadd.f32 0.0, %v2465
  %v2467 = vpop.f32.mrf.mxu0
  %v2468 = vadd.f32 0.0, %v2467
  %v2469 = vpop.f32.mrf.mxu0
  %v2470 = vadd.f32 0.0, %v2469
  %2471 = vmatprep.mubr.bf16.mxu0 0
  %2472 = vmatmul.mubr.bf16.gmra.mxu0 %v244
  %v2473 = vpop.f32.mrf.mxu0
  %v2474 = vadd.f32 0.0, %v2473
  %v2475 = vpop.f32.mrf.mxu0
  %v2476 = vadd.f32 0.0, %v2475
  %v2477 = vpop.f32.mrf.mxu0
  %v2478 = vpop.f32.mrf.mxu0
  %2479 = vdwg.mxu0
  %2480 = vmatprep.subr.bf16.mxu0 0
  %2481 = vmatpush1.bf16.msra.mxu0 0
  %2482 = vmatprep.subr.bf16.mxu0 0
  %2483 = vmatpush1.bf16.msra.mxu0 0
  %2484 = vmatprep.subr.bf16.mxu0 0
  %2485 = vmatpush1.bf16.msra.mxu0 0
  %2486 = vmatprep.subr.bf16.mxu0 0
  %2487 = vmatpush1.bf16.msra.mxu0 0
  %2488 = vmatprep.subr.bf16.mxu0 0
  %2489 = vmatpush1.bf16.msra.mxu0 0
  %2490 = vmatprep.subr.bf16.mxu0 0
  %2491 = vmatpush1.bf16.msra.mxu0 0
  %2492 = vmatprep.subr.bf16.mxu0 %v2361
  %2493 = vmatpush1.bf16.msra.mxu0 %v2358
  %2494 = vmatprep.subr.bf16.mxu0 %v2306
  %2495 = vmatpush1.bf16.msra.mxu0 %v2305
  %2496 = vmatprep.subr.bf16.mxu0 0
  %2497 = vmatpush2.bf16.msra.mxu0 0
  %2498 = vmatprep.subr.bf16.mxu0 0
  %2499 = vmatpush2.bf16.msra.mxu0 0
  %2500 = vmatprep.subr.bf16.mxu0 0
  %2501 = vmatpush2.bf16.msra.mxu0 0
  %2502 = vmatprep.subr.bf16.mxu0 0
  %2503 = vmatpush2.bf16.msra.mxu0 0
  %2504 = vmatprep.subr.bf16.mxu0 0
  %2505 = vmatpush2.bf16.msra.mxu0 0
  %2506 = vmatprep.subr.bf16.mxu0 0
  %2507 = vmatpush2.bf16.msra.mxu0 0
  %2508 = vmatprep.subr.bf16.mxu0 0
  %2509 = vmatpush2.bf16.msra.mxu0 0
  %2510 = vmatprep.subr.bf16.mxu0 0
  %2511 = vmatpush2.bf16.msra.mxu0 0
  %2512 = vmatprep.mubr.bf16.mxu0 0
  %2513 = vmatmul.mubr.bf16.gmra.mxu0 %v232
  %v2514 = vpop.f32.mrf.mxu0
  %v2515 = vadd.f32 0.0, %v2514
  %v2516 = vpop.f32.mrf.mxu0
  %v2517 = vadd.f32 0.0, %v2516
  %v2518 = vpop.f32.mrf.mxu0
  %v2519 = vadd.f32 0.0, %v2518
  %v2520 = vpop.f32.mrf.mxu0
  %v2521 = vadd.f32 0.0, %v2520
  %2522 = vmatprep.mubr.bf16.mxu0 0
  %2523 = vmatmul.mubr.bf16.gmra.mxu0 %v235
  %v2524 = vpop.f32.mrf.mxu0
  %v2525 = vadd.f32 0.0, %v2524
  %v2526 = vpop.f32.mrf.mxu0
  %v2527 = vadd.f32 0.0, %v2526
  %v2528 = vpop.f32.mrf.mxu0
  %v2529 = vadd.f32 0.0, %v2528
  %v2530 = vpop.f32.mrf.mxu0
  %v2531 = vadd.f32 0.0, %v2530
  %2532 = vmatprep.mubr.bf16.mxu0 0
  %2533 = vmatmul.mubr.bf16.gmra.mxu0 %v238
  %v2534 = vpop.f32.mrf.mxu0
  %v2535 = vadd.f32 0.0, %v2534
  %v2536 = vpop.f32.mrf.mxu0
  %v2537 = vadd.f32 0.0, %v2536
  %v2538 = vpop.f32.mrf.mxu0
  %v2539 = vadd.f32 0.0, %v2538
  %v2540 = vpop.f32.mrf.mxu0
  %v2541 = vadd.f32 0.0, %v2540
  %2542 = vmatprep.mubr.bf16.mxu0 0
  %2543 = vmatmul.mubr.bf16.gmra.mxu0 %v241
  %v2544 = vpop.f32.mrf.mxu0
  %v2545 = vadd.f32 0.0, %v2544
  %v2546 = vpop.f32.mrf.mxu0
  %v2547 = vadd.f32 0.0, %v2546
  %v2548 = vpop.f32.mrf.mxu0
  %v2549 = vadd.f32 0.0, %v2548
  %v2550 = vpop.f32.mrf.mxu0
  %v2551 = vadd.f32 0.0, %v2550
  %2552 = vmatprep.mubr.bf16.mxu0 0
  %2553 = vmatmul.mubr.bf16.gmra.mxu0 %v244
  %v2554 = vpop.f32.mrf.mxu0
  %v2555 = vadd.f32 0.0, %v2554
  %v2556 = vpop.f32.mrf.mxu0
  %v2557 = vadd.f32 0.0, %v2556
  %v2558 = vpop.f32.mrf.mxu0
  %v2559 = vpop.f32.mrf.mxu0
  %2560 = vdwg.mxu0
  %2561 = vmatprep.subr.bf16.mxu0 0
  %2562 = vmatpush1.bf16.msra.mxu0 0
  %2563 = vmatprep.subr.bf16.mxu0 0
  %2564 = vmatpush1.bf16.msra.mxu0 0
  %2565 = vmatprep.subr.bf16.mxu0 0
  %2566 = vmatpush1.bf16.msra.mxu0 0
  %2567 = vmatprep.subr.bf16.mxu0 0
  %2568 = vmatpush1.bf16.msra.mxu0 0
  %2569 = vmatprep.subr.bf16.mxu0 0
  %2570 = vmatpush1.bf16.msra.mxu0 0
  %2571 = vmatprep.subr.bf16.mxu0 0
  %2572 = vmatpush1.bf16.msra.mxu0 0
  %2573 = vmatprep.subr.bf16.mxu0 %v2367
  %2574 = vmatpush1.bf16.msra.mxu0 %v2364
  %2575 = vmatprep.subr.bf16.mxu0 %v2308
  %2576 = vmatpush1.bf16.msra.mxu0 %v2307
  %2577 = vmatprep.subr.bf16.mxu0 0
  %2578 = vmatpush2.bf16.msra.mxu0 0
  %2579 = vmatprep.subr.bf16.mxu0 0
  %2580 = vmatpush2.bf16.msra.mxu0 0
  %2581 = vmatprep.subr.bf16.mxu0 0
  %2582 = vmatpush2.bf16.msra.mxu0 0
  %2583 = vmatprep.subr.bf16.mxu0 0
  %2584 = vmatpush2.bf16.msra.mxu0 0
  %2585 = vmatprep.subr.bf16.mxu0 0
  %2586 = vmatpush2.bf16.msra.mxu0 0
  %2587 = vmatprep.subr.bf16.mxu0 0
  %2588 = vmatpush2.bf16.msra.mxu0 0
  %2589 = vmatprep.subr.bf16.mxu0 0
  %2590 = vmatpush2.bf16.msra.mxu0 0
  %2591 = vmatprep.subr.bf16.mxu0 0
  %2592 = vmatpush2.bf16.msra.mxu0 0
  %2593 = vmatprep.mubr.bf16.mxu0 0
  %2594 = vmatmul.mubr.bf16.gmra.mxu0 %v232
  %v2595 = vpop.f32.mrf.mxu0
  %v2596 = vadd.f32 0.0, %v2595
  %v2597 = vpop.f32.mrf.mxu0
  %v2598 = vadd.f32 0.0, %v2597
  %v2599 = vpop.f32.mrf.mxu0
  %v2600 = vadd.f32 0.0, %v2599
  %v2601 = vpop.f32.mrf.mxu0
  %v2602 = vadd.f32 0.0, %v2601
  %2603 = vmatprep.mubr.bf16.mxu0 0
  %2604 = vmatmul.mubr.bf16.gmra.mxu0 %v235
  %v2605 = vpop.f32.mrf.mxu0
  %v2606 = vadd.f32 0.0, %v2605
  %v2607 = vpop.f32.mrf.mxu0
  %v2608 = vadd.f32 0.0, %v2607
  %v2609 = vpop.f32.mrf.mxu0
  %v2610 = vadd.f32 0.0, %v2609
  %v2611 = vpop.f32.mrf.mxu0
  %v2612 = vadd.f32 0.0, %v2611
  %2613 = vmatprep.mubr.bf16.mxu0 0
  %2614 = vmatmul.mubr.bf16.gmra.mxu0 %v238
  %v2615 = vpop.f32.mrf.mxu0
  %v2616 = vadd.f32 0.0, %v2615
  %v2617 = vpop.f32.mrf.mxu0
  %v2618 = vadd.f32 0.0, %v2617
  %v2619 = vpop.f32.mrf.mxu0
  %v2620 = vadd.f32 0.0, %v2619
  %v2621 = vpop.f32.mrf.mxu0
  %v2622 = vadd.f32 0.0, %v2621
  %2623 = vmatprep.mubr.bf16.mxu0 0
  %2624 = vmatmul.mubr.bf16.gmra.mxu0 %v241
  %v2625 = vpop.f32.mrf.mxu0
  %v2626 = vadd.f32 0.0, %v2625
  %v2627 = vpop.f32.mrf.mxu0
  %v2628 = vadd.f32 0.0, %v2627
  %v2629 = vpop.f32.mrf.mxu0
  %v2630 = vadd.f32 0.0, %v2629
  %v2631 = vpop.f32.mrf.mxu0
  %v2632 = vadd.f32 0.0, %v2631
  %2633 = vmatprep.mubr.bf16.mxu0 0
  %2634 = vmatmul.mubr.bf16.gmra.mxu0 %v244
  %v2635 = vpop.f32.mrf.mxu0
  %v2636 = vadd.f32 0.0, %v2635
  %v2637 = vpop.f32.mrf.mxu0
  %v2638 = vadd.f32 0.0, %v2637
  %v2639 = vpop.f32.mrf.mxu0
  %v2640 = vpop.f32.mrf.mxu0
  %2641 = vdwg.mxu0
  %2642 = vmatprep.subr.bf16.mxu0 0
  %2643 = vmatpush1.bf16.msra.mxu0 0
  %2644 = vmatprep.subr.bf16.mxu0 0
  %2645 = vmatpush1.bf16.msra.mxu0 0
  %2646 = vmatprep.subr.bf16.mxu0 0
  %2647 = vmatpush1.bf16.msra.mxu0 0
  %2648 = vmatprep.subr.bf16.mxu0 0
  %2649 = vmatpush1.bf16.msra.mxu0 0
  %2650 = vmatprep.subr.bf16.mxu0 0
  %2651 = vmatpush1.bf16.msra.mxu0 0
  %2652 = vmatprep.subr.bf16.mxu0 0
  %2653 = vmatpush1.bf16.msra.mxu0 0
  %2654 = vmatprep.subr.bf16.mxu0 %v2373
  %2655 = vmatpush1.bf16.msra.mxu0 %v2370
  %2656 = vmatprep.subr.bf16.mxu0 %v2310
  %2657 = vmatpush1.bf16.msra.mxu0 %v2309
  %2658 = vmatprep.subr.bf16.mxu0 0
  %2659 = vmatpush2.bf16.msra.mxu0 0
  %2660 = vmatprep.subr.bf16.mxu0 0
  %2661 = vmatpush2.bf16.msra.mxu0 0
  %2662 = vmatprep.subr.bf16.mxu0 0
  %2663 = vmatpush2.bf16.msra.mxu0 0
  %2664 = vmatprep.subr.bf16.mxu0 0
  %2665 = vmatpush2.bf16.msra.mxu0 0
  %2666 = vmatprep.subr.bf16.mxu0 0
  %2667 = vmatpush2.bf16.msra.mxu0 0
  %2668 = vmatprep.subr.bf16.mxu0 0
  %2669 = vmatpush2.bf16.msra.mxu0 0
  %2670 = vmatprep.subr.bf16.mxu0 0
  %2671 = vmatpush2.bf16.msra.mxu0 0
  %2672 = vmatprep.subr.bf16.mxu0 0
  %2673 = vmatpush2.bf16.msra.mxu0 0
  %2674 = vmatprep.mubr.bf16.mxu0 0
  %2675 = vmatmul.mubr.bf16.gmra.mxu0 %v232
  %v2676 = vpop.f32.mrf.mxu0
  %v2677 = vadd.f32 0.0, %v2676
  %v2678 = vpop.f32.mrf.mxu0
  %v2679 = vadd.f32 0.0, %v2678
  %v2680 = vpop.f32.mrf.mxu0
  %v2681 = vadd.f32 0.0, %v2680
  %v2682 = vpop.f32.mrf.mxu0
  %v2683 = vadd.f32 0.0, %v2682
  %2684 = vmatprep.mubr.bf16.mxu0 0
  %2685 = vmatmul.mubr.bf16.gmra.mxu0 %v235
  %v2686 = vpop.f32.mrf.mxu0
  %v2687 = vadd.f32 0.0, %v2686
  %v2688 = vpop.f32.mrf.mxu0
  %v2689 = vadd.f32 0.0, %v2688
  %v2690 = vpop.f32.mrf.mxu0
  %v2691 = vadd.f32 0.0, %v2690
  %v2692 = vpop.f32.mrf.mxu0
  %v2693 = vadd.f32 0.0, %v2692
  %2694 = vmatprep.mubr.bf16.mxu0 0
  %2695 = vmatmul.mubr.bf16.gmra.mxu0 %v238
  %v2696 = vpop.f32.mrf.mxu0
  %v2697 = vadd.f32 0.0, %v2696
  %v2698 = vpop.f32.mrf.mxu0
  %v2699 = vadd.f32 0.0, %v2698
  %v2700 = vpop.f32.mrf.mxu0
  %v2701 = vadd.f32 0.0, %v2700
  %v2702 = vpop.f32.mrf.mxu0
  %v2703 = vadd.f32 0.0, %v2702
  %2704 = vmatprep.mubr.bf16.mxu0 0
  %2705 = vmatmul.mubr.bf16.gmra.mxu0 %v241
  %v2706 = vpop.f32.mrf.mxu0
  %v2707 = vadd.f32 0.0, %v2706
  %v2708 = vpop.f32.mrf.mxu0
  %v2709 = vadd.f32 0.0, %v2708
  %v2710 = vpop.f32.mrf.mxu0
  %v2711 = vadd.f32 0.0, %v2710
  %v2712 = vpop.f32.mrf.mxu0
  %v2713 = vadd.f32 0.0, %v2712
  %2714 = vmatprep.mubr.bf16.mxu0 0
  %2715 = vmatmul.mubr.bf16.gmra.mxu0 %v244
  %v2716 = vpop.f32.mrf.mxu0
  %v2717 = vadd.f32 0.0, %v2716
  %v2718 = vpop.f32.mrf.mxu0
  %v2719 = vadd.f32 0.0, %v2718
  %v2720 = vpop.f32.mrf.mxu0
  %v2721 = vpop.f32.mrf.mxu0
  %2722 = vdwg.mxu0
  %2723 = vmatprep.subr.bf16.mxu0 0
  %2724 = vmatpush1.bf16.msra.mxu0 0
  %2725 = vmatprep.subr.bf16.mxu0 0
  %2726 = vmatpush1.bf16.msra.mxu0 0
  %2727 = vmatprep.subr.bf16.mxu0 0
  %2728 = vmatpush1.bf16.msra.mxu0 0
  %2729 = vmatprep.subr.bf16.mxu0 0
  %2730 = vmatpush1.bf16.msra.mxu0 0
  %2731 = vmatprep.subr.bf16.mxu0 0
  %2732 = vmatpush1.bf16.msra.mxu0 0
  %2733 = vmatprep.subr.bf16.mxu0 0
  %2734 = vmatpush1.bf16.msra.mxu0 0
  %2735 = vmatprep.subr.bf16.mxu0 %v2379
  %2736 = vmatpush1.bf16.msra.mxu0 %v2376
  %2737 = vmatprep.subr.bf16.mxu0 %v2312
  %2738 = vmatpush1.bf16.msra.mxu0 %v2311
  %2739 = vmatprep.subr.bf16.mxu0 0
  %2740 = vmatpush2.bf16.msra.mxu0 0
  %2741 = vmatprep.subr.bf16.mxu0 0
  %2742 = vmatpush2.bf16.msra.mxu0 0
  %2743 = vmatprep.subr.bf16.mxu0 0
  %2744 = vmatpush2.bf16.msra.mxu0 0
  %2745 = vmatprep.subr.bf16.mxu0 0
  %2746 = vmatpush2.bf16.msra.mxu0 0
  %2747 = vmatprep.subr.bf16.mxu0 0
  %2748 = vmatpush2.bf16.msra.mxu0 0
  %2749 = vmatprep.subr.bf16.mxu0 0
  %2750 = vmatpush2.bf16.msra.mxu0 0
  %2751 = vmatprep.subr.bf16.mxu0 0
  %2752 = vmatpush2.bf16.msra.mxu0 0
  %2753 = vmatprep.subr.bf16.mxu0 0
  %2754 = vmatpush2.bf16.msra.mxu0 0
  %2755 = vmatprep.mubr.bf16.mxu0 0
  %2756 = vmatmul.mubr.bf16.gmra.mxu0 %v232
  %v2757 = vpop.f32.mrf.mxu0
  %v2758 = vadd.f32 0.0, %v2757
  %v2759 = vpop.f32.mrf.mxu0
  %v2760 = vadd.f32 0.0, %v2759
  %v2761 = vpop.f32.mrf.mxu0
  %v2762 = vadd.f32 0.0, %v2761
  %v2763 = vpop.f32.mrf.mxu0
  %v2764 = vadd.f32 0.0, %v2763
  %2765 = vmatprep.mubr.bf16.mxu0 0
  %2766 = vmatmul.mubr.bf16.gmra.mxu0 %v235
  %v2767 = vpop.f32.mrf.mxu0
  %v2768 = vadd.f32 0.0, %v2767
  %v2769 = vpop.f32.mrf.mxu0
  %v2770 = vadd.f32 0.0, %v2769
  %v2771 = vpop.f32.mrf.mxu0
  %v2772 = vadd.f32 0.0, %v2771
  %v2773 = vpop.f32.mrf.mxu0
  %v2774 = vadd.f32 0.0, %v2773
  %2775 = vmatprep.mubr.bf16.mxu0 0
  %2776 = vmatmul.mubr.bf16.gmra.mxu0 %v238
  %v2777 = vpop.f32.mrf.mxu0
  %v2778 = vadd.f32 0.0, %v2777
  %v2779 = vpop.f32.mrf.mxu0
  %v2780 = vadd.f32 0.0, %v2779
  %v2781 = vpop.f32.mrf.mxu0
  %v2782 = vadd.f32 0.0, %v2781
  %v2783 = vpop.f32.mrf.mxu0
  %v2784 = vadd.f32 0.0, %v2783
  %2785 = vmatprep.mubr.bf16.mxu0 0
  %2786 = vmatmul.mubr.bf16.gmra.mxu0 %v241
  %v2787 = vpop.f32.mrf.mxu0
  %v2788 = vadd.f32 0.0, %v2787
  %v2789 = vpop.f32.mrf.mxu0
  %v2790 = vadd.f32 0.0, %v2789
  %v2791 = vpop.f32.mrf.mxu0
  %v2792 = vadd.f32 0.0, %v2791
  %v2793 = vpop.f32.mrf.mxu0
  %v2794 = vadd.f32 0.0, %v2793
  %2795 = vmatprep.mubr.bf16.mxu0 0
  %2796 = vmatmul.mubr.bf16.gmra.mxu0 %v244
  %v2797 = vpop.f32.mrf.mxu0
  %v2798 = vadd.f32 0.0, %v2797
  %v2799 = vpop.f32.mrf.mxu0
  %v2800 = vadd.f32 0.0, %v2799
  %v2801 = vpop.f32.mrf.mxu0
  %v2802 = vpop.f32.mrf.mxu0
  %2803 = vdwg.mxu0
  %2804 = vmatprep.subr.bf16.mxu0 0
  %2805 = vmatpush1.bf16.msra.mxu0 0
  %2806 = vmatprep.subr.bf16.mxu0 0
  %2807 = vmatpush1.bf16.msra.mxu0 0
  %2808 = vmatprep.subr.bf16.mxu0 0
  %2809 = vmatpush1.bf16.msra.mxu0 0
  %2810 = vmatprep.subr.bf16.mxu0 0
  %2811 = vmatpush1.bf16.msra.mxu0 0
  %2812 = vmatprep.subr.bf16.mxu0 0
  %2813 = vmatpush1.bf16.msra.mxu0 0
  %2814 = vmatprep.subr.bf16.mxu0 0
  %2815 = vmatpush1.bf16.msra.mxu0 0
  %2816 = vmatprep.subr.bf16.mxu0 %v2385
  %2817 = vmatpush1.bf16.msra.mxu0 %v2382
  %2818 = vmatprep.subr.bf16.mxu0 %v2314
  %2819 = vmatpush1.bf16.msra.mxu0 %v2313
  %2820 = vmatprep.subr.bf16.mxu0 0
  %2821 = vmatpush2.bf16.msra.mxu0 0
  %2822 = vmatprep.subr.bf16.mxu0 0
  %2823 = vmatpush2.bf16.msra.mxu0 0
  %2824 = vmatprep.subr.bf16.mxu0 0
  %2825 = vmatpush2.bf16.msra.mxu0 0
  %2826 = vmatprep.subr.bf16.mxu0 0
  %2827 = vmatpush2.bf16.msra.mxu0 0
  %2828 = vmatprep.subr.bf16.mxu0 0
  %2829 = vmatpush2.bf16.msra.mxu0 0
  %2830 = vmatprep.subr.bf16.mxu0 0
  %2831 = vmatpush2.bf16.msra.mxu0 0
  %2832 = vmatprep.subr.bf16.mxu0 0
  %2833 = vmatpush2.bf16.msra.mxu0 0
  %2834 = vmatprep.subr.bf16.mxu0 0
  %2835 = vmatpush2.bf16.msra.mxu0 0
  %2836 = vmatprep.mubr.bf16.mxu0 0
  %2837 = vmatmul.mubr.bf16.gmra.mxu0 %v232
  %v2838 = vpop.f32.mrf.mxu0
  %v2839 = vadd.f32 0.0, %v2838
  %v2840 = vpop.f32.mrf.mxu0
  %v2841 = vadd.f32 0.0, %v2840
  %v2842 = vpop.f32.mrf.mxu0
  %v2843 = vadd.f32 0.0, %v2842
  %v2844 = vpop.f32.mrf.mxu0
  %v2845 = vadd.f32 0.0, %v2844
  %2846 = vmatprep.mubr.bf16.mxu0 0
  %2847 = vmatmul.mubr.bf16.gmra.mxu0 %v235
  %v2848 = vpop.f32.mrf.mxu0
  %v2849 = vadd.f32 0.0, %v2848
  %v2850 = vpop.f32.mrf.mxu0
  %v2851 = vadd.f32 0.0, %v2850
  %v2852 = vpop.f32.mrf.mxu0
  %v2853 = vadd.f32 0.0, %v2852
  %v2854 = vpop.f32.mrf.mxu0
  %v2855 = vadd.f32 0.0, %v2854
  %2856 = vmatprep.mubr.bf16.mxu0 0
  %2857 = vmatmul.mubr.bf16.gmra.mxu0 %v238
  %v2858 = vpop.f32.mrf.mxu0
  %v2859 = vadd.f32 0.0, %v2858
  %v2860 = vpop.f32.mrf.mxu0
  %v2861 = vadd.f32 0.0, %v2860
  %v2862 = vpop.f32.mrf.mxu0
  %v2863 = vadd.f32 0.0, %v2862
  %v2864 = vpop.f32.mrf.mxu0
  %v2865 = vadd.f32 0.0, %v2864
  %2866 = vmatprep.mubr.bf16.mxu0 0
  %2867 = vmatmul.mubr.bf16.gmra.mxu0 %v241
  %v2868 = vpop.f32.mrf.mxu0
  %v2869 = vadd.f32 0.0, %v2868
  %v2870 = vpop.f32.mrf.mxu0
  %v2871 = vadd.f32 0.0, %v2870
  %v2872 = vpop.f32.mrf.mxu0
  %v2873 = vadd.f32 0.0, %v2872
  %v2874 = vpop.f32.mrf.mxu0
  %v2875 = vadd.f32 0.0, %v2874
  %2876 = vmatprep.mubr.bf16.mxu0 0
  %2877 = vmatmul.mubr.bf16.gmra.mxu0 %v244
  %v2878 = vpop.f32.mrf.mxu0
  %v2879 = vadd.f32 0.0, %v2878
  %v2880 = vpop.f32.mrf.mxu0
  %v2881 = vadd.f32 0.0, %v2880
  %v2882 = vpop.f32.mrf.mxu0
  %v2883 = vpop.f32.mrf.mxu0
  %2884 = vdwg.mxu0
  %2885 = vmatprep.subr.bf16.mxu0 0
  %2886 = vmatpush1.bf16.msra.mxu0 0
  %2887 = vmatprep.subr.bf16.mxu0 0
  %2888 = vmatpush1.bf16.msra.mxu0 0
  %2889 = vmatprep.subr.bf16.mxu0 0
  %2890 = vmatpush1.bf16.msra.mxu0 0
  %2891 = vmatprep.subr.bf16.mxu0 0
  %2892 = vmatpush1.bf16.msra.mxu0 0
  %2893 = vmatprep.subr.bf16.mxu0 0
  %2894 = vmatpush1.bf16.msra.mxu0 0
  %2895 = vmatprep.subr.bf16.mxu0 0
  %2896 = vmatpush1.bf16.msra.mxu0 0
  %2897 = vmatprep.subr.bf16.mxu0 %v2391
  %2898 = vmatpush1.bf16.msra.mxu0 %v2388
  %2899 = vmatprep.subr.bf16.mxu0 %v2316
  %2900 = vmatpush1.bf16.msra.mxu0 %v2315
  %2901 = vmatprep.subr.bf16.mxu0 0
  %2902 = vmatpush2.bf16.msra.mxu0 0
  %2903 = vmatprep.subr.bf16.mxu0 0
  %2904 = vmatpush2.bf16.msra.mxu0 0
  %2905 = vmatprep.subr.bf16.mxu0 0
  %2906 = vmatpush2.bf16.msra.mxu0 0
  %2907 = vmatprep.subr.bf16.mxu0 0
  %2908 = vmatpush2.bf16.msra.mxu0 0
  %2909 = vmatprep.subr.bf16.mxu0 0
  %2910 = vmatpush2.bf16.msra.mxu0 0
  %2911 = vmatprep.subr.bf16.mxu0 0
  %2912 = vmatpush2.bf16.msra.mxu0 0
  %2913 = vmatprep.subr.bf16.mxu0 0
  %2914 = vmatpush2.bf16.msra.mxu0 0
  %2915 = vmatprep.subr.bf16.mxu0 0
  %2916 = vmatpush2.bf16.msra.mxu0 0
  %2917 = vmatprep.mubr.bf16.mxu0 0
  %2918 = vmatmul.mubr.bf16.gmra.mxu0 %v232
  %v2919 = vpop.f32.mrf.mxu0
  %v2920 = vadd.f32 0.0, %v2919
  %v2921 = vpop.f32.mrf.mxu0
  %v2922 = vadd.f32 0.0, %v2921
  %v2923 = vpop.f32.mrf.mxu0
  %v2924 = vadd.f32 0.0, %v2923
  %v2925 = vpop.f32.mrf.mxu0
  %v2926 = vadd.f32 0.0, %v2925
  %2927 = vmatprep.mubr.bf16.mxu0 0
  %2928 = vmatmul.mubr.bf16.gmra.mxu0 %v235
  %v2929 = vpop.f32.mrf.mxu0
  %v2930 = vadd.f32 0.0, %v2929
  %v2931 = vpop.f32.mrf.mxu0
  %v2932 = vadd.f32 0.0, %v2931
  %v2933 = vpop.f32.mrf.mxu0
  %v2934 = vadd.f32 0.0, %v2933
  %v2935 = vpop.f32.mrf.mxu0
  %v2936 = vadd.f32 0.0, %v2935
  %2937 = vmatprep.mubr.bf16.mxu0 0
  %2938 = vmatmul.mubr.bf16.gmra.mxu0 %v238
  %v2939 = vpop.f32.mrf.mxu0
  %v2940 = vadd.f32 0.0, %v2939
  %v2941 = vpop.f32.mrf.mxu0
  %v2942 = vadd.f32 0.0, %v2941
  %v2943 = vpop.f32.mrf.mxu0
  %v2944 = vadd.f32 0.0, %v2943
  %v2945 = vpop.f32.mrf.mxu0
  %v2946 = vadd.f32 0.0, %v2945
  %2947 = vmatprep.mubr.bf16.mxu0 0
  %2948 = vmatmul.mubr.bf16.gmra.mxu0 %v241
  %v2949 = vpop.f32.mrf.mxu0
  %v2950 = vadd.f32 0.0, %v2949
  %v2951 = vpop.f32.mrf.mxu0
  %v2952 = vadd.f32 0.0, %v2951
  %v2953 = vpop.f32.mrf.mxu0
  %v2954 = vadd.f32 0.0, %v2953
  %v2955 = vpop.f32.mrf.mxu0
  %v2956 = vadd.f32 0.0, %v2955
  %2957 = vmatprep.mubr.bf16.mxu0 0
  %2958 = vmatmul.mubr.bf16.gmra.mxu0 %v244
  %v2959 = vpop.f32.mrf.mxu0
  %v2960 = vadd.f32 0.0, %v2959
  %v2961 = vpop.f32.mrf.mxu0
  %v2962 = vadd.f32 0.0, %v2961
  %v2963 = vpop.f32.mrf.mxu0
  %v2964 = vpop.f32.mrf.mxu0
  %2965 = vdwg.mxu0
  %2966 = vmatprep.subr.bf16.mxu0 0
  %2967 = vmatpush1.bf16.msra.mxu0 0
  %2968 = vmatprep.subr.bf16.mxu0 0
  %2969 = vmatpush1.bf16.msra.mxu0 0
  %2970 = vmatprep.subr.bf16.mxu0 0
  %2971 = vmatpush1.bf16.msra.mxu0 0
  %2972 = vmatprep.subr.bf16.mxu0 0
  %2973 = vmatpush1.bf16.msra.mxu0 0
  %2974 = vmatprep.subr.bf16.mxu0 0
  %2975 = vmatpush1.bf16.msra.mxu0 0
  %2976 = vmatprep.subr.bf16.mxu0 0
  %2977 = vmatpush1.bf16.msra.mxu0 0
  %2978 = vmatprep.subr.bf16.mxu0 %v2397
  %2979 = vmatpush1.bf16.msra.mxu0 %v2394
  %2980 = vmatprep.subr.bf16.mxu0 %v2318
  %2981 = vmatpush1.bf16.msra.mxu0 %v2317
  %2982 = vmatprep.subr.bf16.mxu0 0
  %2983 = vmatpush2.bf16.msra.mxu0 0
  %2984 = vmatprep.subr.bf16.mxu0 0
  %2985 = vmatpush2.bf16.msra.mxu0 0
  %2986 = vmatprep.subr.bf16.mxu0 0
  %2987 = vmatpush2.bf16.msra.mxu0 0
  %2988 = vmatprep.subr.bf16.mxu0 0
  %2989 = vmatpush2.bf16.msra.mxu0 0
  %2990 = vmatprep.subr.bf16.mxu0 0
  %2991 = vmatpush2.bf16.msra.mxu0 0
  %2992 = vmatprep.subr.bf16.mxu0 0
  %2993 = vmatpush2.bf16.msra.mxu0 0
  %2994 = vmatprep.subr.bf16.mxu0 0
  %2995 = vmatpush2.bf16.msra.mxu0 0
  %2996 = vmatprep.subr.bf16.mxu0 0
  %2997 = vmatpush2.bf16.msra.mxu0 0
  %2998 = vmatprep.mubr.bf16.mxu0 0
  %2999 = vmatmul.mubr.bf16.gmra.mxu0 %v232
  %v3000 = vpop.f32.mrf.mxu0
  %v3001 = vadd.f32 0.0, %v3000
  %v3002 = vpop.f32.mrf.mxu0
  %v3003 = vadd.f32 0.0, %v3002
  %v3004 = vpop.f32.mrf.mxu0
  %v3005 = vadd.f32 0.0, %v3004
  %v3006 = vpop.f32.mrf.mxu0
  %v3007 = vadd.f32 0.0, %v3006
  %3008 = vmatprep.mubr.bf16.mxu0 0
  %3009 = vmatmul.mubr.bf16.gmra.mxu0 %v235
  %v3010 = vpop.f32.mrf.mxu0
  %v3011 = vadd.f32 0.0, %v3010
  %v3012 = vpop.f32.mrf.mxu0
  %v3013 = vadd.f32 0.0, %v3012
  %v3014 = vpop.f32.mrf.mxu0
  %v3015 = vadd.f32 0.0, %v3014
  %v3016 = vpop.f32.mrf.mxu0
  %v3017 = vadd.f32 0.0, %v3016
  %3018 = vmatprep.mubr.bf16.mxu0 0
  %3019 = vmatmul.mubr.bf16.gmra.mxu0 %v238
  %v3020 = vpop.f32.mrf.mxu0
  %v3021 = vadd.f32 0.0, %v3020
  %v3022 = vpop.f32.mrf.mxu0
  %v3023 = vadd.f32 0.0, %v3022
  %v3024 = vpop.f32.mrf.mxu0
  %v3025 = vadd.f32 0.0, %v3024
  %v3026 = vpop.f32.mrf.mxu0
  %v3027 = vadd.f32 0.0, %v3026
  %3028 = vmatprep.mubr.bf16.mxu0 0
  %3029 = vmatmul.mubr.bf16.gmra.mxu0 %v241
  %v3030 = vpop.f32.mrf.mxu0
  %v3031 = vadd.f32 0.0, %v3030
  %v3032 = vpop.f32.mrf.mxu0
  %v3033 = vadd.f32 0.0, %v3032
  %v3034 = vpop.f32.mrf.mxu0
  %v3035 = vadd.f32 0.0, %v3034
  %v3036 = vpop.f32.mrf.mxu0
  %v3037 = vadd.f32 0.0, %v3036
  %3038 = vmatprep.mubr.bf16.mxu0 0
  %3039 = vmatmul.mubr.bf16.gmra.mxu0 %v244
  %v3040 = vpop.f32.mrf.mxu0
  %v3041 = vadd.f32 0.0, %v3040
  %v3042 = vpop.f32.mrf.mxu0
  %v3043 = vadd.f32 0.0, %v3042
  %v3044 = vpop.f32.mrf.mxu0
  %v3045 = vpop.f32.mrf.mxu0
  %3046 = vdwg.mxu0
  %v3047 = vmax.f32 %v2434, %v2438
  %v3048 = vmax.f32 %v3047, %v2444
  %v3049 = vmax.f32 %v3048, %v2448
  %v3050 = vmax.f32 %v3049, %v2454
  %v3051 = vmax.f32 %v3050, %v2458
  %v3052 = vmax.f32 %v3051, %v2464
  %v3053 = vmax.f32 %v3052, %v2468
  %v3054 = vmax.f32 %v3053, %v2474
  %v3055 = vmax.f32 %v2436, %v2440
  %v3056 = vmax.f32 %v3055, %v2446
  %v3057 = vmax.f32 %v3056, %v2450
  %v3058 = vmax.f32 %v3057, %v2456
  %v3059 = vmax.f32 %v3058, %v2460
  %v3060 = vmax.f32 %v3059, %v2466
  %v3061 = vmax.f32 %v3060, %v2470
  %v3062 = vmax.f32 %v3061, %v2476
  %v3063 = vmax.f32 %v2515, %v2519
  %v3064 = vmax.f32 %v3063, %v2525
  %v3065 = vmax.f32 %v3064, %v2529
  %v3066 = vmax.f32 %v3065, %v2535
  %v3067 = vmax.f32 %v3066, %v2539
  %v3068 = vmax.f32 %v3067, %v2545
  %v3069 = vmax.f32 %v3068, %v2549
  %v3070 = vmax.f32 %v3069, %v2555
  %v3071 = vmax.f32 %v2517, %v2521
  %v3072 = vmax.f32 %v3071, %v2527
  %v3073 = vmax.f32 %v3072, %v2531
  %v3074 = vmax.f32 %v3073, %v2537
  %v3075 = vmax.f32 %v3074, %v2541
  %v3076 = vmax.f32 %v3075, %v2547
  %v3077 = vmax.f32 %v3076, %v2551
  %v3078 = vmax.f32 %v3077, %v2557
  %v3079 = vmax.f32 %v2596, %v2600
  %v3080 = vmax.f32 %v3079, %v2606
  %v3081 = vmax.f32 %v3080, %v2610
  %v3082 = vmax.f32 %v3081, %v2616
  %v3083 = vmax.f32 %v3082, %v2620
  %v3084 = vmax.f32 %v3083, %v2626
  %v3085 = vmax.f32 %v3084, %v2630
  %v3086 = vmax.f32 %v3085, %v2636
  %v3087 = vmax.f32 %v2598, %v2602
  %v3088 = vmax.f32 %v3087, %v2608
  %v3089 = vmax.f32 %v3088, %v2612
  %v3090 = vmax.f32 %v3089, %v2618
  %v3091 = vmax.f32 %v3090, %v2622
  %v3092 = vmax.f32 %v3091, %v2628
  %v3093 = vmax.f32 %v3092, %v2632
  %v3094 = vmax.f32 %v3093, %v2638
  %v3095 = vmax.f32 %v2677, %v2681
  %v3096 = vmax.f32 %v3095, %v2687
  %v3097 = vmax.f32 %v3096, %v2691
  %v3098 = vmax.f32 %v3097, %v2697
  %v3099 = vmax.f32 %v3098, %v2701
  %v3100 = vmax.f32 %v3099, %v2707
  %v3101 = vmax.f32 %v3100, %v2711
  %v3102 = vmax.f32 %v3101, %v2717
  %v3103 = vmax.f32 %v2679, %v2683
  %v3104 = vmax.f32 %v3103, %v2689
  %v3105 = vmax.f32 %v3104, %v2693
  %v3106 = vmax.f32 %v3105, %v2699
  %v3107 = vmax.f32 %v3106, %v2703
  %v3108 = vmax.f32 %v3107, %v2709
  %v3109 = vmax.f32 %v3108, %v2713
  %v3110 = vmax.f32 %v3109, %v2719
  %v3111 = vmax.f32 %v2758, %v2762
  %v3112 = vmax.f32 %v3111, %v2768
  %v3113 = vmax.f32 %v3112, %v2772
  %v3114 = vmax.f32 %v3113, %v2778
  %v3115 = vmax.f32 %v3114, %v2782
  %v3116 = vmax.f32 %v3115, %v2788
  %v3117 = vmax.f32 %v3116, %v2792
  %v3118 = vmax.f32 %v3117, %v2798
  %v3119 = vmax.f32 %v2760, %v2764
  %v3120 = vmax.f32 %v3119, %v2770
  %v3121 = vmax.f32 %v3120, %v2774
  %v3122 = vmax.f32 %v3121, %v2780
  %v3123 = vmax.f32 %v3122, %v2784
  %v3124 = vmax.f32 %v3123, %v2790
  %v3125 = vmax.f32 %v3124, %v2794
  %v3126 = vmax.f32 %v3125, %v2800
  %v3127 = vmax.f32 %v2839, %v2843
  %v3128 = vmax.f32 %v3127, %v2849
  %v3129 = vmax.f32 %v3128, %v2853
  %v3130 = vmax.f32 %v3129, %v2859
  %v3131 = vmax.f32 %v3130, %v2863
  %v3132 = vmax.f32 %v3131, %v2869
  %v3133 = vmax.f32 %v3132, %v2873
  %v3134 = vmax.f32 %v3133, %v2879
  %v3135 = vmax.f32 %v2841, %v2845
  %v3136 = vmax.f32 %v3135, %v2851
  %v3137 = vmax.f32 %v3136, %v2855
  %v3138 = vmax.f32 %v3137, %v2861
  %v3139 = vmax.f32 %v3138, %v2865
  %v3140 = vmax.f32 %v3139, %v2871
  %v3141 = vmax.f32 %v3140, %v2875
  %v3142 = vmax.f32 %v3141, %v2881
  %v3143 = vmax.f32 %v2920, %v2924
  %v3144 = vmax.f32 %v3143, %v2930
  %v3145 = vmax.f32 %v3144, %v2934
  %v3146 = vmax.f32 %v3145, %v2940
  %v3147 = vmax.f32 %v3146, %v2944
  %v3148 = vmax.f32 %v3147, %v2950
  %v3149 = vmax.f32 %v3148, %v2954
  %v3150 = vmax.f32 %v3149, %v2960
  %v3151 = vmax.f32 %v2922, %v2926
  %v3152 = vmax.f32 %v3151, %v2932
  %v3153 = vmax.f32 %v3152, %v2936
  %v3154 = vmax.f32 %v3153, %v2942
  %v3155 = vmax.f32 %v3154, %v2946
  %v3156 = vmax.f32 %v3155, %v2952
  %v3157 = vmax.f32 %v3156, %v2956
  %v3158 = vmax.f32 %v3157, %v2962
  %v3159 = vmax.f32 %v3001, %v3005
  %v3160 = vmax.f32 %v3159, %v3011
  %v3161 = vmax.f32 %v3160, %v3015
  %v3162 = vmax.f32 %v3161, %v3021
  %v3163 = vmax.f32 %v3162, %v3025
  %v3164 = vmax.f32 %v3163, %v3031
  %v3165 = vmax.f32 %v3164, %v3035
  %v3166 = vmax.f32 %v3165, %v3041
  %v3167 = vmax.f32 %v3003, %v3007
  %v3168 = vmax.f32 %v3167, %v3013
  %v3169 = vmax.f32 %v3168, %v3017
  %v3170 = vmax.f32 %v3169, %v3023
  %v3171 = vmax.f32 %v3170, %v3027
  %v3172 = vmax.f32 %v3171, %v3033
  %v3173 = vmax.f32 %v3172, %v3037
  %v3174 = vmax.f32 %v3173, %v3043
  %v3175 = vadd.f32 %v3054, %v1077
  %v3176 = vadd.f32 %v3062, %v1077
  %v3177 = vadd.f32 %v3070, %v1077
  %v3178 = vadd.f32 %v3078, %v1077
  %v3179 = vadd.f32 %v3086, %v1077
  %v3180 = vadd.f32 %v3094, %v1077
  %v3181 = vadd.f32 %v3102, %v1077
  %v3182 = vadd.f32 %v3110, %v1077
  %v3183 = vadd.f32 %v3118, %v1077
  %v3184 = vadd.f32 %v3126, %v1077
  %v3185 = vadd.f32 %v3134, %v1077
  %v3186 = vadd.f32 %v3142, %v1077
  %v3187 = vadd.f32 %v3150, %v1077
  %v3188 = vadd.f32 %v3158, %v1077
  %v3189 = vadd.f32 %v3166, %v1077
  %v3190 = vadd.f32 %v3174, %v1077
  %v3191 = vmax.f32 %v3175, 0.0
  %v3192 = vmax.f32 %v3176, 0.0
  %v3193 = vmax.f32 %v3177, 0.0
  %v3194 = vmax.f32 %v3178, 0.0
  %v3195 = vmax.f32 %v3179, 0.0
  %v3196 = vmax.f32 %v3180, 0.0
  %v3197 = vmax.f32 %v3181, 0.0
  %v3198 = vmax.f32 %v3182, 0.0
  %v3199 = vmax.f32 %v3183, 0.0
  %v3200 = vmax.f32 %v3184, 0.0
  %v3201 = vmax.f32 %v3185, 0.0
  %v3202 = vmax.f32 %v3186, 0.0
  %v3203 = vmax.f32 %v3187, 0.0
  %v3204 = vmax.f32 %v3188, 0.0
  %v3205 = vmax.f32 %v3189, 0.0
  %v3206 = vmax.f32 %v3190, 0.0
  %3207 = vst [vmem:[#allocation2 + $0x100] sm:$0xff] %v3191
  %3208 = vst [vmem:[#allocation2 + $0x108] sm:$0xff] %v3192
  %3209 = vst [vmem:[#allocation2 + $0x110] sm:$0xff] %v3193
  %3210 = vst [vmem:[#allocation2 + $0x118] sm:$0xff] %v3194
  %3211 = vst [vmem:[#allocation2 + $0x120] sm:$0xff] %v3195
  %3212 = vst [vmem:[#allocation2 + $0x128] sm:$0xff] %v3196
  %3213 = vst [vmem:[#allocation2 + $0x130] sm:$0xff] %v3197
  %3214 = vst [vmem:[#allocation2 + $0x138] sm:$0xff] %v3198
  %3215 = vst [vmem:[#allocation2 + $0x140] sm:$0xff] %v3199
  %3216 = vst [vmem:[#allocation2 + $0x148] sm:$0xff] %v3200
  %3217 = vst [vmem:[#allocation2 + $0x150] sm:$0xff] %v3201
  %3218 = vst [vmem:[#allocation2 + $0x158] sm:$0xff] %v3202
  %3219 = vst [vmem:[#allocation2 + $0x160] sm:$0xff] %v3203
  %3220 = vst [vmem:[#allocation2 + $0x168] sm:$0xff] %v3204
  %3221 = vst [vmem:[#allocation2 + $0x170] sm:$0xff] %v3205
  %3222 = vst [vmem:[#allocation2 + $0x178] sm:$0xff] %v3206
  %v3223 = vld [vmem:[%s0 + $0xc0] sm:$0xff]
  %v3224 = vld [vmem:[%s0 + $0xc8] sm:$0xff]
  %v3225 = vld [vmem:[%s0 + $0xd0] sm:$0xff]
  %v3226 = vld [vmem:[%s0 + $0xd8] sm:$0xff]
  %v3227 = vld [vmem:[%s0 + $0xe0] sm:$0xff]
  %v3228 = vld [vmem:[%s0 + $0xe8] sm:$0xff]
  %v3229 = vld [vmem:[%s0 + $0xf0] sm:$0xff]
  %v3230 = vld [vmem:[%s0 + $0xf8] sm:$0xff]
  %v3231 = vld [vmem:[%s0 + $0x1c0] sm:$0xff]
  %v3232 = vld [vmem:[%s0 + $0x1c8] sm:$0xff]
  %v3233 = vld [vmem:[%s0 + $0x1d0] sm:$0xff]
  %v3234 = vld [vmem:[%s0 + $0x1d8] sm:$0xff]
  %v3235 = vld [vmem:[%s0 + $0x1e0] sm:$0xff]
  %v3236 = vld [vmem:[%s0 + $0x1e8] sm:$0xff]
  %v3237 = vld [vmem:[%s0 + $0x1f0] sm:$0xff]
  %v3238 = vld [vmem:[%s0 + $0x1f8] sm:$0xff]
  %v3239 = vld [vmem:[%s0 + $0x2c0] sm:$0xff]
  %v3240 = vld [vmem:[%s0 + $0x2c8] sm:$0xff]
  %v3241 = vld [vmem:[%s0 + $0x2d0] sm:$0xff]
  %v3242 = vld [vmem:[%s0 + $0x2d8] sm:$0xff]
  %v3243 = vld [vmem:[%s0 + $0x2e0] sm:$0xff]
  %v3244 = vld [vmem:[%s0 + $0x2e8] sm:$0xff]
  %v3245 = vld [vmem:[%s0 + $0x2f0] sm:$0xff]
  %v3246 = vld [vmem:[%s0 + $0x2f8] sm:$0xff]
  %v3247 = vld [vmem:[%s0 + $0x3c0] sm:$0x11]
  %v3248 = vld [vmem:[%s0 + $0x3c8] sm:$0x11]
  %v3249 = vld [vmem:[%s0 + $0x3d0] sm:$0x11]
  %v3250 = vld [vmem:[%s0 + $0x3d8] sm:$0x11]
  %v3251 = vld [vmem:[%s0 + $0x3e0] sm:$0x11]
  %v3252 = vld [vmem:[%s0 + $0x3e8] sm:$0x11]
  %v3253 = vld [vmem:[%s0 + $0x3f0] sm:$0x11]
  %v3254 = vld [vmem:[%s0 + $0x3f8] sm:$0x11]
  %v3287 = vunpack.c.l.b16 %v3223
  %v3288 = vunpack.c.h.b16 %v3223
  %v3289 = vunpack.c.l.b16 %v3224
  %v3290 = vunpack.c.h.b16 %v3224
  %v3291 = vunpack.c.l.b16 %v3225
  %v3292 = vunpack.c.h.b16 %v3225
  %v3293 = vunpack.c.l.b16 %v3226
  %v3294 = vunpack.c.h.b16 %v3226
  %v3295 = vunpack.c.l.b16 %v3227
  %v3296 = vunpack.c.h.b16 %v3227
  %v3297 = vunpack.c.l.b16 %v3228
  %v3298 = vunpack.c.h.b16 %v3228
  %v3299 = vunpack.c.l.b16 %v3229
  %v3300 = vunpack.c.h.b16 %v3229
  %v3301 = vunpack.c.l.b16 %v3230
  %v3302 = vunpack.c.h.b16 %v3230
  %v3303 = vunpack.c.l.b16 %v3231
  %v3304 = vunpack.c.h.b16 %v3231
  %v3305 = vunpack.c.l.b16 %v3232
  %v3306 = vunpack.c.h.b16 %v3232
  %v3307 = vunpack.c.l.b16 %v3233
  %v3308 = vunpack.c.h.b16 %v3233
  %v3309 = vunpack.c.l.b16 %v3234
  %v3310 = vunpack.c.h.b16 %v3234
  %v3311 = vunpack.c.l.b16 %v3235
  %v3312 = vunpack.c.h.b16 %v3235
  %v3313 = vunpack.c.l.b16 %v3236
  %v3314 = vunpack.c.h.b16 %v3236
  %v3315 = vunpack.c.l.b16 %v3237
  %v3316 = vunpack.c.h.b16 %v3237
  %v3317 = vunpack.c.l.b16 %v3238
  %v3318 = vunpack.c.h.b16 %v3238
  %v3319 = vunpack.c.l.b16 %v3239
  %v3320 = vunpack.c.h.b16 %v3239
  %v3321 = vunpack.c.l.b16 %v3240
  %v3322 = vunpack.c.h.b16 %v3240
  %v3323 = vunpack.c.l.b16 %v3241
  %v3324 = vunpack.c.h.b16 %v3241
  %v3325 = vunpack.c.l.b16 %v3242
  %v3326 = vunpack.c.h.b16 %v3242
  %v3327 = vunpack.c.l.b16 %v3243
  %v3328 = vunpack.c.h.b16 %v3243
  %v3329 = vunpack.c.l.b16 %v3244
  %v3330 = vunpack.c.h.b16 %v3244
  %v3331 = vunpack.c.l.b16 %v3245
  %v3332 = vunpack.c.h.b16 %v3245
  %v3333 = vunpack.c.l.b16 %v3246
  %v3334 = vunpack.c.h.b16 %v3246
  %v3335 = vunpack.c.l.b16 %v3247
  %v3336 = vunpack.c.h.b16 %v3247
  %v3337 = vunpack.c.l.b16 %v3248
  %v3338 = vunpack.c.h.b16 %v3248
  %v3339 = vunpack.c.l.b16 %v3249
  %v3340 = vunpack.c.h.b16 %v3249
  %v3341 = vunpack.c.l.b16 %v3250
  %v3342 = vunpack.c.h.b16 %v3250
  %v3343 = vunpack.c.l.b16 %v3251
  %v3344 = vunpack.c.h.b16 %v3251
  %v3345 = vunpack.c.l.b16 %v3252
  %v3346 = vunpack.c.h.b16 %v3252
  %v3347 = vunpack.c.l.b16 %v3253
  %v3348 = vunpack.c.h.b16 %v3253
  %v3349 = vunpack.c.l.b16 %v3254
  %v3350 = vunpack.c.h.b16 %v3254
  %v3351 = vpack.c.b16 %v3303, %v3287
  %v3352 = vpack.c.b16 %v3304, %v3288
  %v3353 = vpack.c.b16 %v3305, %v3289
  %v3354 = vpack.c.b16 %v3306, %v3290
  %v3355 = vpack.c.b16 %v3307, %v3291
  %v3356 = vpack.c.b16 %v3308, %v3292
  %v3357 = vpack.c.b16 %v3309, %v3293
  %v3358 = vpack.c.b16 %v3310, %v3294
  %v3359 = vpack.c.b16 %v3311, %v3295
  %v3360 = vpack.c.b16 %v3312, %v3296
  %v3361 = vpack.c.b16 %v3313, %v3297
  %v3362 = vpack.c.b16 %v3314, %v3298
  %v3363 = vpack.c.b16 %v3315, %v3299
  %v3364 = vpack.c.b16 %v3316, %v3300
  %v3365 = vpack.c.b16 %v3317, %v3301
  %v3366 = vpack.c.b16 %v3318, %v3302
  %v3367 = vpack.c.b16 %v3335, %v3319
  %v3368 = vpack.c.b16 %v3336, %v3320
  %v3369 = vpack.c.b16 %v3337, %v3321
  %v3370 = vpack.c.b16 %v3338, %v3322
  %v3371 = vpack.c.b16 %v3339, %v3323
  %v3372 = vpack.c.b16 %v3340, %v3324
  %v3373 = vpack.c.b16 %v3341, %v3325
  %v3374 = vpack.c.b16 %v3342, %v3326
  %v3375 = vpack.c.b16 %v3343, %v3327
  %v3376 = vpack.c.b16 %v3344, %v3328
  %v3377 = vpack.c.b16 %v3345, %v3329
  %v3378 = vpack.c.b16 %v3346, %v3330
  %v3379 = vpack.c.b16 %v3347, %v3331
  %v3380 = vpack.c.b16 %v3348, %v3332
  %v3381 = vpack.c.b16 %v3349, %v3333
  %v3382 = vpack.c.b16 %v3350, %v3334
  %v3400 = vand.u32 %v3367, %v249
  %v3403 = vand.u32 %v3368, %v249
  %v3406 = vand.u32 %v3369, %v249
  %v3409 = vand.u32 %v3370, %v249
  %v3412 = vand.u32 %v3371, %v249
  %v3415 = vand.u32 %v3372, %v249
  %v3418 = vand.u32 %v3373, %v249
  %v3421 = vand.u32 %v3374, %v249
  %v3424 = vand.u32 %v3375, %v249
  %v3427 = vand.u32 %v3376, %v249
  %v3430 = vand.u32 %v3377, %v249
  %v3433 = vand.u32 %v3378, %v249
  %v3436 = vand.u32 %v3379, %v249
  %v3439 = vand.u32 %v3380, %v249
  %v3442 = vand.u32 %v3381, %v249
  %v3445 = vand.u32 %v3382, %v249
  %3447 = vmatprep.subr.bf16.mxu0 0
  %3448 = vmatpush1.bf16.msra.mxu0 0
  %3449 = vmatprep.subr.bf16.mxu0 0
  %3450 = vmatpush1.bf16.msra.mxu0 0
  %3451 = vmatprep.subr.bf16.mxu0 0
  %3452 = vmatpush1.bf16.msra.mxu0 0
  %3453 = vmatprep.subr.bf16.mxu0 0
  %3454 = vmatpush1.bf16.msra.mxu0 0
  %3455 = vmatprep.subr.bf16.mxu0 0
  %3456 = vmatpush1.bf16.msra.mxu0 0
  %3457 = vmatprep.subr.bf16.mxu0 0
  %3458 = vmatpush1.bf16.msra.mxu0 0
  %3459 = vmatprep.subr.bf16.mxu0 %v3403
  %3460 = vmatpush1.bf16.msra.mxu0 %v3400
  %3461 = vmatprep.subr.bf16.mxu0 %v3352
  %3462 = vmatpush1.bf16.msra.mxu0 %v3351
  %3463 = vmatprep.subr.bf16.mxu0 0
  %3464 = vmatpush2.bf16.msra.mxu0 0
  %3465 = vmatprep.subr.bf16.mxu0 0
  %3466 = vmatpush2.bf16.msra.mxu0 0
  %3467 = vmatprep.subr.bf16.mxu0 0
  %3468 = vmatpush2.bf16.msra.mxu0 0
  %3469 = vmatprep.subr.bf16.mxu0 0
  %3470 = vmatpush2.bf16.msra.mxu0 0
  %3471 = vmatprep.subr.bf16.mxu0 0
  %3472 = vmatpush2.bf16.msra.mxu0 0
  %3473 = vmatprep.subr.bf16.mxu0 0
  %3474 = vmatpush2.bf16.msra.mxu0 0
  %3475 = vmatprep.subr.bf16.mxu0 0
  %3476 = vmatpush2.bf16.msra.mxu0 0
  %3477 = vmatprep.subr.bf16.mxu0 0
  %3478 = vmatpush2.bf16.msra.mxu0 0
  %3479 = vmatprep.mubr.bf16.mxu0 0
  %3480 = vmatmul.mubr.bf16.gmra.mxu0 %v232
  %v3481 = vpop.f32.mrf.mxu0
  %v3482 = vadd.f32 0.0, %v3481
  %v3483 = vpop.f32.mrf.mxu0
  %v3484 = vadd.f32 0.0, %v3483
  %v3485 = vpop.f32.mrf.mxu0
  %v3486 = vadd.f32 0.0, %v3485
  %v3487 = vpop.f32.mrf.mxu0
  %v3488 = vadd.f32 0.0, %v3487
  %3489 = vmatprep.mubr.bf16.mxu0 0
  %3490 = vmatmul.mubr.bf16.gmra.mxu0 %v235
  %v3491 = vpop.f32.mrf.mxu0
  %v3492 = vadd.f32 0.0, %v3491
  %v3493 = vpop.f32.mrf.mxu0
  %v3494 = vadd.f32 0.0, %v3493
  %v3495 = vpop.f32.mrf.mxu0
  %v3496 = vadd.f32 0.0, %v3495
  %v3497 = vpop.f32.mrf.mxu0
  %v3498 = vadd.f32 0.0, %v3497
  %3499 = vmatprep.mubr.bf16.mxu0 0
  %3500 = vmatmul.mubr.bf16.gmra.mxu0 %v238
  %v3501 = vpop.f32.mrf.mxu0
  %v3502 = vadd.f32 0.0, %v3501
  %v3503 = vpop.f32.mrf.mxu0
  %v3504 = vadd.f32 0.0, %v3503
  %v3505 = vpop.f32.mrf.mxu0
  %v3506 = vadd.f32 0.0, %v3505
  %v3507 = vpop.f32.mrf.mxu0
  %v3508 = vadd.f32 0.0, %v3507
  %3509 = vmatprep.mubr.bf16.mxu0 0
  %3510 = vmatmul.mubr.bf16.gmra.mxu0 %v241
  %v3511 = vpop.f32.mrf.mxu0
  %v3512 = vadd.f32 0.0, %v3511
  %v3513 = vpop.f32.mrf.mxu0
  %v3514 = vadd.f32 0.0, %v3513
  %v3515 = vpop.f32.mrf.mxu0
  %v3516 = vadd.f32 0.0, %v3515
  %v3517 = vpop.f32.mrf.mxu0
  %v3518 = vadd.f32 0.0, %v3517
  %3519 = vmatprep.mubr.bf16.mxu0 0
  %3520 = vmatmul.mubr.bf16.gmra.mxu0 %v244
  %v3521 = vpop.f32.mrf.mxu0
  %v3522 = vadd.f32 0.0, %v3521
  %v3523 = vpop.f32.mrf.mxu0
  %v3524 = vadd.f32 0.0, %v3523
  %v3525 = vpop.f32.mrf.mxu0
  %v3526 = vpop.f32.mrf.mxu0
  %3527 = vdwg.mxu0
  %3528 = vmatprep.subr.bf16.mxu0 0
  %3529 = vmatpush1.bf16.msra.mxu0 0
  %3530 = vmatprep.subr.bf16.mxu0 0
  %3531 = vmatpush1.bf16.msra.mxu0 0
  %3532 = vmatprep.subr.bf16.mxu0 0
  %3533 = vmatpush1.bf16.msra.mxu0 0
  %3534 = vmatprep.subr.bf16.mxu0 0
  %3535 = vmatpush1.bf16.msra.mxu0 0
  %3536 = vmatprep.subr.bf16.mxu0 0
  %3537 = vmatpush1.bf16.msra.mxu0 0
  %3538 = vmatprep.subr.bf16.mxu0 0
  %3539 = vmatpush1.bf16.msra.mxu0 0
  %3540 = vmatprep.subr.bf16.mxu0 %v3409
  %3541 = vmatpush1.bf16.msra.mxu0 %v3406
  %3542 = vmatprep.subr.bf16.mxu0 %v3354
  %3543 = vmatpush1.bf16.msra.mxu0 %v3353
  %3544 = vmatprep.subr.bf16.mxu0 0
  %3545 = vmatpush2.bf16.msra.mxu0 0
  %3546 = vmatprep.subr.bf16.mxu0 0
  %3547 = vmatpush2.bf16.msra.mxu0 0
  %3548 = vmatprep.subr.bf16.mxu0 0
  %3549 = vmatpush2.bf16.msra.mxu0 0
  %3550 = vmatprep.subr.bf16.mxu0 0
  %3551 = vmatpush2.bf16.msra.mxu0 0
  %3552 = vmatprep.subr.bf16.mxu0 0
  %3553 = vmatpush2.bf16.msra.mxu0 0
  %3554 = vmatprep.subr.bf16.mxu0 0
  %3555 = vmatpush2.bf16.msra.mxu0 0
  %3556 = vmatprep.subr.bf16.mxu0 0
  %3557 = vmatpush2.bf16.msra.mxu0 0
  %3558 = vmatprep.subr.bf16.mxu0 0
  %3559 = vmatpush2.bf16.msra.mxu0 0
  %3560 = vmatprep.mubr.bf16.mxu0 0
  %3561 = vmatmul.mubr.bf16.gmra.mxu0 %v232
  %v3562 = vpop.f32.mrf.mxu0
  %v3563 = vadd.f32 0.0, %v3562
  %v3564 = vpop.f32.mrf.mxu0
  %v3565 = vadd.f32 0.0, %v3564
  %v3566 = vpop.f32.mrf.mxu0
  %v3567 = vadd.f32 0.0, %v3566
  %v3568 = vpop.f32.mrf.mxu0
  %v3569 = vadd.f32 0.0, %v3568
  %3570 = vmatprep.mubr.bf16.mxu0 0
  %3571 = vmatmul.mubr.bf16.gmra.mxu0 %v235
  %v3572 = vpop.f32.mrf.mxu0
  %v3573 = vadd.f32 0.0, %v3572
  %v3574 = vpop.f32.mrf.mxu0
  %v3575 = vadd.f32 0.0, %v3574
  %v3576 = vpop.f32.mrf.mxu0
  %v3577 = vadd.f32 0.0, %v3576
  %v3578 = vpop.f32.mrf.mxu0
  %v3579 = vadd.f32 0.0, %v3578
  %3580 = vmatprep.mubr.bf16.mxu0 0
  %3581 = vmatmul.mubr.bf16.gmra.mxu0 %v238
  %v3582 = vpop.f32.mrf.mxu0
  %v3583 = vadd.f32 0.0, %v3582
  %v3584 = vpop.f32.mrf.mxu0
  %v3585 = vadd.f32 0.0, %v3584
  %v3586 = vpop.f32.mrf.mxu0
  %v3587 = vadd.f32 0.0, %v3586
  %v3588 = vpop.f32.mrf.mxu0
  %v3589 = vadd.f32 0.0, %v3588
  %3590 = vmatprep.mubr.bf16.mxu0 0
  %3591 = vmatmul.mubr.bf16.gmra.mxu0 %v241
  %v3592 = vpop.f32.mrf.mxu0
  %v3593 = vadd.f32 0.0, %v3592
  %v3594 = vpop.f32.mrf.mxu0
  %v3595 = vadd.f32 0.0, %v3594
  %v3596 = vpop.f32.mrf.mxu0
  %v3597 = vadd.f32 0.0, %v3596
  %v3598 = vpop.f32.mrf.mxu0
  %v3599 = vadd.f32 0.0, %v3598
  %3600 = vmatprep.mubr.bf16.mxu0 0
  %3601 = vmatmul.mubr.bf16.gmra.mxu0 %v244
  %v3602 = vpop.f32.mrf.mxu0
  %v3603 = vadd.f32 0.0, %v3602
  %v3604 = vpop.f32.mrf.mxu0
  %v3605 = vadd.f32 0.0, %v3604
  %v3606 = vpop.f32.mrf.mxu0
  %v3607 = vpop.f32.mrf.mxu0
  %3608 = vdwg.mxu0
  %3609 = vmatprep.subr.bf16.mxu0 0
  %3610 = vmatpush1.bf16.msra.mxu0 0
  %3611 = vmatprep.subr.bf16.mxu0 0
  %3612 = vmatpush1.bf16.msra.mxu0 0
  %3613 = vmatprep.subr.bf16.mxu0 0
  %3614 = vmatpush1.bf16.msra.mxu0 0
  %3615 = vmatprep.subr.bf16.mxu0 0
  %3616 = vmatpush1.bf16.msra.mxu0 0
  %3617 = vmatprep.subr.bf16.mxu0 0
  %3618 = vmatpush1.bf16.msra.mxu0 0
  %3619 = vmatprep.subr.bf16.mxu0 0
  %3620 = vmatpush1.bf16.msra.mxu0 0
  %3621 = vmatprep.subr.bf16.mxu0 %v3415
  %3622 = vmatpush1.bf16.msra.mxu0 %v3412
  %3623 = vmatprep.subr.bf16.mxu0 %v3356
  %3624 = vmatpush1.bf16.msra.mxu0 %v3355
  %3625 = vmatprep.subr.bf16.mxu0 0
  %3626 = vmatpush2.bf16.msra.mxu0 0
  %3627 = vmatprep.subr.bf16.mxu0 0
  %3628 = vmatpush2.bf16.msra.mxu0 0
  %3629 = vmatprep.subr.bf16.mxu0 0
  %3630 = vmatpush2.bf16.msra.mxu0 0
  %3631 = vmatprep.subr.bf16.mxu0 0
  %3632 = vmatpush2.bf16.msra.mxu0 0
  %3633 = vmatprep.subr.bf16.mxu0 0
  %3634 = vmatpush2.bf16.msra.mxu0 0
  %3635 = vmatprep.subr.bf16.mxu0 0
  %3636 = vmatpush2.bf16.msra.mxu0 0
  %3637 = vmatprep.subr.bf16.mxu0 0
  %3638 = vmatpush2.bf16.msra.mxu0 0
  %3639 = vmatprep.subr.bf16.mxu0 0
  %3640 = vmatpush2.bf16.msra.mxu0 0
  %3641 = vmatprep.mubr.bf16.mxu0 0
  %3642 = vmatmul.mubr.bf16.gmra.mxu0 %v232
  %v3643 = vpop.f32.mrf.mxu0
  %v3644 = vadd.f32 0.0, %v3643
  %v3645 = vpop.f32.mrf.mxu0
  %v3646 = vadd.f32 0.0, %v3645
  %v3647 = vpop.f32.mrf.mxu0
  %v3648 = vadd.f32 0.0, %v3647
  %v3649 = vpop.f32.mrf.mxu0
  %v3650 = vadd.f32 0.0, %v3649
  %3651 = vmatprep.mubr.bf16.mxu0 0
  %3652 = vmatmul.mubr.bf16.gmra.mxu0 %v235
  %v3653 = vpop.f32.mrf.mxu0
  %v3654 = vadd.f32 0.0, %v3653
  %v3655 = vpop.f32.mrf.mxu0
  %v3656 = vadd.f32 0.0, %v3655
  %v3657 = vpop.f32.mrf.mxu0
  %v3658 = vadd.f32 0.0, %v3657
  %v3659 = vpop.f32.mrf.mxu0
  %v3660 = vadd.f32 0.0, %v3659
  %3661 = vmatprep.mubr.bf16.mxu0 0
  %3662 = vmatmul.mubr.bf16.gmra.mxu0 %v238
  %v3663 = vpop.f32.mrf.mxu0
  %v3664 = vadd.f32 0.0, %v3663
  %v3665 = vpop.f32.mrf.mxu0
  %v3666 = vadd.f32 0.0, %v3665
  %v3667 = vpop.f32.mrf.mxu0
  %v3668 = vadd.f32 0.0, %v3667
  %v3669 = vpop.f32.mrf.mxu0
  %v3670 = vadd.f32 0.0, %v3669
  %3671 = vmatprep.mubr.bf16.mxu0 0
  %3672 = vmatmul.mubr.bf16.gmra.mxu0 %v241
  %v3673 = vpop.f32.mrf.mxu0
  %v3674 = vadd.f32 0.0, %v3673
  %v3675 = vpop.f32.mrf.mxu0
  %v3676 = vadd.f32 0.0, %v3675
  %v3677 = vpop.f32.mrf.mxu0
  %v3678 = vadd.f32 0.0, %v3677
  %v3679 = vpop.f32.mrf.mxu0
  %v3680 = vadd.f32 0.0, %v3679
  %3681 = vmatprep.mubr.bf16.mxu0 0
  %3682 = vmatmul.mubr.bf16.gmra.mxu0 %v244
  %v3683 = vpop.f32.mrf.mxu0
  %v3684 = vadd.f32 0.0, %v3683
  %v3685 = vpop.f32.mrf.mxu0
  %v3686 = vadd.f32 0.0, %v3685
  %v3687 = vpop.f32.mrf.mxu0
  %v3688 = vpop.f32.mrf.mxu0
  %3689 = vdwg.mxu0
  %3690 = vmatprep.subr.bf16.mxu0 0
  %3691 = vmatpush1.bf16.msra.mxu0 0
  %3692 = vmatprep.subr.bf16.mxu0 0
  %3693 = vmatpush1.bf16.msra.mxu0 0
  %3694 = vmatprep.subr.bf16.mxu0 0
  %3695 = vmatpush1.bf16.msra.mxu0 0
  %3696 = vmatprep.subr.bf16.mxu0 0
  %3697 = vmatpush1.bf16.msra.mxu0 0
  %3698 = vmatprep.subr.bf16.mxu0 0
  %3699 = vmatpush1.bf16.msra.mxu0 0
  %3700 = vmatprep.subr.bf16.mxu0 0
  %3701 = vmatpush1.bf16.msra.mxu0 0
  %3702 = vmatprep.subr.bf16.mxu0 %v3421
  %3703 = vmatpush1.bf16.msra.mxu0 %v3418
  %3704 = vmatprep.subr.bf16.mxu0 %v3358
  %3705 = vmatpush1.bf16.msra.mxu0 %v3357
  %3706 = vmatprep.subr.bf16.mxu0 0
  %3707 = vmatpush2.bf16.msra.mxu0 0
  %3708 = vmatprep.subr.bf16.mxu0 0
  %3709 = vmatpush2.bf16.msra.mxu0 0
  %3710 = vmatprep.subr.bf16.mxu0 0
  %3711 = vmatpush2.bf16.msra.mxu0 0
  %3712 = vmatprep.subr.bf16.mxu0 0
  %3713 = vmatpush2.bf16.msra.mxu0 0
  %3714 = vmatprep.subr.bf16.mxu0 0
  %3715 = vmatpush2.bf16.msra.mxu0 0
  %3716 = vmatprep.subr.bf16.mxu0 0
  %3717 = vmatpush2.bf16.msra.mxu0 0
  %3718 = vmatprep.subr.bf16.mxu0 0
  %3719 = vmatpush2.bf16.msra.mxu0 0
  %3720 = vmatprep.subr.bf16.mxu0 0
  %3721 = vmatpush2.bf16.msra.mxu0 0
  %3722 = vmatprep.mubr.bf16.mxu0 0
  %3723 = vmatmul.mubr.bf16.gmra.mxu0 %v232
  %v3724 = vpop.f32.mrf.mxu0
  %v3725 = vadd.f32 0.0, %v3724
  %v3726 = vpop.f32.mrf.mxu0
  %v3727 = vadd.f32 0.0, %v3726
  %v3728 = vpop.f32.mrf.mxu0
  %v3729 = vadd.f32 0.0, %v3728
  %v3730 = vpop.f32.mrf.mxu0
  %v3731 = vadd.f32 0.0, %v3730
  %3732 = vmatprep.mubr.bf16.mxu0 0
  %3733 = vmatmul.mubr.bf16.gmra.mxu0 %v235
  %v3734 = vpop.f32.mrf.mxu0
  %v3735 = vadd.f32 0.0, %v3734
  %v3736 = vpop.f32.mrf.mxu0
  %v3737 = vadd.f32 0.0, %v3736
  %v3738 = vpop.f32.mrf.mxu0
  %v3739 = vadd.f32 0.0, %v3738
  %v3740 = vpop.f32.mrf.mxu0
  %v3741 = vadd.f32 0.0, %v3740
  %3742 = vmatprep.mubr.bf16.mxu0 0
  %3743 = vmatmul.mubr.bf16.gmra.mxu0 %v238
  %v3744 = vpop.f32.mrf.mxu0
  %v3745 = vadd.f32 0.0, %v3744
  %v3746 = vpop.f32.mrf.mxu0
  %v3747 = vadd.f32 0.0, %v3746
  %v3748 = vpop.f32.mrf.mxu0
  %v3749 = vadd.f32 0.0, %v3748
  %v3750 = vpop.f32.mrf.mxu0
  %v3751 = vadd.f32 0.0, %v3750
  %3752 = vmatprep.mubr.bf16.mxu0 0
  %3753 = vmatmul.mubr.bf16.gmra.mxu0 %v241
  %v3754 = vpop.f32.mrf.mxu0
  %v3755 = vadd.f32 0.0, %v3754
  %v3756 = vpop.f32.mrf.mxu0
  %v3757 = vadd.f32 0.0, %v3756
  %v3758 = vpop.f32.mrf.mxu0
  %v3759 = vadd.f32 0.0, %v3758
  %v3760 = vpop.f32.mrf.mxu0
  %v3761 = vadd.f32 0.0, %v3760
  %3762 = vmatprep.mubr.bf16.mxu0 0
  %3763 = vmatmul.mubr.bf16.gmra.mxu0 %v244
  %v3764 = vpop.f32.mrf.mxu0
  %v3765 = vadd.f32 0.0, %v3764
  %v3766 = vpop.f32.mrf.mxu0
  %v3767 = vadd.f32 0.0, %v3766
  %v3768 = vpop.f32.mrf.mxu0
  %v3769 = vpop.f32.mrf.mxu0
  %3770 = vdwg.mxu0
  %3771 = vmatprep.subr.bf16.mxu0 0
  %3772 = vmatpush1.bf16.msra.mxu0 0
  %3773 = vmatprep.subr.bf16.mxu0 0
  %3774 = vmatpush1.bf16.msra.mxu0 0
  %3775 = vmatprep.subr.bf16.mxu0 0
  %3776 = vmatpush1.bf16.msra.mxu0 0
  %3777 = vmatprep.subr.bf16.mxu0 0
  %3778 = vmatpush1.bf16.msra.mxu0 0
  %3779 = vmatprep.subr.bf16.mxu0 0
  %3780 = vmatpush1.bf16.msra.mxu0 0
  %3781 = vmatprep.subr.bf16.mxu0 0
  %3782 = vmatpush1.bf16.msra.mxu0 0
  %3783 = vmatprep.subr.bf16.mxu0 %v3427
  %3784 = vmatpush1.bf16.msra.mxu0 %v3424
  %3785 = vmatprep.subr.bf16.mxu0 %v3360
  %3786 = vmatpush1.bf16.msra.mxu0 %v3359
  %3787 = vmatprep.subr.bf16.mxu0 0
  %3788 = vmatpush2.bf16.msra.mxu0 0
  %3789 = vmatprep.subr.bf16.mxu0 0
  %3790 = vmatpush2.bf16.msra.mxu0 0
  %3791 = vmatprep.subr.bf16.mxu0 0
  %3792 = vmatpush2.bf16.msra.mxu0 0
  %3793 = vmatprep.subr.bf16.mxu0 0
  %3794 = vmatpush2.bf16.msra.mxu0 0
  %3795 = vmatprep.subr.bf16.mxu0 0
  %3796 = vmatpush2.bf16.msra.mxu0 0
  %3797 = vmatprep.subr.bf16.mxu0 0
  %3798 = vmatpush2.bf16.msra.mxu0 0
  %3799 = vmatprep.subr.bf16.mxu0 0
  %3800 = vmatpush2.bf16.msra.mxu0 0
  %3801 = vmatprep.subr.bf16.mxu0 0
  %3802 = vmatpush2.bf16.msra.mxu0 0
  %3803 = vmatprep.mubr.bf16.mxu0 0
  %3804 = vmatmul.mubr.bf16.gmra.mxu0 %v232
  %v3805 = vpop.f32.mrf.mxu0
  %v3806 = vadd.f32 0.0, %v3805
  %v3807 = vpop.f32.mrf.mxu0
  %v3808 = vadd.f32 0.0, %v3807
  %v3809 = vpop.f32.mrf.mxu0
  %v3810 = vadd.f32 0.0, %v3809
  %v3811 = vpop.f32.mrf.mxu0
  %v3812 = vadd.f32 0.0, %v3811
  %3813 = vmatprep.mubr.bf16.mxu0 0
  %3814 = vmatmul.mubr.bf16.gmra.mxu0 %v235
  %v3815 = vpop.f32.mrf.mxu0
  %v3816 = vadd.f32 0.0, %v3815
  %v3817 = vpop.f32.mrf.mxu0
  %v3818 = vadd.f32 0.0, %v3817
  %v3819 = vpop.f32.mrf.mxu0
  %v3820 = vadd.f32 0.0, %v3819
  %v3821 = vpop.f32.mrf.mxu0
  %v3822 = vadd.f32 0.0, %v3821
  %3823 = vmatprep.mubr.bf16.mxu0 0
  %3824 = vmatmul.mubr.bf16.gmra.mxu0 %v238
  %v3825 = vpop.f32.mrf.mxu0
  %v3826 = vadd.f32 0.0, %v3825
  %v3827 = vpop.f32.mrf.mxu0
  %v3828 = vadd.f32 0.0, %v3827
  %v3829 = vpop.f32.mrf.mxu0
  %v3830 = vadd.f32 0.0, %v3829
  %v3831 = vpop.f32.mrf.mxu0
  %v3832 = vadd.f32 0.0, %v3831
  %3833 = vmatprep.mubr.bf16.mxu0 0
  %3834 = vmatmul.mubr.bf16.gmra.mxu0 %v241
  %v3835 = vpop.f32.mrf.mxu0
  %v3836 = vadd.f32 0.0, %v3835
  %v3837 = vpop.f32.mrf.mxu0
  %v3838 = vadd.f32 0.0, %v3837
  %v3839 = vpop.f32.mrf.mxu0
  %v3840 = vadd.f32 0.0, %v3839
  %v3841 = vpop.f32.mrf.mxu0
  %v3842 = vadd.f32 0.0, %v3841
  %3843 = vmatprep.mubr.bf16.mxu0 0
  %3844 = vmatmul.mubr.bf16.gmra.mxu0 %v244
  %v3845 = vpop.f32.mrf.mxu0
  %v3846 = vadd.f32 0.0, %v3845
  %v3847 = vpop.f32.mrf.mxu0
  %v3848 = vadd.f32 0.0, %v3847
  %v3849 = vpop.f32.mrf.mxu0
  %v3850 = vpop.f32.mrf.mxu0
  %3851 = vdwg.mxu0
  %3852 = vmatprep.subr.bf16.mxu0 0
  %3853 = vmatpush1.bf16.msra.mxu0 0
  %3854 = vmatprep.subr.bf16.mxu0 0
  %3855 = vmatpush1.bf16.msra.mxu0 0
  %3856 = vmatprep.subr.bf16.mxu0 0
  %3857 = vmatpush1.bf16.msra.mxu0 0
  %3858 = vmatprep.subr.bf16.mxu0 0
  %3859 = vmatpush1.bf16.msra.mxu0 0
  %3860 = vmatprep.subr.bf16.mxu0 0
  %3861 = vmatpush1.bf16.msra.mxu0 0
  %3862 = vmatprep.subr.bf16.mxu0 0
  %3863 = vmatpush1.bf16.msra.mxu0 0
  %3864 = vmatprep.subr.bf16.mxu0 %v3433
  %3865 = vmatpush1.bf16.msra.mxu0 %v3430
  %3866 = vmatprep.subr.bf16.mxu0 %v3362
  %3867 = vmatpush1.bf16.msra.mxu0 %v3361
  %3868 = vmatprep.subr.bf16.mxu0 0
  %3869 = vmatpush2.bf16.msra.mxu0 0
  %3870 = vmatprep.subr.bf16.mxu0 0
  %3871 = vmatpush2.bf16.msra.mxu0 0
  %3872 = vmatprep.subr.bf16.mxu0 0
  %3873 = vmatpush2.bf16.msra.mxu0 0
  %3874 = vmatprep.subr.bf16.mxu0 0
  %3875 = vmatpush2.bf16.msra.mxu0 0
  %3876 = vmatprep.subr.bf16.mxu0 0
  %3877 = vmatpush2.bf16.msra.mxu0 0
  %3878 = vmatprep.subr.bf16.mxu0 0
  %3879 = vmatpush2.bf16.msra.mxu0 0
  %3880 = vmatprep.subr.bf16.mxu0 0
  %3881 = vmatpush2.bf16.msra.mxu0 0
  %3882 = vmatprep.subr.bf16.mxu0 0
  %3883 = vmatpush2.bf16.msra.mxu0 0
  %3884 = vmatprep.mubr.bf16.mxu0 0
  %3885 = vmatmul.mubr.bf16.gmra.mxu0 %v232
  %v3886 = vpop.f32.mrf.mxu0
  %v3887 = vadd.f32 0.0, %v3886
  %v3888 = vpop.f32.mrf.mxu0
  %v3889 = vadd.f32 0.0, %v3888
  %v3890 = vpop.f32.mrf.mxu0
  %v3891 = vadd.f32 0.0, %v3890
  %v3892 = vpop.f32.mrf.mxu0
  %v3893 = vadd.f32 0.0, %v3892
  %3894 = vmatprep.mubr.bf16.mxu0 0
  %3895 = vmatmul.mubr.bf16.gmra.mxu0 %v235
  %v3896 = vpop.f32.mrf.mxu0
  %v3897 = vadd.f32 0.0, %v3896
  %v3898 = vpop.f32.mrf.mxu0
  %v3899 = vadd.f32 0.0, %v3898
  %v3900 = vpop.f32.mrf.mxu0
  %v3901 = vadd.f32 0.0, %v3900
  %v3902 = vpop.f32.mrf.mxu0
  %v3903 = vadd.f32 0.0, %v3902
  %3904 = vmatprep.mubr.bf16.mxu0 0
  %3905 = vmatmul.mubr.bf16.gmra.mxu0 %v238
  %v3906 = vpop.f32.mrf.mxu0
  %v3907 = vadd.f32 0.0, %v3906
  %v3908 = vpop.f32.mrf.mxu0
  %v3909 = vadd.f32 0.0, %v3908
  %v3910 = vpop.f32.mrf.mxu0
  %v3911 = vadd.f32 0.0, %v3910
  %v3912 = vpop.f32.mrf.mxu0
  %v3913 = vadd.f32 0.0, %v3912
  %3914 = vmatprep.mubr.bf16.mxu0 0
  %3915 = vmatmul.mubr.bf16.gmra.mxu0 %v241
  %v3916 = vpop.f32.mrf.mxu0
  %v3917 = vadd.f32 0.0, %v3916
  %v3918 = vpop.f32.mrf.mxu0
  %v3919 = vadd.f32 0.0, %v3918
  %v3920 = vpop.f32.mrf.mxu0
  %v3921 = vadd.f32 0.0, %v3920
  %v3922 = vpop.f32.mrf.mxu0
  %v3923 = vadd.f32 0.0, %v3922
  %3924 = vmatprep.mubr.bf16.mxu0 0
  %3925 = vmatmul.mubr.bf16.gmra.mxu0 %v244
  %v3926 = vpop.f32.mrf.mxu0
  %v3927 = vadd.f32 0.0, %v3926
  %v3928 = vpop.f32.mrf.mxu0
  %v3929 = vadd.f32 0.0, %v3928
  %v3930 = vpop.f32.mrf.mxu0
  %v3931 = vpop.f32.mrf.mxu0
  %3932 = vdwg.mxu0
  %3933 = vmatprep.subr.bf16.mxu0 0
  %3934 = vmatpush1.bf16.msra.mxu0 0
  %3935 = vmatprep.subr.bf16.mxu0 0
  %3936 = vmatpush1.bf16.msra.mxu0 0
  %3937 = vmatprep.subr.bf16.mxu0 0
  %3938 = vmatpush1.bf16.msra.mxu0 0
  %3939 = vmatprep.subr.bf16.mxu0 0
  %3940 = vmatpush1.bf16.msra.mxu0 0
  %3941 = vmatprep.subr.bf16.mxu0 0
  %3942 = vmatpush1.bf16.msra.mxu0 0
  %3943 = vmatprep.subr.bf16.mxu0 0
  %3944 = vmatpush1.bf16.msra.mxu0 0
  %3945 = vmatprep.subr.bf16.mxu0 %v3439
  %3946 = vmatpush1.bf16.msra.mxu0 %v3436
  %3947 = vmatprep.subr.bf16.mxu0 %v3364
  %3948 = vmatpush1.bf16.msra.mxu0 %v3363
  %3949 = vmatprep.subr.bf16.mxu0 0
  %3950 = vmatpush2.bf16.msra.mxu0 0
  %3951 = vmatprep.subr.bf16.mxu0 0
  %3952 = vmatpush2.bf16.msra.mxu0 0
  %3953 = vmatprep.subr.bf16.mxu0 0
  %3954 = vmatpush2.bf16.msra.mxu0 0
  %3955 = vmatprep.subr.bf16.mxu0 0
  %3956 = vmatpush2.bf16.msra.mxu0 0
  %3957 = vmatprep.subr.bf16.mxu0 0
  %3958 = vmatpush2.bf16.msra.mxu0 0
  %3959 = vmatprep.subr.bf16.mxu0 0
  %3960 = vmatpush2.bf16.msra.mxu0 0
  %3961 = vmatprep.subr.bf16.mxu0 0
  %3962 = vmatpush2.bf16.msra.mxu0 0
  %3963 = vmatprep.subr.bf16.mxu0 0
  %3964 = vmatpush2.bf16.msra.mxu0 0
  %3965 = vmatprep.mubr.bf16.mxu0 0
  %3966 = vmatmul.mubr.bf16.gmra.mxu0 %v232
  %v3967 = vpop.f32.mrf.mxu0
  %v3968 = vadd.f32 0.0, %v3967
  %v3969 = vpop.f32.mrf.mxu0
  %v3970 = vadd.f32 0.0, %v3969
  %v3971 = vpop.f32.mrf.mxu0
  %v3972 = vadd.f32 0.0, %v3971
  %v3973 = vpop.f32.mrf.mxu0
  %v3974 = vadd.f32 0.0, %v3973
  %3975 = vmatprep.mubr.bf16.mxu0 0
  %3976 = vmatmul.mubr.bf16.gmra.mxu0 %v235
  %v3977 = vpop.f32.mrf.mxu0
  %v3978 = vadd.f32 0.0, %v3977
  %v3979 = vpop.f32.mrf.mxu0
  %v3980 = vadd.f32 0.0, %v3979
  %v3981 = vpop.f32.mrf.mxu0
  %v3982 = vadd.f32 0.0, %v3981
  %v3983 = vpop.f32.mrf.mxu0
  %v3984 = vadd.f32 0.0, %v3983
  %3985 = vmatprep.mubr.bf16.mxu0 0
  %3986 = vmatmul.mubr.bf16.gmra.mxu0 %v238
  %v3987 = vpop.f32.mrf.mxu0
  %v3988 = vadd.f32 0.0, %v3987
  %v3989 = vpop.f32.mrf.mxu0
  %v3990 = vadd.f32 0.0, %v3989
  %v3991 = vpop.f32.mrf.mxu0
  %v3992 = vadd.f32 0.0, %v3991
  %v3993 = vpop.f32.mrf.mxu0
  %v3994 = vadd.f32 0.0, %v3993
  %3995 = vmatprep.mubr.bf16.mxu0 0
  %3996 = vmatmul.mubr.bf16.gmra.mxu0 %v241
  %v3997 = vpop.f32.mrf.mxu0
  %v3998 = vadd.f32 0.0, %v3997
  %v3999 = vpop.f32.mrf.mxu0
  %v4000 = vadd.f32 0.0, %v3999
  %v4001 = vpop.f32.mrf.mxu0
  %v4002 = vadd.f32 0.0, %v4001
  %v4003 = vpop.f32.mrf.mxu0
  %v4004 = vadd.f32 0.0, %v4003
  %4005 = vmatprep.mubr.bf16.mxu0 0
  %4006 = vmatmul.mubr.bf16.gmra.mxu0 %v244
  %v4007 = vpop.f32.mrf.mxu0
  %v4008 = vadd.f32 0.0, %v4007
  %v4009 = vpop.f32.mrf.mxu0
  %v4010 = vadd.f32 0.0, %v4009
  %v4011 = vpop.f32.mrf.mxu0
  %v4012 = vpop.f32.mrf.mxu0
  %4013 = vdwg.mxu0
  %4014 = vmatprep.subr.bf16.mxu0 0
  %4015 = vmatpush1.bf16.msra.mxu0 0
  %4016 = vmatprep.subr.bf16.mxu0 0
  %4017 = vmatpush1.bf16.msra.mxu0 0
  %4018 = vmatprep.subr.bf16.mxu0 0
  %4019 = vmatpush1.bf16.msra.mxu0 0
  %4020 = vmatprep.subr.bf16.mxu0 0
  %4021 = vmatpush1.bf16.msra.mxu0 0
  %4022 = vmatprep.subr.bf16.mxu0 0
  %4023 = vmatpush1.bf16.msra.mxu0 0
  %4024 = vmatprep.subr.bf16.mxu0 0
  %4025 = vmatpush1.bf16.msra.mxu0 0
  %4026 = vmatprep.subr.bf16.mxu0 %v3445
  %4027 = vmatpush1.bf16.msra.mxu0 %v3442
  %4028 = vmatprep.subr.bf16.mxu0 %v3366
  %4029 = vmatpush1.bf16.msra.mxu0 %v3365
  %4030 = vmatprep.subr.bf16.mxu0 0
  %4031 = vmatpush2.bf16.msra.mxu0 0
  %4032 = vmatprep.subr.bf16.mxu0 0
  %4033 = vmatpush2.bf16.msra.mxu0 0
  %4034 = vmatprep.subr.bf16.mxu0 0
  %4035 = vmatpush2.bf16.msra.mxu0 0
  %4036 = vmatprep.subr.bf16.mxu0 0
  %4037 = vmatpush2.bf16.msra.mxu0 0
  %4038 = vmatprep.subr.bf16.mxu0 0
  %4039 = vmatpush2.bf16.msra.mxu0 0
  %4040 = vmatprep.subr.bf16.mxu0 0
  %4041 = vmatpush2.bf16.msra.mxu0 0
  %4042 = vmatprep.subr.bf16.mxu0 0
  %4043 = vmatpush2.bf16.msra.mxu0 0
  %4044 = vmatprep.subr.bf16.mxu0 0
  %4045 = vmatpush2.bf16.msra.mxu0 0
  %4046 = vmatprep.mubr.bf16.mxu0 0
  %4047 = vmatmul.mubr.bf16.gmra.mxu0 %v232
  %v4048 = vpop.f32.mrf.mxu0
  %v4049 = vadd.f32 0.0, %v4048
  %v4050 = vpop.f32.mrf.mxu0
  %v4051 = vadd.f32 0.0, %v4050
  %v4052 = vpop.f32.mrf.mxu0
  %v4053 = vadd.f32 0.0, %v4052
  %v4054 = vpop.f32.mrf.mxu0
  %v4055 = vadd.f32 0.0, %v4054
  %4056 = vmatprep.mubr.bf16.mxu0 0
  %4057 = vmatmul.mubr.bf16.gmra.mxu0 %v235
  %v4058 = vpop.f32.mrf.mxu0
  %v4059 = vadd.f32 0.0, %v4058
  %v4060 = vpop.f32.mrf.mxu0
  %v4061 = vadd.f32 0.0, %v4060
  %v4062 = vpop.f32.mrf.mxu0
  %v4063 = vadd.f32 0.0, %v4062
  %v4064 = vpop.f32.mrf.mxu0
  %v4065 = vadd.f32 0.0, %v4064
  %4066 = vmatprep.mubr.bf16.mxu0 0
  %4067 = vmatmul.mubr.bf16.gmra.mxu0 %v238
  %v4068 = vpop.f32.mrf.mxu0
  %v4069 = vadd.f32 0.0, %v4068
  %v4070 = vpop.f32.mrf.mxu0
  %v4071 = vadd.f32 0.0, %v4070
  %v4072 = vpop.f32.mrf.mxu0
  %v4073 = vadd.f32 0.0, %v4072
  %v4074 = vpop.f32.mrf.mxu0
  %v4075 = vadd.f32 0.0, %v4074
  %4076 = vmatprep.mubr.bf16.mxu0 0
  %4077 = vmatmul.mubr.bf16.gmra.mxu0 %v241
  %v4078 = vpop.f32.mrf.mxu0
  %v4079 = vadd.f32 0.0, %v4078
  %v4080 = vpop.f32.mrf.mxu0
  %v4081 = vadd.f32 0.0, %v4080
  %v4082 = vpop.f32.mrf.mxu0
  %v4083 = vadd.f32 0.0, %v4082
  %v4084 = vpop.f32.mrf.mxu0
  %v4085 = vadd.f32 0.0, %v4084
  %4086 = vmatprep.mubr.bf16.mxu0 0
  %4087 = vmatmul.mubr.bf16.gmra.mxu0 %v244
  %v4088 = vpop.f32.mrf.mxu0
  %v4089 = vadd.f32 0.0, %v4088
  %v4090 = vpop.f32.mrf.mxu0
  %v4091 = vadd.f32 0.0, %v4090
  %v4092 = vpop.f32.mrf.mxu0
  %v4093 = vpop.f32.mrf.mxu0
  %4094 = vdwg.mxu0
  %v4095 = vmax.f32 %v3482, %v3486
  %v4096 = vmax.f32 %v4095, %v3492
  %v4097 = vmax.f32 %v4096, %v3496
  %v4098 = vmax.f32 %v4097, %v3502
  %v4099 = vmax.f32 %v4098, %v3506
  %v4100 = vmax.f32 %v4099, %v3512
  %v4101 = vmax.f32 %v4100, %v3516
  %v4102 = vmax.f32 %v4101, %v3522
  %v4103 = vmax.f32 %v3484, %v3488
  %v4104 = vmax.f32 %v4103, %v3494
  %v4105 = vmax.f32 %v4104, %v3498
  %v4106 = vmax.f32 %v4105, %v3504
  %v4107 = vmax.f32 %v4106, %v3508
  %v4108 = vmax.f32 %v4107, %v3514
  %v4109 = vmax.f32 %v4108, %v3518
  %v4110 = vmax.f32 %v4109, %v3524
  %v4111 = vmax.f32 %v3563, %v3567
  %v4112 = vmax.f32 %v4111, %v3573
  %v4113 = vmax.f32 %v4112, %v3577
  %v4114 = vmax.f32 %v4113, %v3583
  %v4115 = vmax.f32 %v4114, %v3587
  %v4116 = vmax.f32 %v4115, %v3593
  %v4117 = vmax.f32 %v4116, %v3597
  %v4118 = vmax.f32 %v4117, %v3603
  %v4119 = vmax.f32 %v3565, %v3569
  %v4120 = vmax.f32 %v4119, %v3575
  %v4121 = vmax.f32 %v4120, %v3579
  %v4122 = vmax.f32 %v4121, %v3585
  %v4123 = vmax.f32 %v4122, %v3589
  %v4124 = vmax.f32 %v4123, %v3595
  %v4125 = vmax.f32 %v4124, %v3599
  %v4126 = vmax.f32 %v4125, %v3605
  %v4127 = vmax.f32 %v3644, %v3648
  %v4128 = vmax.f32 %v4127, %v3654
  %v4129 = vmax.f32 %v4128, %v3658
  %v4130 = vmax.f32 %v4129, %v3664
  %v4131 = vmax.f32 %v4130, %v3668
  %v4132 = vmax.f32 %v4131, %v3674
  %v4133 = vmax.f32 %v4132, %v3678
  %v4134 = vmax.f32 %v4133, %v3684
  %v4135 = vmax.f32 %v3646, %v3650
  %v4136 = vmax.f32 %v4135, %v3656
  %v4137 = vmax.f32 %v4136, %v3660
  %v4138 = vmax.f32 %v4137, %v3666
  %v4139 = vmax.f32 %v4138, %v3670
  %v4140 = vmax.f32 %v4139, %v3676
  %v4141 = vmax.f32 %v4140, %v3680
  %v4142 = vmax.f32 %v4141, %v3686
  %v4143 = vmax.f32 %v3725, %v3729
  %v4144 = vmax.f32 %v4143, %v3735
  %v4145 = vmax.f32 %v4144, %v3739
  %v4146 = vmax.f32 %v4145, %v3745
  %v4147 = vmax.f32 %v4146, %v3749
  %v4148 = vmax.f32 %v4147, %v3755
  %v4149 = vmax.f32 %v4148, %v3759
  %v4150 = vmax.f32 %v4149, %v3765
  %v4151 = vmax.f32 %v3727, %v3731
  %v4152 = vmax.f32 %v4151, %v3737
  %v4153 = vmax.f32 %v4152, %v3741
  %v4154 = vmax.f32 %v4153, %v3747
  %v4155 = vmax.f32 %v4154, %v3751
  %v4156 = vmax.f32 %v4155, %v3757
  %v4157 = vmax.f32 %v4156, %v3761
  %v4158 = vmax.f32 %v4157, %v3767
  %v4159 = vmax.f32 %v3806, %v3810
  %v4160 = vmax.f32 %v4159, %v3816
  %v4161 = vmax.f32 %v4160, %v3820
  %v4162 = vmax.f32 %v4161, %v3826
  %v4163 = vmax.f32 %v4162, %v3830
  %v4164 = vmax.f32 %v4163, %v3836
  %v4165 = vmax.f32 %v4164, %v3840
  %v4166 = vmax.f32 %v4165, %v3846
  %v4167 = vmax.f32 %v3808, %v3812
  %v4168 = vmax.f32 %v4167, %v3818
  %v4169 = vmax.f32 %v4168, %v3822
  %v4170 = vmax.f32 %v4169, %v3828
  %v4171 = vmax.f32 %v4170, %v3832
  %v4172 = vmax.f32 %v4171, %v3838
  %v4173 = vmax.f32 %v4172, %v3842
  %v4174 = vmax.f32 %v4173, %v3848
  %v4175 = vmax.f32 %v3887, %v3891
  %v4176 = vmax.f32 %v4175, %v3897
  %v4177 = vmax.f32 %v4176, %v3901
  %v4178 = vmax.f32 %v4177, %v3907
  %v4179 = vmax.f32 %v4178, %v3911
  %v4180 = vmax.f32 %v4179, %v3917
  %v4181 = vmax.f32 %v4180, %v3921
  %v4182 = vmax.f32 %v4181, %v3927
  %v4183 = vmax.f32 %v3889, %v3893
  %v4184 = vmax.f32 %v4183, %v3899
  %v4185 = vmax.f32 %v4184, %v3903
  %v4186 = vmax.f32 %v4185, %v3909
  %v4187 = vmax.f32 %v4186, %v3913
  %v4188 = vmax.f32 %v4187, %v3919
  %v4189 = vmax.f32 %v4188, %v3923
  %v4190 = vmax.f32 %v4189, %v3929
  %v4191 = vmax.f32 %v3968, %v3972
  %v4192 = vmax.f32 %v4191, %v3978
  %v4193 = vmax.f32 %v4192, %v3982
  %v4194 = vmax.f32 %v4193, %v3988
  %v4195 = vmax.f32 %v4194, %v3992
  %v4196 = vmax.f32 %v4195, %v3998
  %v4197 = vmax.f32 %v4196, %v4002
  %v4198 = vmax.f32 %v4197, %v4008
  %v4199 = vmax.f32 %v3970, %v3974
  %v4200 = vmax.f32 %v4199, %v3980
  %v4201 = vmax.f32 %v4200, %v3984
  %v4202 = vmax.f32 %v4201, %v3990
  %v4203 = vmax.f32 %v4202, %v3994
  %v4204 = vmax.f32 %v4203, %v4000
  %v4205 = vmax.f32 %v4204, %v4004
  %v4206 = vmax.f32 %v4205, %v4010
  %v4207 = vmax.f32 %v4049, %v4053
  %v4208 = vmax.f32 %v4207, %v4059
  %v4209 = vmax.f32 %v4208, %v4063
  %v4210 = vmax.f32 %v4209, %v4069
  %v4211 = vmax.f32 %v4210, %v4073
  %v4212 = vmax.f32 %v4211, %v4079
  %v4213 = vmax.f32 %v4212, %v4083
  %v4214 = vmax.f32 %v4213, %v4089
  %v4215 = vmax.f32 %v4051, %v4055
  %v4216 = vmax.f32 %v4215, %v4061
  %v4217 = vmax.f32 %v4216, %v4065
  %v4218 = vmax.f32 %v4217, %v4071
  %v4219 = vmax.f32 %v4218, %v4075
  %v4220 = vmax.f32 %v4219, %v4081
  %v4221 = vmax.f32 %v4220, %v4085
  %v4222 = vmax.f32 %v4221, %v4091
  %v4223 = vadd.f32 %v4102, %v1077
  %v4224 = vadd.f32 %v4110, %v1077
  %v4225 = vadd.f32 %v4118, %v1077
  %v4226 = vadd.f32 %v4126, %v1077
  %v4227 = vadd.f32 %v4134, %v1077
  %v4228 = vadd.f32 %v4142, %v1077
  %v4229 = vadd.f32 %v4150, %v1077
  %v4230 = vadd.f32 %v4158, %v1077
  %v4231 = vadd.f32 %v4166, %v1077
  %v4232 = vadd.f32 %v4174, %v1077
  %v4233 = vadd.f32 %v4182, %v1077
  %v4234 = vadd.f32 %v4190, %v1077
  %v4235 = vadd.f32 %v4198, %v1077
  %v4236 = vadd.f32 %v4206, %v1077
  %v4237 = vadd.f32 %v4214, %v1077
  %v4238 = vadd.f32 %v4222, %v1077
  %v4239 = vmax.f32 %v4223, 0.0
  %v4240 = vmax.f32 %v4224, 0.0
  %v4241 = vmax.f32 %v4225, 0.0
  %v4242 = vmax.f32 %v4226, 0.0
  %v4243 = vmax.f32 %v4227, 0.0
  %v4244 = vmax.f32 %v4228, 0.0
  %v4245 = vmax.f32 %v4229, 0.0
  %v4246 = vmax.f32 %v4230, 0.0
  %v4247 = vmax.f32 %v4231, 0.0
  %v4248 = vmax.f32 %v4232, 0.0
  %v4249 = vmax.f32 %v4233, 0.0
  %v4250 = vmax.f32 %v4234, 0.0
  %v4251 = vmax.f32 %v4235, 0.0
  %v4252 = vmax.f32 %v4236, 0.0
  %v4253 = vmax.f32 %v4237, 0.0
  %v4254 = vmax.f32 %v4238, 0.0
  %4255 = vst [vmem:[#allocation2 + $0x180] sm:$0xff] %v4239
  %4256 = vst [vmem:[#allocation2 + $0x188] sm:$0xff] %v4240
  %4257 = vst [vmem:[#allocation2 + $0x190] sm:$0xff] %v4241
  %4258 = vst [vmem:[#allocation2 + $0x198] sm:$0xff] %v4242
  %4259 = vst [vmem:[#allocation2 + $0x1a0] sm:$0xff] %v4243
  %4260 = vst [vmem:[#allocation2 + $0x1a8] sm:$0xff] %v4244
  %4261 = vst [vmem:[#allocation2 + $0x1b0] sm:$0xff] %v4245
  %4262 = vst [vmem:[#allocation2 + $0x1b8] sm:$0xff] %v4246
  %4263 = vst [vmem:[#allocation2 + $0x1c0] sm:$0xff] %v4247
  %4264 = vst [vmem:[#allocation2 + $0x1c8] sm:$0xff] %v4248
  %4265 = vst [vmem:[#allocation2 + $0x1d0] sm:$0xff] %v4249
  %4266 = vst [vmem:[#allocation2 + $0x1d8] sm:$0xff] %v4250
  %4267 = vst [vmem:[#allocation2 + $0x1e0] sm:$0xff] %v4251
  %4268 = vst [vmem:[#allocation2 + $0x1e8] sm:$0xff] %v4252
  %4269 = vst [vmem:[#allocation2 + $0x1f0] sm:$0xff] %v4253
  %4270 = vst [vmem:[#allocation2 + $0x1f8] sm:$0xff] %v4254
  %v4271 = vld [vmem:[%s3] sm:$0xff]
  %v4272 = vld [vmem:[%s3 + $0x8] sm:$0xff]
  %v4273 = vld [vmem:[%s3 + $0x10] sm:$0x11]
  %v4274 = vld [vmem:[%s3 + $0x18] sm:$0x11]
  %v4275 = vld [vmem:[#allocation2] sm:$0xff]
  %v4276 = vld [vmem:[#allocation2 + $0x8] sm:$0xff]
  %v4277 = vld [vmem:[#allocation2 + $0x10] sm:$0xff]
  %v4278 = vld [vmem:[#allocation2 + $0x18] sm:$0xff]
  %v4279 = vld [vmem:[#allocation2 + $0x20] sm:$0xff]
  %v4280 = vld [vmem:[#allocation2 + $0x28] sm:$0xff]
  %v4281 = vld [vmem:[#allocation2 + $0x30] sm:$0xff]
  %v4282 = vld [vmem:[#allocation2 + $0x38] sm:$0xff]
  %v4283 = vld [vmem:[#allocation2 + $0x40] sm:$0xff]
  %v4284 = vld [vmem:[#allocation2 + $0x48] sm:$0xff]
  %v4285 = vld [vmem:[#allocation2 + $0x50] sm:$0xff]
  %v4286 = vld [vmem:[#allocation2 + $0x58] sm:$0xff]
  %v4287 = vld [vmem:[#allocation2 + $0x60] sm:$0xff]
  %v4288 = vld [vmem:[#allocation2 + $0x68] sm:$0xff]
  %v4289 = vld [vmem:[#allocation2 + $0x70] sm:$0xff]
  %v4290 = vld [vmem:[#allocation2 + $0x78] sm:$0xff]
  %v4291 = vld [vmem:[#allocation2 + $0x80] sm:$0xff]
  %v4292 = vld [vmem:[#allocation2 + $0x88] sm:$0xff]
  %v4293 = vld [vmem:[#allocation2 + $0x90] sm:$0xff]
  %v4294 = vld [vmem:[#allocation2 + $0x98] sm:$0xff]
  %v4295 = vld [vmem:[#allocation2 + $0xa0] sm:$0xff]
  %v4296 = vld [vmem:[#allocation2 + $0xa8] sm:$0xff]
  %v4297 = vld [vmem:[#allocation2 + $0xb0] sm:$0xff]
  %v4298 = vld [vmem:[#allocation2 + $0xb8] sm:$0xff]
  %v4299 = vld [vmem:[#allocation2 + $0xc0] sm:$0xff]
  %v4300 = vld [vmem:[#allocation2 + $0xc8] sm:$0xff]
  %v4301 = vld [vmem:[#allocation2 + $0xd0] sm:$0xff]
  %v4302 = vld [vmem:[#allocation2 + $0xd8] sm:$0xff]
  %v4303 = vld [vmem:[#allocation2 + $0xe0] sm:$0xff]
  %v4304 = vld [vmem:[#allocation2 + $0xe8] sm:$0xff]
  %v4305 = vld [vmem:[#allocation2 + $0xf0] sm:$0xff]
  %v4306 = vld [vmem:[#allocation2 + $0xf8] sm:$0xff]
  %v4307 = vld [vmem:[#allocation2 + $0x100] sm:$0xff]
  %v4308 = vld [vmem:[#allocation2 + $0x108] sm:$0xff]
  %v4309 = vld [vmem:[#allocation2 + $0x110] sm:$0xff]
  %v4310 = vld [vmem:[#allocation2 + $0x118] sm:$0xff]
  %v4311 = vld [vmem:[#allocation2 + $0x120] sm:$0xff]
  %v4312 = vld [vmem:[#allocation2 + $0x128] sm:$0xff]
  %v4313 = vld [vmem:[#allocation2 + $0x130] sm:$0xff]
  %v4314 = vld [vmem:[#allocation2 + $0x138] sm:$0xff]
  %v4315 = vld [vmem:[#allocation2 + $0x140] sm:$0xff]
  %v4316 = vld [vmem:[#allocation2 + $0x148] sm:$0xff]
  %v4317 = vld [vmem:[#allocation2 + $0x150] sm:$0xff]
  %v4318 = vld [vmem:[#allocation2 + $0x158] sm:$0xff]
  %v4319 = vld [vmem:[#allocation2 + $0x160] sm:$0xff]
  %v4320 = vld [vmem:[#allocation2 + $0x168] sm:$0xff]
  %v4321 = vld [vmem:[#allocation2 + $0x170] sm:$0xff]
  %v4322 = vld [vmem:[#allocation2 + $0x178] sm:$0xff]
  %v4323 = vld [vmem:[#allocation2 + $0x180] sm:$0xff]
  %v4324 = vld [vmem:[#allocation2 + $0x188] sm:$0xff]
  %v4325 = vld [vmem:[#allocation2 + $0x190] sm:$0xff]
  %v4326 = vld [vmem:[#allocation2 + $0x198] sm:$0xff]
  %v4327 = vld [vmem:[#allocation2 + $0x1a0] sm:$0xff]
  %v4328 = vld [vmem:[#allocation2 + $0x1a8] sm:$0xff]
  %v4329 = vld [vmem:[#allocation2 + $0x1b0] sm:$0xff]
  %v4330 = vld [vmem:[#allocation2 + $0x1b8] sm:$0xff]
  %v4331 = vld [vmem:[#allocation2 + $0x1c0] sm:$0xff]
  %v4332 = vld [vmem:[#allocation2 + $0x1c8] sm:$0xff]
  %v4333 = vld [vmem:[#allocation2 + $0x1d0] sm:$0xff]
  %v4334 = vld [vmem:[#allocation2 + $0x1d8] sm:$0xff]
  %v4335 = vld [vmem:[#allocation2 + $0x1e0] sm:$0xff]
  %v4336 = vld [vmem:[#allocation2 + $0x1e8] sm:$0xff]
  %v4337 = vld [vmem:[#allocation2 + $0x1f0] sm:$0xff]
  %v4338 = vld [vmem:[#allocation2 + $0x1f8] sm:$0xff]
  %v4339 = vpack.c.bf16 %v4276, %v4275
  %v4340 = vpack.c.bf16 %v4278, %v4277
  %v4341 = vpack.c.bf16 %v4280, %v4279
  %v4342 = vpack.c.bf16 %v4282, %v4281
  %v4343 = vpack.c.bf16 %v4284, %v4283
  %v4344 = vpack.c.bf16 %v4286, %v4285
  %v4345 = vpack.c.bf16 %v4288, %v4287
  %v4346 = vpack.c.bf16 %v4290, %v4289
  %v4347 = vpack.c.bf16 %v4292, %v4291
  %v4348 = vpack.c.bf16 %v4294, %v4293
  %v4349 = vpack.c.bf16 %v4296, %v4295
  %v4350 = vpack.c.bf16 %v4298, %v4297
  %v4351 = vpack.c.bf16 %v4300, %v4299
  %v4352 = vpack.c.bf16 %v4302, %v4301
  %v4353 = vpack.c.bf16 %v4304, %v4303
  %v4354 = vpack.c.bf16 %v4306, %v4305
  %v4355 = vpack.c.bf16 %v4308, %v4307
  %v4356 = vpack.c.bf16 %v4310, %v4309
  %v4357 = vpack.c.bf16 %v4312, %v4311
  %v4358 = vpack.c.bf16 %v4314, %v4313
  %v4359 = vpack.c.bf16 %v4316, %v4315
  %v4360 = vpack.c.bf16 %v4318, %v4317
  %v4361 = vpack.c.bf16 %v4320, %v4319
  %v4362 = vpack.c.bf16 %v4322, %v4321
  %v4363 = vpack.c.bf16 %v4324, %v4323
  %v4364 = vpack.c.bf16 %v4326, %v4325
  %v4365 = vpack.c.bf16 %v4328, %v4327
  %v4366 = vpack.c.bf16 %v4330, %v4329
  %v4367 = vpack.c.bf16 %v4332, %v4331
  %v4368 = vpack.c.bf16 %v4334, %v4333
  %v4369 = vpack.c.bf16 %v4336, %v4335
  %v4370 = vpack.c.bf16 %v4338, %v4337
  %v4371 = vld [vmem:[%s4] sm:$0xff]
  %v4372 = vld [vmem:[%s4 + $0x8] sm:$0x3]
  %4374 = vset.pattern.permute.xlu0 0
  %4375 = vperm.xlu0 %4374, %v4371
  %v4376 = vpop.permute.xlu0 %4375
  %4379 = vset.pattern.permute.xlu0 0
  %4380 = vperm.xlu0 %4379, %v4372
  %v4381 = vpop.permute.xlu0 %4380
  %v4387 = vunpack.c.l.b16 %v4271
  %v4388 = vunpack.c.h.b16 %v4271
  %v4389 = vunpack.c.l.b16 %v4272
  %v4390 = vunpack.c.h.b16 %v4272
  %v4391 = vunpack.c.l.b16 %v4273
  %v4392 = vunpack.c.h.b16 %v4273
  %v4393 = vunpack.c.l.b16 %v4274
  %v4394 = vunpack.c.h.b16 %v4274
  %v4395 = vpack.c.b16 %v4391, %v4387
  %v4396 = vpack.c.b16 %v4392, %v4388
  %v4397 = vpack.c.b16 %v4393, %v4389
  %v4398 = vpack.c.b16 %v4394, %v4390
  %4403 = vmatprep.subr.bf16.mxu0 0
  %4404 = vmatpush1.bf16.msra.mxu0 %v4346
  %4405 = vmatprep.subr.bf16.mxu0 0
  %4406 = vmatpush1.bf16.msra.mxu0 %v4345
  %4407 = vmatprep.subr.bf16.mxu0 0
  %4408 = vmatpush1.bf16.msra.mxu0 %v4344
  %4409 = vmatprep.subr.bf16.mxu0 0
  %4410 = vmatpush1.bf16.msra.mxu0 %v4343
  %4411 = vmatprep.subr.bf16.mxu0 0
  %4412 = vmatpush1.bf16.msra.mxu0 %v4342
  %4413 = vmatprep.subr.bf16.mxu0 0
  %4414 = vmatpush1.bf16.msra.mxu0 %v4341
  %4415 = vmatprep.subr.bf16.mxu0 0
  %4416 = vmatpush1.bf16.msra.mxu0 %v4340
  %4417 = vmatprep.subr.bf16.mxu0 0
  %4418 = vmatpush1.bf16.msra.mxu0 %v4339
  %4419 = vmatprep.subr.bf16.mxu0 0
  %4420 = vmatpush2.bf16.msra.mxu0 %v4354
  %4421 = vmatprep.subr.bf16.mxu0 0
  %4422 = vmatpush2.bf16.msra.mxu0 %v4353
  %4423 = vmatprep.subr.bf16.mxu0 0
  %4424 = vmatpush2.bf16.msra.mxu0 %v4352
  %4425 = vmatprep.subr.bf16.mxu0 0
  %4426 = vmatpush2.bf16.msra.mxu0 %v4351
  %4427 = vmatprep.subr.bf16.mxu0 0
  %4428 = vmatpush2.bf16.msra.mxu0 %v4350
  %4429 = vmatprep.subr.bf16.mxu0 0
  %4430 = vmatpush2.bf16.msra.mxu0 %v4349
  %4431 = vmatprep.subr.bf16.mxu0 0
  %4432 = vmatpush2.bf16.msra.mxu0 %v4348
  %4433 = vmatprep.subr.bf16.mxu0 0
  %4434 = vmatpush2.bf16.msra.mxu0 %v4347
  %4435 = vmatprep.mubr.bf16.mxu0 %v4396
  %4436 = vmatmul.mubr.bf16.gmra.mxu0 %v4395
  %v4437 = vpop.f32.mrf.mxu0
  %v4438 = vadd.f32 %v4376, %v4437
  %v4439 = vpop.f32.mrf.mxu0
  %v4440 = vpop.f32.mrf.mxu0
  %v4441 = vadd.f32 %v4381, %v4440
  %v4442 = vpop.f32.mrf.mxu0
  %4443 = vdwg.mxu0
  %4444 = vmatprep.subr.bf16.mxu0 0
  %4445 = vmatpush1.bf16.msra.mxu0 %v4362
  %4446 = vmatprep.subr.bf16.mxu0 0
  %4447 = vmatpush1.bf16.msra.mxu0 %v4361
  %4448 = vmatprep.subr.bf16.mxu0 0
  %4449 = vmatpush1.bf16.msra.mxu0 %v4360
  %4450 = vmatprep.subr.bf16.mxu0 0
  %4451 = vmatpush1.bf16.msra.mxu0 %v4359
  %4452 = vmatprep.subr.bf16.mxu0 0
  %4453 = vmatpush1.bf16.msra.mxu0 %v4358
  %4454 = vmatprep.subr.bf16.mxu0 0
  %4455 = vmatpush1.bf16.msra.mxu0 %v4357
  %4456 = vmatprep.subr.bf16.mxu0 0
  %4457 = vmatpush1.bf16.msra.mxu0 %v4356
  %4458 = vmatprep.subr.bf16.mxu0 0
  %4459 = vmatpush1.bf16.msra.mxu0 %v4355
  %4460 = vmatprep.subr.bf16.mxu0 0
  %4461 = vmatpush2.bf16.msra.mxu0 %v4370
  %4462 = vmatprep.subr.bf16.mxu0 0
  %4463 = vmatpush2.bf16.msra.mxu0 %v4369
  %4464 = vmatprep.subr.bf16.mxu0 0
  %4465 = vmatpush2.bf16.msra.mxu0 %v4368
  %4466 = vmatprep.subr.bf16.mxu0 0
  %4467 = vmatpush2.bf16.msra.mxu0 %v4367
  %4468 = vmatprep.subr.bf16.mxu0 0
  %4469 = vmatpush2.bf16.msra.mxu0 %v4366
  %4470 = vmatprep.subr.bf16.mxu0 0
  %4471 = vmatpush2.bf16.msra.mxu0 %v4365
  %4472 = vmatprep.subr.bf16.mxu0 0
  %4473 = vmatpush2.bf16.msra.mxu0 %v4364
  %4474 = vmatprep.subr.bf16.mxu0 0
  %4475 = vmatpush2.bf16.msra.mxu0 %v4363
  %4476 = vmatprep.mubr.bf16.mxu0 %v4398
  %4477 = vmatmul.mubr.bf16.gmra.mxu0 %v4397
  %v4478 = vpop.f32.mrf.mxu0
  %v4479 = vadd.f32 %v4438, %v4478
  %v4480 = vpop.f32.mrf.mxu0
  %v4481 = vpop.f32.mrf.mxu0
  %v4482 = vadd.f32 %v4441, %v4481
  %v4483 = vpop.f32.mrf.mxu0
  %4484 = vdwg.mxu0
  %vm4485 = vcmask 1041408
  %v4486 = vsel %vm4485, %v4482, -inf
  %v4487 = vmax.f32 %v4479, %v4486
  %v4488 = vrot.slane %v4487, 4
  %v4489 = vmax.f32 %v4487, %v4488
  %v4490 = vrot.slane %v4489, 2
  %v4491 = vmax.f32 %v4489, %v4490
  %v4492 = vrot.slane %v4491, 1
  %v4493 = vmax.f32 %v4491, %v4492
  %v4494 = vsub.f32 %v4479, %v4493
  %v4495 = vsub.f32 %v4482, %v4493
  %v4496 = vmul.f32 %v4494, 1.442695
  %v4497 = vpow.pop %v4496
  %v4498 = vmul.f32 %v4495, 1.442695
  %v4499 = vpow.pop %v4498
  %v4500 = vsel %vm4485, %v4499, 0.0
  %v4501 = vadd.f32 %v4497, %v4500
  %v4502 = vrot.slane %v4501, 4
  %v4503 = vadd.f32 %v4501, %v4502
  %v4504 = vrot.slane %v4503, 2
  %v4505 = vadd.f32 %v4503, %v4504
  %v4506 = vrot.slane %v4505, 1
  %v4507 = vadd.f32 %v4505, %v4506
  %v4508 = vlog2.pop %v4507
  %v4509 = vmul.f32 %v4508, 0.6931472
  %v4510 = vsub.f32 %v4494, %v4509
  %v4511 = vsub.f32 %v4495, %v4509
  %4512 = vst [vmem:[%s5] sm:$0xff] %v4510
  %4513 = vst [vmem:[%s5 + $0x8] sm:$0x3] %v4511
  // Predicated region
  $region22: #{convnet_forward.1} parent=0 // pred_check
    _
  $region23: #{convnet_forward.1} parent=0 // pred_check_branch
    %4515 = sbr.rel (0) target = $region25
  $region24: #{convnet_forward.1} parent=0 // pred_region
    _
  $region25: #{convnet_forward.1} parent=0 // pred_fallthru
    _
  // Predicated region
  $region26: #{convnet_forward.1} parent=0 // pred_check
    _
  $region27: #{convnet_forward.1} parent=0 // pred_check_branch
    %4517 = sbr.rel (0) target = $region29
  $region28: #{convnet_forward.1} parent=0 // pred_region
    _
  $region29: #{convnet_forward.1} parent=0 // pred_fallthru
    _

</llo_original>
